<compile_context>
chip_gen: v6e
topology: v6e:2x2x1
jax: 0.10.0
libtpu: 0.0.40
codegen_flags: <defaults>
</compile_context>

<pallas_src>
import functools

import jax
import jax.numpy as jnp
from jax.experimental import pallas as pl
from jax.experimental.pallas import tpu as pltpu


H = W = 7          # AvgPool2d(7, stride=1) + Linear(448) imply 7x7 spatial


def _vmem():
    return pl.BlockSpec(memory_space=pltpu.MemorySpace.VMEM)


def _round_up(n, m):
    return (n + m - 1) // m * m


# ----------------------------- Pallas kernels -------------------------------

def _matmul_affine_relu_kernel(x_ref, w_ref, s_ref, b_ref, o_ref):
    # o = relu((x @ w) * scale + bias)  -- conv-as-matmul + folded BN + ReLU
    acc = jnp.dot(x_ref[...], w_ref[...], preferred_element_type=jnp.float32)
    o_ref[...] = jnp.maximum(acc * s_ref[...] + b_ref[...], 0.0)


def matmul_affine_relu(x, w, scale, bias):
    M = x.shape[0]
    C = w.shape[1]
    return pl.pallas_call(
        _matmul_affine_relu_kernel,
        out_shape=jax.ShapeDtypeStruct((M, C), jnp.float32),
        in_specs=[_vmem()] * 4,
        out_specs=_vmem(),
    )(x, w, scale.reshape(1, C), bias.reshape(1, C))


def _tail_kernel(cols3_ref, w3_ref, s3_ref, c3_ref,
                 b1_ref, b3_ref, bp_ref, pm_ref,
                 wb_ref, bb_ref, wf_ref, bf_ref, o_ref):
    # branch3x3dbl_3a/3b fused conv + BN + ReLU            -> (MP, 192)
    bd = jnp.maximum(
        jnp.dot(cols3_ref[...], w3_ref[...], preferred_element_type=jnp.float32)
        * s3_ref[...] + c3_ref[...], 0.0)
    # Global 7x7 avg-pool as a (B, MP) pooling-matrix matmul; its zero columns
    # kill the padded rows, so no unpadding is needed.
    pm = pm_ref[...]
    p1 = jnp.dot(pm, b1_ref[...], preferred_element_type=jnp.float32)   # (B, 64)
    p3 = jnp.dot(pm, b3_ref[...], preferred_element_type=jnp.float32)   # (B, 128)
    pd = jnp.dot(pm, bd,          preferred_element_type=jnp.float32)   # (B, 192)
    pp = jnp.dot(pm, bp_ref[...], preferred_element_type=jnp.float32)   # (B, 64)
    # bottle linear: weight rows split per branch (avoids an in-kernel concat),
    # split points are sublane-aligned (64 / 192 / 384).
    h = (jnp.dot(p1, wb_ref[0:64, :],    preferred_element_type=jnp.float32)
         + jnp.dot(p3, wb_ref[64:192, :],  preferred_element_type=jnp.float32)
         + jnp.dot(pd, wb_ref[192:384, :], preferred_element_type=jnp.float32)
         + jnp.dot(pp, wb_ref[384:448, :], preferred_element_type=jnp.float32)
         + bb_ref[...])                                                 # (B, 256)
    # source_fc (output lane-padded to 128 columns)
    o_ref[...] = jnp.dot(h, wf_ref[...], preferred_element_type=jnp.float32) + bf_ref[...]


def tail(cols3, w3, s3, c3, b1, b3, bp, pm, wb, bb, wf, bf):
    B = pm.shape[0]
    NC = wf.shape[1]
    return pl.pallas_call(
        _tail_kernel,
        out_shape=jax.ShapeDtypeStruct((B, NC), jnp.float32),
        in_specs=[_vmem()] * 12,
        out_specs=_vmem(),
    )(cols3, w3, s3.reshape(1, -1), c3.reshape(1, -1),
      b1, b3, bp, pm, wb, bb.reshape(1, -1), wf, bf.reshape(1, -1))


# ------------------------------ JAX glue -------------------------------------

def im2col3x3(x_nhwc, m_pad):
    """stride-1, pad-1 3x3 im2col -> (m_pad, 9*C); tap outer, channel inner.
    Rows beyond N*H*W are zero (M padded to a multiple of 8 for clean tiles)."""
    N, Hh, Ww, C = x_nhwc.shape
    xp = jnp.pad(x_nhwc, ((0, 0), (1, 1), (1, 1), (0, 0)))
    parts = [xp[:, dy:dy + Hh, dx:dx + Ww, :] for dy in range(3) for dx in range(3)]
    cols = jnp.concatenate(parts, axis=-1).reshape(N * Hh * Ww, 9 * C)
    return jnp.pad(cols, ((0, m_pad - N * Hh * Ww), (0, 0)))


# --------------------------- parameter construction --------------------------

def make_basic_conv(key, cin, cout, kh, kw):
    # NOTE: real PyTorch conv weights are (cout, cin, kh, kw); they must be
    # transposed to (kh, kw, cin, cout) before use here.
    k1, k2, k3, k4, k5 = jax.random.split(key, 5)
    w = 0.05 * jax.random.normal(k1, (kh, kw, cin, cout), jnp.float32)
    gamma = 1.0 + 0.1 * jax.random.normal(k2, (cout,), jnp.float32)
    beta = 0.1 * jax.random.normal(k3, (cout,), jnp.float32)
    running_mean = 0.1 * jax.random.normal(k4, (cout,), jnp.float32)
    running_var = 1.0 + 0.1 * jax.random.uniform(k5, (cout,), jnp.float32)
    eps = 1e-3
    scale = gamma / jnp.sqrt(running_var + eps)
    bias = beta - running_mean * scale
    return dict(w=w, scale=scale, bias=bias)


def _pad_lanes(w, s, b, width):
    pad = width - w.shape[1]
    return (jnp.pad(w, ((0, 0), (0, pad))),
            jnp.pad(s, ((0, pad),)),
            jnp.pad(b, ((0, pad),)))


def build_fused_params(P, cin, num_classes):
    """Fold the 9 BasicConv2d blocks into 3 block-structured matmul weights."""
    F = {}

    # ---- stage 1: [branch1x1 | branch3x3_1 | branch3x3dbl_1 | pool∘branch_pool]
    w1 = jnp.zeros((9 * cin, 240), jnp.float32)
    ctr = 4                                        # center tap (dy=1, dx=1)
    w1 = w1.at[ctr * cin:(ctr + 1) * cin,   0: 64].set(P["branch1x1"]["w"][0, 0])
    w1 = w1.at[ctr * cin:(ctr + 1) * cin,  64:112].set(P["branch3x3_1"]["w"][0, 0])
    w1 = w1.at[ctr * cin:(ctr + 1) * cin, 112:176].set(P["branch3x3dbl_1"]["w"][0, 0])
    # avg_pool2d(3, stride=1, pad=1, count_include_pad=True) then 1x1 conv ==
    # one 3x3 conv with the 1x1 weight / 9 replicated over all 9 taps.
    for t in range(9):
        w1 = w1.at[t * cin:(t + 1) * cin, 176:240].set(P["branch_pool"]["w"][0, 0] / 9.0)
    s1 = jnp.concatenate([P["branch1x1"]["scale"], P["branch3x3_1"]["scale"],
                          P["branch3x3dbl_1"]["scale"], P["branch_pool"]["scale"]])
    c1 = jnp.concatenate([P["branch1x1"]["bias"], P["branch3x3_1"]["bias"],
                          P["branch3x3dbl_1"]["bias"], P["branch_pool"]["bias"]])
    F["w1"], F["s1"], F["c1"] = _pad_lanes(w1, s1, c1, 256)

    # ---- stage 2: [branch3x3_2a | branch3x3_2b | branch3x3dbl_2] on 112-ch input
    cm = 112                                       # 48 (3x3 path) + 64 (dbl path)
    w2 = jnp.zeros((9 * cm, 224), jnp.float32)
    for dx in range(3):                            # 1x3 conv -> taps (dy=1, dx)
        t = 3 + dx
        w2 = w2.at[t * cm:t * cm + 48, 0:64].set(P["branch3x3_2a"]["w"][0, dx])
    for dy in range(3):                            # 3x1 conv -> taps (dy, dx=1)
        t = dy * 3 + 1
        w2 = w2.at[t * cm:t * cm + 48, 64:128].set(P["branch3x3_2b"]["w"][dy, 0])
    for dy in range(3):                            # 3x3 conv on the 64-ch part
        for dx in range(3):
            t = dy * 3 + dx
            w2 = w2.at[t * cm + 48:t * cm + 112, 128:224].set(P["branch3x3dbl_2"]["w"][dy, dx])
    s2 = jnp.concatenate([P["branch3x3_2a"]["scale"], P["branch3x3_2b"]["scale"],
                          P["branch3x3dbl_2"]["scale"]])
    c2 = jnp.concatenate([P["branch3x3_2a"]["bias"], P["branch3x3_2b"]["bias"],
                          P["branch3x3dbl_2"]["bias"]])
    F["w2"], F["s2"], F["c2"] = _pad_lanes(w2, s2, c2, 256)

    # ---- stage 3: [branch3x3dbl_3a | branch3x3dbl_3b] (used inside tail kernel)
    w3 = jnp.zeros((9 * 96, 192), jnp.float32)
    for dx in range(3):
        t = 3 + dx
        w3 = w3.at[t * 96:(t + 1) * 96, 0:96].set(P["branch3x3dbl_3a"]["w"][0, dx])
    for dy in range(3):
        t = dy * 3 + 1
        w3 = w3.at[t * 96:(t + 1) * 96, 96:192].set(P["branch3x3dbl_3b"]["w"][dy, 0])
    F["w3"] = w3
    F["s3"] = jnp.concatenate([P["branch3x3dbl_3a"]["scale"], P["branch3x3dbl_3b"]["scale"]])
    F["c3"] = jnp.concatenate([P["branch3x3dbl_3a"]["bias"], P["branch3x3dbl_3b"]["bias"]])

    # ---- head linears (fc output lane-padded to 128)
    F["bottle_w"] = P["bottle_w"]                  # (448, 256)
    F["bottle_b"] = P["bottle_b"]
    ncp = 128
    F["fc_w"] = jnp.pad(P["fc_w"], ((0, 0), (0, ncp - num_classes)))
    F["fc_b"] = jnp.pad(P["fc_b"], ((0, ncp - num_classes),))
    return F


def make_params(key, in_channels, num_classes=6, bottle_channel=256):
    keys = jax.random.split(key, 12)
    P = {
        "branch1x1":       make_basic_conv(keys[0], in_channels, 64, 1, 1),
        "branch3x3_1":     make_basic_conv(keys[1], in_channels, 48, 1, 1),
        "branch3x3_2a":    make_basic_conv(keys[2], 48, 64, 1, 3),
        "branch3x3_2b":    make_basic_conv(keys[3], 48, 64, 3, 1),
        "branch3x3dbl_1":  make_basic_conv(keys[4], in_channels, 64, 1, 1),
        "branch3x3dbl_2":  make_basic_conv(keys[5], 64, 96, 3, 3),
        "branch3x3dbl_3a": make_basic_conv(keys[6], 96, 96, 1, 3),
        "branch3x3dbl_3b": make_basic_conv(keys[7], 96, 96, 3, 1),
        "branch_pool":     make_basic_conv(keys[8], in_channels, 64, 1, 1),
    }
    P["bottle_w"] = 0.05 * jax.random.normal(keys[9], (448, bottle_channel), jnp.float32)
    P["bottle_b"] = 0.05 * jax.random.normal(keys[10], (bottle_channel,), jnp.float32)
    kfa, kfb = jax.random.split(keys[11])
    P["fc_w"] = 0.05 * jax.random.normal(kfa, (bottle_channel, num_classes), jnp.float32)
    P["fc_b"] = 0.05 * jax.random.normal(kfb, (num_classes,), jnp.float32)
    return build_fused_params(P, in_channels, num_classes)


# ------------------------------ MRANNet forward -------------------------------

@functools.partial(jax.jit, static_argnames=("num_classes",))
def mrannet_forward(source_nchw, target_nchw, s_label, F, num_classes=6):
    # Source & target share all weights -> one batched pass (halves launches).
    x = jnp.concatenate([source_nchw, target_nchw], axis=0)         # (2N, Cin, 7, 7)
    x = jnp.transpose(x, (0, 2, 3, 1))                              # NCHW -> NHWC
    B, Hh, Ww, _ = x.shape
    n_src = source_nchw.shape[0]
    M = B * Hh * Ww
    MP = _round_up(M, 8)                                            # sublane-aligned rows

    # stage 1: all four input-facing convs (pool branch folded) in one matmul
    cols1 = im2col3x3(x, MP)                                        # (MP, 9*Cin)
    out1 = matmul_affine_relu(cols1, F["w1"], F["s1"], F["c1"])     # (MP, 256)
    b1 = out1[:, 0:64]                                              # branch1x1
    bp = out1[:, 176:240]                                           # pooled branch
    mid = out1[:M, 64:176].reshape(B, Hh, Ww, 112)                  # [3x3_1 | 3x3dbl_1]

    # stage 2: branch3x3_2a/2b + branch3x3dbl_2 in one matmul
    cols2 = im2col3x3(mid, MP)                                      # (MP, 9*112)
    out2 = matmul_affine_relu(cols2, F["w2"], F["s2"], F["c2"])     # (MP, 256)
    b3 = out2[:, 0:128]                                             # cat([2a, 2b], dim=1)
    bdm = out2[:M, 128:224].reshape(B, Hh, Ww, 96)

    # tail: branch3x3dbl_3a/3b + global avg-pool + bottle + source_fc, fused
    cols3 = im2col3x3(bdm, MP)                                      # (MP, 9*96)
    img_of_row = jnp.arange(MP) // (Hh * Ww)                        # pad rows -> no image
    pool_mat = (img_of_row[None, :] == jnp.arange(B)[:, None]).astype(jnp.float32) / (Hh * Ww)
    logits = tail(cols3, F["w3"], F["s3"], F["c3"], b1, b3, bp, pool_mat,
                  F["bottle_w"], F["bottle_b"], F["fc_w"], F["fc_b"])   # (B, 128)

    output = logits[:n_src, :num_classes]                           # source_fc(bottle(src))
    t_label = jnp.argmax(logits[n_src:, :num_classes], axis=1)      # matches .data.max(1)[1]
    del t_label, s_label                                            # only used by training-time cmmd
    cmmd_loss = jnp.float32(0.0)                                    # eval mode: self.training is False
    return output, cmmd_loss


# ---------------------------------- main --------------------------------------

if __name__ == "__main__":
    key = jax.random.PRNGKey(0)
    k_p, k_s, k_t, k_l = jax.random.split(key, 4)

    batch = 2
    in_channels = 8
    num_classes = 6

    params = make_params(k_p, in_channels, num_classes=num_classes, bottle_channel=256)

    source = jax.random.normal(k_s, (batch, in_channels, H, W), jnp.float32)
    target = jax.random.normal(k_t, (batch, in_channels, H, W), jnp.float32)
    s_label = jax.random.randint(k_l, (batch,), 0, num_classes)

    output, cmmd_loss = mrannet_forward(source, target, s_label, params,
                                        num_classes=num_classes)
    jax.block_until_ready((output, cmmd_loss))

    assert output.shape == (batch, num_classes)
    assert output.dtype == jnp.float32
    print("KERNEL_OK")
</pallas_src>

<mosaic_0001>
module attributes {stable_mosaic.version = 11 : i64} {
  func.func @_matmul_affine_relu_kernel(%arg0: memref<200x72xf32, #tpu.memory_space<vmem>>, %arg1: memref<72x256xf32, #tpu.memory_space<vmem>>, %arg2: memref<1x256xf32, #tpu.memory_space<vmem>>, %arg3: memref<1x256xf32, #tpu.memory_space<vmem>>, %arg4: memref<200x256xf32, #tpu.memory_space<vmem>>) attributes {dimension_semantics = [], scalar_prefetch = 0 : i64, scratch_operands = 0 : i64, tpu.core_type = #tpu.core_type<tc>} {
    %c0 = arith.constant 0 : index
    %c0_0 = arith.constant 0 : index
    %0 = vector.load %arg0[%c0, %c0_0] : memref<200x72xf32, #tpu.memory_space<vmem>>, vector<200x72xf32>
    %c0_1 = arith.constant 0 : index
    %c0_2 = arith.constant 0 : index
    %1 = vector.load %arg1[%c0_1, %c0_2] : memref<72x256xf32, #tpu.memory_space<vmem>>, vector<72x256xf32>
    %cst = arith.constant dense<0.000000e+00> : vector<200x256xf32>
    %2 = tpu.matmul %0, %1, %cst {dimension_numbers = #tpu.dot_dimension_numbers<[1], [0], [0], [1], [0, 0, 1, 1], [], []>} : vector<200x72xf32>, vector<72x256xf32>, vector<200x256xf32> -> vector<200x256xf32>
    %c0_3 = arith.constant 0 : index
    %c0_4 = arith.constant 0 : index
    %3 = vector.load %arg2[%c0_3, %c0_4] : memref<1x256xf32, #tpu.memory_space<vmem>>, vector<1x256xf32>
    %4 = vector.broadcast %3 : vector<1x256xf32> to vector<200x256xf32>
    %5 = arith.mulf %2, %4 : vector<200x256xf32>
    %c0_5 = arith.constant 0 : index
    %c0_6 = arith.constant 0 : index
    %6 = vector.load %arg3[%c0_5, %c0_6] : memref<1x256xf32, #tpu.memory_space<vmem>>, vector<1x256xf32>
    %7 = vector.broadcast %6 : vector<1x256xf32> to vector<200x256xf32>
    %8 = arith.addf %5, %7 : vector<200x256xf32>
    %cst_7 = arith.constant 0.000000e+00 : f32
    %9 = vector.broadcast %cst_7 : f32 to vector<200x256xf32>
    %10 = arith.maximumf %8, %9 : vector<200x256xf32>
    %c0_8 = arith.constant 0 : index
    %c0_9 = arith.constant 0 : index
    %11 = vector.load %arg4[%c0_8, %c0_9] : memref<200x256xf32, #tpu.memory_space<vmem>>, vector<200x256xf32>
    tpu.vector_store %arg4[%c0_8, %c0_9], %10 {strides = array<i32>} : memref<200x256xf32, #tpu.memory_space<vmem>>, vector<200x256xf32>,
    return
  }
}

module attributes {stable_mosaic.version = 11 : i64} {
  func.func @_matmul_affine_relu_kernel(%arg0: memref<200x1008xf32, #tpu.memory_space<vmem>>, %arg1: memref<1008x256xf32, #tpu.memory_space<vmem>>, %arg2: memref<1x256xf32, #tpu.memory_space<vmem>>, %arg3: memref<1x256xf32, #tpu.memory_space<vmem>>, %arg4: memref<200x256xf32, #tpu.memory_space<vmem>>) attributes {dimension_semantics = [], scalar_prefetch = 0 : i64, scratch_operands = 0 : i64, tpu.core_type = #tpu.core_type<tc>} {
    %c0 = arith.constant 0 : index
    %c0_0 = arith.constant 0 : index
    %0 = vector.load %arg0[%c0, %c0_0] : memref<200x1008xf32, #tpu.memory_space<vmem>>, vector<200x1008xf32>
    %c0_1 = arith.constant 0 : index
    %c0_2 = arith.constant 0 : index
    %1 = vector.load %arg1[%c0_1, %c0_2] : memref<1008x256xf32, #tpu.memory_space<vmem>>, vector<1008x256xf32>
    %cst = arith.constant dense<0.000000e+00> : vector<200x256xf32>
    %2 = tpu.matmul %0, %1, %cst {dimension_numbers = #tpu.dot_dimension_numbers<[1], [0], [0], [1], [0, 0, 1, 1], [], []>} : vector<200x1008xf32>, vector<1008x256xf32>, vector<200x256xf32> -> vector<200x256xf32>
    %c0_3 = arith.constant 0 : index
    %c0_4 = arith.constant 0 : index
    %3 = vector.load %arg2[%c0_3, %c0_4] : memref<1x256xf32, #tpu.memory_space<vmem>>, vector<1x256xf32>
    %4 = vector.broadcast %3 : vector<1x256xf32> to vector<200x256xf32>
    %5 = arith.mulf %2, %4 : vector<200x256xf32>
    %c0_5 = arith.constant 0 : index
    %c0_6 = arith.constant 0 : index
    %6 = vector.load %arg3[%c0_5, %c0_6] : memref<1x256xf32, #tpu.memory_space<vmem>>, vector<1x256xf32>
    %7 = vector.broadcast %6 : vector<1x256xf32> to vector<200x256xf32>
    %8 = arith.addf %5, %7 : vector<200x256xf32>
    %cst_7 = arith.constant 0.000000e+00 : f32
    %9 = vector.broadcast %cst_7 : f32 to vector<200x256xf32>
    %10 = arith.maximumf %8, %9 : vector<200x256xf32>
    %c0_8 = arith.constant 0 : index
    %c0_9 = arith.constant 0 : index
    %11 = vector.load %arg4[%c0_8, %c0_9] : memref<200x256xf32, #tpu.memory_space<vmem>>, vector<200x256xf32>
    tpu.vector_store %arg4[%c0_8, %c0_9], %10 {strides = array<i32>} : memref<200x256xf32, #tpu.memory_space<vmem>>, vector<200x256xf32>,
    return
  }
}

module attributes {stable_mosaic.version = 11 : i64} {
  func.func @_tail_kernel(%arg0: memref<200x864xf32, #tpu.memory_space<vmem>>, %arg1: memref<864x192xf32, #tpu.memory_space<vmem>>, %arg2: memref<1x192xf32, #tpu.memory_space<vmem>>, %arg3: memref<1x192xf32, #tpu.memory_space<vmem>>, %arg4: memref<200x64xf32, #tpu.memory_space<vmem>>, %arg5: memref<200x128xf32, #tpu.memory_space<vmem>>, %arg6: memref<200x64xf32, #tpu.memory_space<vmem>>, %arg7: memref<4x200xf32, #tpu.memory_space<vmem>>, %arg8: memref<448x256xf32, #tpu.memory_space<vmem>>, %arg9: memref<1x256xf32, #tpu.memory_space<vmem>>, %arg10: memref<256x128xf32, #tpu.memory_space<vmem>>, %arg11: memref<1x128xf32, #tpu.memory_space<vmem>>, %arg12: memref<4x128xf32, #tpu.memory_space<vmem>>) attributes {dimension_semantics = [], scalar_prefetch = 0 : i64, scratch_operands = 0 : i64, tpu.core_type = #tpu.core_type<tc>} {
    %c0 = arith.constant 0 : index
    %c0_0 = arith.constant 0 : index
    %0 = vector.load %arg0[%c0, %c0_0] : memref<200x864xf32, #tpu.memory_space<vmem>>, vector<200x864xf32>
    %c0_1 = arith.constant 0 : index
    %c0_2 = arith.constant 0 : index
    %1 = vector.load %arg1[%c0_1, %c0_2] : memref<864x192xf32, #tpu.memory_space<vmem>>, vector<864x192xf32>
    %cst = arith.constant dense<0.000000e+00> : vector<200x192xf32>
    %2 = tpu.matmul %0, %1, %cst {dimension_numbers = #tpu.dot_dimension_numbers<[1], [0], [0], [1], [0, 0, 1, 1], [], []>} : vector<200x864xf32>, vector<864x192xf32>, vector<200x192xf32> -> vector<200x192xf32>
    %c0_3 = arith.constant 0 : index
    %c0_4 = arith.constant 0 : index
    %3 = vector.load %arg2[%c0_3, %c0_4] : memref<1x192xf32, #tpu.memory_space<vmem>>, vector<1x192xf32>
    %4 = vector.broadcast %3 : vector<1x192xf32> to vector<200x192xf32>
    %5 = arith.mulf %2, %4 : vector<200x192xf32>
    %c0_5 = arith.constant 0 : index
    %c0_6 = arith.constant 0 : index
    %6 = vector.load %arg3[%c0_5, %c0_6] : memref<1x192xf32, #tpu.memory_space<vmem>>, vector<1x192xf32>
    %7 = vector.broadcast %6 : vector<1x192xf32> to vector<200x192xf32>
    %8 = arith.addf %5, %7 : vector<200x192xf32>
    %cst_7 = arith.constant 0.000000e+00 : f32
    %9 = vector.broadcast %cst_7 : f32 to vector<200x192xf32>
    %10 = arith.maximumf %8, %9 : vector<200x192xf32>
    %c0_8 = arith.constant 0 : index
    %c0_9 = arith.constant 0 : index
    %11 = vector.load %arg7[%c0_8, %c0_9] : memref<4x200xf32, #tpu.memory_space<vmem>>, vector<4x200xf32>
    %c0_10 = arith.constant 0 : index
    %c0_11 = arith.constant 0 : index
    %12 = vector.load %arg4[%c0_10, %c0_11] : memref<200x64xf32, #tpu.memory_space<vmem>>, vector<200x64xf32>
    %cst_12 = arith.constant dense<0.000000e+00> : vector<4x64xf32>
    %13 = tpu.matmul %11, %12, %cst_12 {dimension_numbers = #tpu.dot_dimension_numbers<[1], [0], [0], [1], [0, 0, 1, 1], [], []>} : vector<4x200xf32>, vector<200x64xf32>, vector<4x64xf32> -> vector<4x64xf32>
    %c0_13 = arith.constant 0 : index
    %c0_14 = arith.constant 0 : index
    %14 = vector.load %arg5[%c0_13, %c0_14] : memref<200x128xf32, #tpu.memory_space<vmem>>, vector<200x128xf32>
    %cst_15 = arith.constant dense<0.000000e+00> : vector<4x128xf32>
    %15 = tpu.matmul %11, %14, %cst_15 {dimension_numbers = #tpu.dot_dimension_numbers<[1], [0], [0], [1], [0, 0, 1, 1], [], []>} : vector<4x200xf32>, vector<200x128xf32>, vector<4x128xf32> -> vector<4x128xf32>
    %cst_16 = arith.constant dense<0.000000e+00> : vector<4x192xf32>
    %16 = tpu.matmul %11, %10, %cst_16 {dimension_numbers = #tpu.dot_dimension_numbers<[1], [0], [0], [1], [0, 0, 1, 1], [], []>} : vector<4x200xf32>, vector<200x192xf32>, vector<4x192xf32> -> vector<4x192xf32>
    %c0_17 = arith.constant 0 : index
    %c0_18 = arith.constant 0 : index
    %17 = vector.load %arg6[%c0_17, %c0_18] : memref<200x64xf32, #tpu.memory_space<vmem>>, vector<200x64xf32>
    %cst_19 = arith.constant dense<0.000000e+00> : vector<4x64xf32>
    %18 = tpu.matmul %11, %17, %cst_19 {dimension_numbers = #tpu.dot_dimension_numbers<[1], [0], [0], [1], [0, 0, 1, 1], [], []>} : vector<4x200xf32>, vector<200x64xf32>, vector<4x64xf32> -> vector<4x64xf32>
    %c0_20 = arith.constant 0 : index
    %c0_21 = arith.constant 0 : index
    %19 = vector.load %arg8[%c0_20, %c0_21] : memref<448x256xf32, #tpu.memory_space<vmem>>, vector<64x256xf32>
    %cst_22 = arith.constant dense<0.000000e+00> : vector<4x256xf32>
    %20 = tpu.matmul %13, %19, %cst_22 {dimension_numbers = #tpu.dot_dimension_numbers<[1], [0], [0], [1], [0, 0, 1, 1], [], []>} : vector<4x64xf32>, vector<64x256xf32>, vector<4x256xf32> -> vector<4x256xf32>
    %c64 = arith.constant 64 : index
    %c0_23 = arith.constant 0 : index
    %21 = vector.load %arg8[%c64, %c0_23] : memref<448x256xf32, #tpu.memory_space<vmem>>, vector<128x256xf32>
    %cst_24 = arith.constant dense<0.000000e+00> : vector<4x256xf32>
    %22 = tpu.matmul %15, %21, %cst_24 {dimension_numbers = #tpu.dot_dimension_numbers<[1], [0], [0], [1], [0, 0, 1, 1], [], []>} : vector<4x128xf32>, vector<128x256xf32>, vector<4x256xf32> -> vector<4x256xf32>
    %23 = arith.addf %20, %22 : vector<4x256xf32>
    %c192 = arith.constant 192 : index
    %c0_25 = arith.constant 0 : index
    %24 = vector.load %arg8[%c192, %c0_25] : memref<448x256xf32, #tpu.memory_space<vmem>>, vector<192x256xf32>
    %cst_26 = arith.constant dense<0.000000e+00> : vector<4x256xf32>
    %25 = tpu.matmul %16, %24, %cst_26 {dimension_numbers = #tpu.dot_dimension_numbers<[1], [0], [0], [1], [0, 0, 1, 1], [], []>} : vector<4x192xf32>, vector<192x256xf32>, vector<4x256xf32> -> vector<4x256xf32>
    %26 = arith.addf %23, %25 : vector<4x256xf32>
    %c384 = arith.constant 384 : index
    %c0_27 = arith.constant 0 : index
    %27 = vector.load %arg8[%c384, %c0_27] : memref<448x256xf32, #tpu.memory_space<vmem>>, vector<64x256xf32>
    %cst_28 = arith.constant dense<0.000000e+00> : vector<4x256xf32>
    %28 = tpu.matmul %18, %27, %cst_28 {dimension_numbers = #tpu.dot_dimension_numbers<[1], [0], [0], [1], [0, 0, 1, 1], [], []>} : vector<4x64xf32>, vector<64x256xf32>, vector<4x256xf32> -> vector<4x256xf32>
    %29 = arith.addf %26, %28 : vector<4x256xf32>
    %c0_29 = arith.constant 0 : index
    %c0_30 = arith.constant 0 : index
    %30 = vector.load %arg9[%c0_29, %c0_30] : memref<1x256xf32, #tpu.memory_space<vmem>>, vector<1x256xf32>
    %31 = vector.broadcast %30 : vector<1x256xf32> to vector<4x256xf32>
    %32 = arith.addf %29, %31 : vector<4x256xf32>
    %c0_31 = arith.constant 0 : index
    %c0_32 = arith.constant 0 : index
    %33 = vector.load %arg10[%c0_31, %c0_32] : memref<256x128xf32, #tpu.memory_space<vmem>>, vector<256x128xf32>
    %cst_33 = arith.constant dense<0.000000e+00> : vector<4x128xf32>
    %34 = tpu.matmul %32, %33, %cst_33 {dimension_numbers = #tpu.dot_dimension_numbers<[1], [0], [0], [1], [0, 0, 1, 1], [], []>} : vector<4x256xf32>, vector<256x128xf32>, vector<4x128xf32> -> vector<4x128xf32>
    %c0_34 = arith.constant 0 : index
    %c0_35 = arith.constant 0 : index
    %35 = vector.load %arg11[%c0_34, %c0_35] : memref<1x128xf32, #tpu.memory_space<vmem>>, vector<1x128xf32>
    %36 = vector.broadcast %35 : vector<1x128xf32> to vector<4x128xf32>
    %37 = arith.addf %34, %36 : vector<4x128xf32>
    %c0_36 = arith.constant 0 : index
    %c0_37 = arith.constant 0 : index
    %38 = vector.load %arg12[%c0_36, %c0_37] : memref<4x128xf32, #tpu.memory_space<vmem>>, vector<4x128xf32>
    tpu.vector_store %arg12[%c0_36, %c0_37], %37 {strides = array<i32>} : memref<4x128xf32, #tpu.memory_space<vmem>>, vector<4x128xf32>,
    return
  }
}

</mosaic_0001>

<llo_original>
// kernel: mrannet_forward.3
$region0: #{mrannet_forward.3}
  #allocation0 [shape = 'u32[]', space=smem, size = 0x4, offset = 0x4, fixed_abs, tag = 'smem constant byte address 0x4 - core index']
  #allocation1 [shape = 'u32[144,128]{1,0:T(1,128)}', space=vmem, size = 0x12000, scoped, tag = 'internal scratch']
  %s0 = inlined_call_operand.vmem [shape: f32[200,72], index: 0, kind: input, shape index: {}]
  %s1 = inlined_call_operand.vmem [shape: f32[72,256], index: 1, kind: input, shape index: {}]
  %s2 = inlined_call_operand.vmem [shape: f32[1,256], index: 2, kind: input, shape index: {}]
  %s3 = inlined_call_operand.vmem [shape: f32[1,256], index: 3, kind: input, shape index: {}]
  %s4 = inlined_call_operand.vmem [shape: f32[200,256], index: 4, kind: output, shape index: {}]
  %s5 = sld [smem:[#allocation0]]
  $region26: #{mrannet_forward.3} parent=0
    _
  %s7 = ssub.s32 1, %s5
  %s8 = scalar_select 0, %s7, %s5
  // Predicated region
  $region2: #{mrannet_forward.3} parent=0 // pred_check
    _
  $region3: #{mrannet_forward.3} parent=0 // pred_check_branch
    %10 = sbr.rel (0) target = $region5
  $region4: #{mrannet_forward.3} parent=0 // pred_region
    _
  $region5: #{mrannet_forward.3} parent=0 // pred_fallthru
    _
  // Predicated region
  $region6: #{mrannet_forward.3} parent=0 // pred_check
    _
  $region7: #{mrannet_forward.3} parent=0 // pred_check_branch
    %12 = sbr.rel (0) target = $region9
  $region8: #{mrannet_forward.3} parent=0 // pred_region
    _
  $region9: #{mrannet_forward.3} parent=0 // pred_fallthru
    _
  // Predicated region
  $region10: #{mrannet_forward.3} parent=0 // pred_check
    _
  $region11: #{mrannet_forward.3} parent=0 // pred_check_branch
    %14 = sbr.rel (0) target = $region13
  $region12: #{mrannet_forward.3} parent=0 // pred_region
    _
  $region13: #{mrannet_forward.3} parent=0 // pred_fallthru
    _
  // Predicated region
  $region14: #{mrannet_forward.3} parent=0 // pred_check
    _
  $region15: #{mrannet_forward.3} parent=0 // pred_check_branch
    %16 = sbr.rel (0) target = $region17
  $region16: #{mrannet_forward.3} parent=0 // pred_region
    _
  $region17: #{mrannet_forward.3} parent=0 // pred_fallthru
    _
  %v17 = vld [vmem:[%s0] sm:$0xff]
  %v18 = vld [vmem:[%s0 + $0x8] sm:$0xff]
  %v19 = vld [vmem:[%s0 + $0x10] sm:$0xff]
  %v20 = vld [vmem:[%s0 + $0x18] sm:$0xff]
  %v21 = vld [vmem:[%s0 + $0x20] sm:$0xff]
  %v22 = vld [vmem:[%s0 + $0x28] sm:$0xff]
  %v23 = vld [vmem:[%s0 + $0x30] sm:$0xff]
  %v24 = vld [vmem:[%s0 + $0x38] sm:$0xff]
  %v25 = vld [vmem:[%s0 + $0x40] sm:$0xff]
  %v26 = vld [vmem:[%s0 + $0x48] sm:$0xff]
  %v27 = vld [vmem:[%s0 + $0x50] sm:$0xff]
  %v28 = vld [vmem:[%s0 + $0x58] sm:$0xff]
  %v29 = vld [vmem:[%s0 + $0x60] sm:$0xff]
  %v30 = vld [vmem:[%s0 + $0x68] sm:$0xff]
  %v31 = vld [vmem:[%s0 + $0x70] sm:$0xff]
  %v32 = vld [vmem:[%s0 + $0x78] sm:$0xff]
  %v33 = vld [vmem:[%s0 + $0x80] sm:$0xff]
  %v34 = vld [vmem:[%s0 + $0x88] sm:$0xff]
  %v35 = vld [vmem:[%s0 + $0x90] sm:$0xff]
  %v36 = vld [vmem:[%s0 + $0x98] sm:$0xff]
  %v37 = vld [vmem:[%s0 + $0xa0] sm:$0xff]
  %v38 = vld [vmem:[%s0 + $0xa8] sm:$0xff]
  %v39 = vld [vmem:[%s0 + $0xb0] sm:$0xff]
  %v40 = vld [vmem:[%s0 + $0xb8] sm:$0xff]
  %v41 = vld [vmem:[%s0 + $0xc0] sm:$0xff]
  %v42 = vld [vmem:[%s1] sm:$0xff]
  %v43 = vld [vmem:[%s1 + $0x8] sm:$0xff]
  %v44 = vld [vmem:[%s1 + $0x10] sm:$0xff]
  %v45 = vld [vmem:[%s1 + $0x18] sm:$0xff]
  %v46 = vld [vmem:[%s1 + $0x20] sm:$0xff]
  %v47 = vld [vmem:[%s1 + $0x28] sm:$0xff]
  %v48 = vld [vmem:[%s1 + $0x30] sm:$0xff]
  %v49 = vld [vmem:[%s1 + $0x38] sm:$0xff]
  %v50 = vld [vmem:[%s1 + $0x40] sm:$0xff]
  %v51 = vld [vmem:[%s1 + $0x48] sm:$0xff]
  %v52 = vld [vmem:[%s1 + $0x50] sm:$0xff]
  %v53 = vld [vmem:[%s1 + $0x58] sm:$0xff]
  %v54 = vld [vmem:[%s1 + $0x60] sm:$0xff]
  %v55 = vld [vmem:[%s1 + $0x68] sm:$0xff]
  %v56 = vld [vmem:[%s1 + $0x70] sm:$0xff]
  %v57 = vld [vmem:[%s1 + $0x78] sm:$0xff]
  %v58 = vld [vmem:[%s1 + $0x80] sm:$0xff]
  %v59 = vld [vmem:[%s1 + $0x88] sm:$0xff]
  %vm60 = vcmask 588800
  %v62 = vsel %vm60, %v17, 0
  %v65 = vsel %vm60, %v18, 0
  %v68 = vsel %vm60, %v19, 0
  %v71 = vsel %vm60, %v20, 0
  %v74 = vsel %vm60, %v21, 0
  %v77 = vsel %vm60, %v22, 0
  %v80 = vsel %vm60, %v23, 0
  %v83 = vsel %vm60, %v24, 0
  %v86 = vsel %vm60, %v25, 0
  %v89 = vsel %vm60, %v26, 0
  %v92 = vsel %vm60, %v27, 0
  %v95 = vsel %vm60, %v28, 0
  %v98 = vsel %vm60, %v29, 0
  %v101 = vsel %vm60, %v30, 0
  %v104 = vsel %vm60, %v31, 0
  %v107 = vsel %vm60, %v32, 0
  %v110 = vsel %vm60, %v33, 0
  %v113 = vsel %vm60, %v34, 0
  %v116 = vsel %vm60, %v35, 0
  %v119 = vsel %vm60, %v36, 0
  %v122 = vsel %vm60, %v37, 0
  %v125 = vsel %vm60, %v38, 0
  %v128 = vsel %vm60, %v39, 0
  %v131 = vsel %vm60, %v40, 0
  %v134 = vsel %vm60, %v41, 0
  %136 = vmatprep.subr.mxu0 0.0
  %137 = vmatpush1.msra.mxu0 0.0
  %138 = vmatprep.subr.mxu0 0.0
  %139 = vmatpush1.msra.mxu0 0.0
  %140 = vmatprep.subr.mxu0 0.0
  %141 = vmatpush1.msra.mxu0 0.0
  %142 = vmatprep.subr.mxu0 0.0
  %143 = vmatpush1.msra.mxu0 0.0
  %144 = vmatprep.subr.mxu0 0.0
  %145 = vmatpush1.msra.mxu0 0.0
  %146 = vmatprep.subr.mxu0 0.0
  %147 = vmatpush1.msra.mxu0 0.0
  %148 = vmatprep.subr.mxu0 0.0
  %149 = vmatpush1.msra.mxu0 0.0
  %150 = vmatprep.subr.mxu0 %v59
  %151 = vmatpush1.msra.mxu0 %v58
  %152 = vmatprep.subr.mxu0 %v57
  %153 = vmatpush1.msra.mxu0 %v56
  %154 = vmatprep.subr.mxu0 %v55
  %155 = vmatpush1.msra.mxu0 %v54
  %156 = vmatprep.subr.mxu0 %v53
  %157 = vmatpush1.msra.mxu0 %v52
  %158 = vmatprep.subr.mxu0 %v51
  %159 = vmatpush1.msra.mxu0 %v50
  %160 = vmatprep.subr.mxu0 %v49
  %161 = vmatpush1.msra.mxu0 %v48
  %162 = vmatprep.subr.mxu0 %v47
  %163 = vmatpush1.msra.mxu0 %v46
  %164 = vmatprep.subr.mxu0 %v45
  %165 = vmatpush1.msra.mxu0 %v44
  %166 = vmatprep.subr.mxu0 %v43
  %167 = vmatpush1.msra.mxu0 %v42
  %168 = vmatprep.subr.mxu0 0.0
  %169 = vmatpush2.msra.mxu0 0.0
  %170 = vmatprep.subr.mxu0 0.0
  %171 = vmatpush2.msra.mxu0 0.0
  %172 = vmatprep.subr.mxu0 0.0
  %173 = vmatpush2.msra.mxu0 0.0
  %174 = vmatprep.subr.mxu0 0.0
  %175 = vmatpush2.msra.mxu0 0.0
  %176 = vmatprep.subr.mxu0 0.0
  %177 = vmatpush2.msra.mxu0 0.0
  %178 = vmatprep.subr.mxu0 0.0
  %179 = vmatpush2.msra.mxu0 0.0
  %180 = vmatprep.subr.mxu0 0.0
  %181 = vmatpush2.msra.mxu0 0.0
  %182 = vmatprep.subr.mxu0 0.0
  %183 = vmatpush2.msra.mxu0 0.0
  %184 = vmatprep.subr.mxu0 0.0
  %185 = vmatpush2.msra.mxu0 0.0
  %186 = vmatprep.subr.mxu0 0.0
  %187 = vmatpush2.msra.mxu0 0.0
  %188 = vmatprep.subr.mxu0 0.0
  %189 = vmatpush2.msra.mxu0 0.0
  %190 = vmatprep.subr.mxu0 0.0
  %191 = vmatpush2.msra.mxu0 0.0
  %192 = vmatprep.subr.mxu0 0.0
  %193 = vmatpush2.msra.mxu0 0.0
  %194 = vmatprep.subr.mxu0 0.0
  %195 = vmatpush2.msra.mxu0 0.0
  %196 = vmatprep.subr.mxu0 0.0
  %197 = vmatpush2.msra.mxu0 0.0
  %198 = vmatprep.subr.mxu0 0.0
  %199 = vmatpush2.msra.mxu0 0.0
  %200 = vmatprep.mubr.f32.mxu0 0.0
  %201 = vmatmul.mubr.f32.gmra.mxu0 %v62
  %v202 = vpop.f32.mrf.mxu0
  %v203 = vadd.f32 0.0, %v202
  %v204 = vpop.f32.mrf.mxu0
  %v205 = vadd.f32 0.0, %v204
  %206 = vmatprep.mubr.f32.mxu0 0.0
  %207 = vmatmul.mubr.f32.gmra.mxu0 %v65
  %v208 = vpop.f32.mrf.mxu0
  %v209 = vadd.f32 0.0, %v208
  %v210 = vpop.f32.mrf.mxu0
  %v211 = vadd.f32 0.0, %v210
  %212 = vmatprep.mubr.f32.mxu0 0.0
  %213 = vmatmul.mubr.f32.gmra.mxu0 %v68
  %v214 = vpop.f32.mrf.mxu0
  %v215 = vadd.f32 0.0, %v214
  %v216 = vpop.f32.mrf.mxu0
  %v217 = vadd.f32 0.0, %v216
  %218 = vmatprep.mubr.f32.mxu0 0.0
  %219 = vmatmul.mubr.f32.gmra.mxu0 %v71
  %v220 = vpop.f32.mrf.mxu0
  %v221 = vadd.f32 0.0, %v220
  %v222 = vpop.f32.mrf.mxu0
  %v223 = vadd.f32 0.0, %v222
  %224 = vmatprep.mubr.f32.mxu0 0.0
  %225 = vmatmul.mubr.f32.gmra.mxu0 %v74
  %v226 = vpop.f32.mrf.mxu0
  %v227 = vadd.f32 0.0, %v226
  %v228 = vpop.f32.mrf.mxu0
  %v229 = vadd.f32 0.0, %v228
  %230 = vmatprep.mubr.f32.mxu0 0.0
  %231 = vmatmul.mubr.f32.gmra.mxu0 %v77
  %v232 = vpop.f32.mrf.mxu0
  %v233 = vadd.f32 0.0, %v232
  %v234 = vpop.f32.mrf.mxu0
  %v235 = vadd.f32 0.0, %v234
  %236 = vmatprep.mubr.f32.mxu0 0.0
  %237 = vmatmul.mubr.f32.gmra.mxu0 %v80
  %v238 = vpop.f32.mrf.mxu0
  %v239 = vadd.f32 0.0, %v238
  %v240 = vpop.f32.mrf.mxu0
  %v241 = vadd.f32 0.0, %v240
  %242 = vmatprep.mubr.f32.mxu0 0.0
  %243 = vmatmul.mubr.f32.gmra.mxu0 %v83
  %v244 = vpop.f32.mrf.mxu0
  %v245 = vadd.f32 0.0, %v244
  %v246 = vpop.f32.mrf.mxu0
  %v247 = vadd.f32 0.0, %v246
  %248 = vmatprep.mubr.f32.mxu0 0.0
  %249 = vmatmul.mubr.f32.gmra.mxu0 %v86
  %v250 = vpop.f32.mrf.mxu0
  %v251 = vadd.f32 0.0, %v250
  %v252 = vpop.f32.mrf.mxu0
  %v253 = vadd.f32 0.0, %v252
  %254 = vmatprep.mubr.f32.mxu0 0.0
  %255 = vmatmul.mubr.f32.gmra.mxu0 %v89
  %v256 = vpop.f32.mrf.mxu0
  %v257 = vadd.f32 0.0, %v256
  %v258 = vpop.f32.mrf.mxu0
  %v259 = vadd.f32 0.0, %v258
  %260 = vmatprep.mubr.f32.mxu0 0.0
  %261 = vmatmul.mubr.f32.gmra.mxu0 %v92
  %v262 = vpop.f32.mrf.mxu0
  %v263 = vadd.f32 0.0, %v262
  %v264 = vpop.f32.mrf.mxu0
  %v265 = vadd.f32 0.0, %v264
  %266 = vmatprep.mubr.f32.mxu0 0.0
  %267 = vmatmul.mubr.f32.gmra.mxu0 %v95
  %v268 = vpop.f32.mrf.mxu0
  %v269 = vadd.f32 0.0, %v268
  %v270 = vpop.f32.mrf.mxu0
  %v271 = vadd.f32 0.0, %v270
  %272 = vmatprep.mubr.f32.mxu0 0.0
  %273 = vmatmul.mubr.f32.gmra.mxu0 %v98
  %v274 = vpop.f32.mrf.mxu0
  %v275 = vadd.f32 0.0, %v274
  %v276 = vpop.f32.mrf.mxu0
  %v277 = vadd.f32 0.0, %v276
  %278 = vmatprep.mubr.f32.mxu0 0.0
  %279 = vmatmul.mubr.f32.gmra.mxu0 %v101
  %v280 = vpop.f32.mrf.mxu0
  %v281 = vadd.f32 0.0, %v280
  %v282 = vpop.f32.mrf.mxu0
  %v283 = vadd.f32 0.0, %v282
  %284 = vmatprep.mubr.f32.mxu0 0.0
  %285 = vmatmul.mubr.f32.gmra.mxu0 %v104
  %v286 = vpop.f32.mrf.mxu0
  %v287 = vadd.f32 0.0, %v286
  %v288 = vpop.f32.mrf.mxu0
  %v289 = vadd.f32 0.0, %v288
  %290 = vmatprep.mubr.f32.mxu0 0.0
  %291 = vmatmul.mubr.f32.gmra.mxu0 %v107
  %v292 = vpop.f32.mrf.mxu0
  %v293 = vadd.f32 0.0, %v292
  %v294 = vpop.f32.mrf.mxu0
  %v295 = vadd.f32 0.0, %v294
  %296 = vmatprep.mubr.f32.mxu0 0.0
  %297 = vmatmul.mubr.f32.gmra.mxu0 %v110
  %v298 = vpop.f32.mrf.mxu0
  %v299 = vadd.f32 0.0, %v298
  %v300 = vpop.f32.mrf.mxu0
  %v301 = vadd.f32 0.0, %v300
  %302 = vmatprep.mubr.f32.mxu0 0.0
  %303 = vmatmul.mubr.f32.gmra.mxu0 %v113
  %v304 = vpop.f32.mrf.mxu0
  %v305 = vadd.f32 0.0, %v304
  %v306 = vpop.f32.mrf.mxu0
  %v307 = vadd.f32 0.0, %v306
  %308 = vmatprep.mubr.f32.mxu0 0.0
  %309 = vmatmul.mubr.f32.gmra.mxu0 %v116
  %v310 = vpop.f32.mrf.mxu0
  %v311 = vadd.f32 0.0, %v310
  %v312 = vpop.f32.mrf.mxu0
  %v313 = vadd.f32 0.0, %v312
  %314 = vmatprep.mubr.f32.mxu0 0.0
  %315 = vmatmul.mubr.f32.gmra.mxu0 %v119
  %v316 = vpop.f32.mrf.mxu0
  %v317 = vadd.f32 0.0, %v316
  %v318 = vpop.f32.mrf.mxu0
  %v319 = vadd.f32 0.0, %v318
  %320 = vmatprep.mubr.f32.mxu0 0.0
  %321 = vmatmul.mubr.f32.gmra.mxu0 %v122
  %v322 = vpop.f32.mrf.mxu0
  %v323 = vadd.f32 0.0, %v322
  %v324 = vpop.f32.mrf.mxu0
  %v325 = vadd.f32 0.0, %v324
  %326 = vmatprep.mubr.f32.mxu0 0.0
  %327 = vmatmul.mubr.f32.gmra.mxu0 %v125
  %v328 = vpop.f32.mrf.mxu0
  %v329 = vadd.f32 0.0, %v328
  %v330 = vpop.f32.mrf.mxu0
  %v331 = vadd.f32 0.0, %v330
  %332 = vmatprep.mubr.f32.mxu0 0.0
  %333 = vmatmul.mubr.f32.gmra.mxu0 %v128
  %v334 = vpop.f32.mrf.mxu0
  %v335 = vadd.f32 0.0, %v334
  %v336 = vpop.f32.mrf.mxu0
  %v337 = vadd.f32 0.0, %v336
  %338 = vmatprep.mubr.f32.mxu0 0.0
  %339 = vmatmul.mubr.f32.gmra.mxu0 %v131
  %v340 = vpop.f32.mrf.mxu0
  %v341 = vadd.f32 0.0, %v340
  %v342 = vpop.f32.mrf.mxu0
  %v343 = vadd.f32 0.0, %v342
  %344 = vmatprep.mubr.f32.mxu0 0.0
  %345 = vmatmul.mubr.f32.gmra.mxu0 %v134
  %v346 = vpop.f32.mrf.mxu0
  %v347 = vadd.f32 0.0, %v346
  %v348 = vpop.f32.mrf.mxu0
  %v349 = vadd.f32 0.0, %v348
  %350 = vdwg.mxu0
  %v351 = vld [vmem:[%s2] sm:$0x3]
  %v353 = vlaneseq
  %v354 = vshrl.u32 %v353, 7
  %v355 = vsub.s32 0, %v354
  %v356 = vrot.slane %v351, %v355
  %v357 = vlaneseq
  %v358 = vshrl.u32 %v357, 7
  %v359 = vsub.s32 1, %v358
  %v360 = vrot.slane %v351, %v359
  %v363 = vmul.f32 %v203, %v356
  %v364 = vmul.f32 %v205, %v360
  %v365 = vmul.f32 %v209, %v356
  %v366 = vmul.f32 %v211, %v360
  %v367 = vmul.f32 %v215, %v356
  %v368 = vmul.f32 %v217, %v360
  %v369 = vmul.f32 %v221, %v356
  %v370 = vmul.f32 %v223, %v360
  %v371 = vmul.f32 %v227, %v356
  %v372 = vmul.f32 %v229, %v360
  %v373 = vmul.f32 %v233, %v356
  %v374 = vmul.f32 %v235, %v360
  %v375 = vmul.f32 %v239, %v356
  %v376 = vmul.f32 %v241, %v360
  %v377 = vmul.f32 %v245, %v356
  %v378 = vmul.f32 %v247, %v360
  %v379 = vmul.f32 %v251, %v356
  %v380 = vmul.f32 %v253, %v360
  %v381 = vmul.f32 %v257, %v356
  %v382 = vmul.f32 %v259, %v360
  %v383 = vmul.f32 %v263, %v356
  %v384 = vmul.f32 %v265, %v360
  %v385 = vmul.f32 %v269, %v356
  %v386 = vmul.f32 %v271, %v360
  %v387 = vmul.f32 %v275, %v356
  %v388 = vmul.f32 %v277, %v360
  %v389 = vmul.f32 %v281, %v356
  %v390 = vmul.f32 %v283, %v360
  %v391 = vmul.f32 %v287, %v356
  %v392 = vmul.f32 %v289, %v360
  %v393 = vmul.f32 %v293, %v356
  %v394 = vmul.f32 %v295, %v360
  %v395 = vmul.f32 %v299, %v356
  %v396 = vmul.f32 %v301, %v360
  %v397 = vmul.f32 %v305, %v356
  %v398 = vmul.f32 %v307, %v360
  %v399 = vmul.f32 %v311, %v356
  %v400 = vmul.f32 %v313, %v360
  %v401 = vmul.f32 %v317, %v356
  %v402 = vmul.f32 %v319, %v360
  %v403 = vmul.f32 %v323, %v356
  %v404 = vmul.f32 %v325, %v360
  %v405 = vmul.f32 %v329, %v356
  %v406 = vmul.f32 %v331, %v360
  %v407 = vmul.f32 %v335, %v356
  %v408 = vmul.f32 %v337, %v360
  %v409 = vmul.f32 %v341, %v356
  %v410 = vmul.f32 %v343, %v360
  %v411 = vmul.f32 %v347, %v356
  %v412 = vmul.f32 %v349, %v360
  %v413 = vld [vmem:[%s3] sm:$0x3]
  %v415 = vlaneseq
  %v416 = vshrl.u32 %v415, 7
  %v417 = vsub.s32 0, %v416
  %v418 = vrot.slane %v413, %v417
  %v419 = vlaneseq
  %v420 = vshrl.u32 %v419, 7
  %v421 = vsub.s32 1, %v420
  %v422 = vrot.slane %v413, %v421
  %v425 = vadd.f32 %v363, %v418
  %v426 = vadd.f32 %v364, %v422
  %v427 = vadd.f32 %v365, %v418
  %v428 = vadd.f32 %v366, %v422
  %v429 = vadd.f32 %v367, %v418
  %v430 = vadd.f32 %v368, %v422
  %v431 = vadd.f32 %v369, %v418
  %v432 = vadd.f32 %v370, %v422
  %v433 = vadd.f32 %v371, %v418
  %v434 = vadd.f32 %v372, %v422
  %v435 = vadd.f32 %v373, %v418
  %v436 = vadd.f32 %v374, %v422
  %v437 = vadd.f32 %v375, %v418
  %v438 = vadd.f32 %v376, %v422
  %v439 = vadd.f32 %v377, %v418
  %v440 = vadd.f32 %v378, %v422
  %v441 = vadd.f32 %v379, %v418
  %v442 = vadd.f32 %v380, %v422
  %v443 = vadd.f32 %v381, %v418
  %v444 = vadd.f32 %v382, %v422
  %v445 = vadd.f32 %v383, %v418
  %v446 = vadd.f32 %v384, %v422
  %v447 = vadd.f32 %v385, %v418
  %v448 = vadd.f32 %v386, %v422
  %v449 = vadd.f32 %v387, %v418
  %v450 = vadd.f32 %v388, %v422
  %v451 = vadd.f32 %v389, %v418
  %v452 = vadd.f32 %v390, %v422
  %v453 = vadd.f32 %v391, %v418
  %v454 = vadd.f32 %v392, %v422
  %v455 = vadd.f32 %v393, %v418
  %v456 = vadd.f32 %v394, %v422
  %v457 = vadd.f32 %v395, %v418
  %v458 = vadd.f32 %v396, %v422
  %v459 = vadd.f32 %v397, %v418
  %v460 = vadd.f32 %v398, %v422
  %v461 = vadd.f32 %v399, %v418
  %v462 = vadd.f32 %v400, %v422
  %v463 = vadd.f32 %v401, %v418
  %v464 = vadd.f32 %v402, %v422
  %v465 = vadd.f32 %v403, %v418
  %v466 = vadd.f32 %v404, %v422
  %v467 = vadd.f32 %v405, %v418
  %v468 = vadd.f32 %v406, %v422
  %v469 = vadd.f32 %v407, %v418
  %v470 = vadd.f32 %v408, %v422
  %v471 = vadd.f32 %v409, %v418
  %v472 = vadd.f32 %v410, %v422
  %v473 = vadd.f32 %v411, %v418
  %v474 = vadd.f32 %v412, %v422
  %v475 = vmax.f32 %v425, 0.0
  %v476 = vmax.f32 %v426, 0.0
  %v477 = vmax.f32 %v427, 0.0
  %v478 = vmax.f32 %v428, 0.0
  %v479 = vmax.f32 %v429, 0.0
  %v480 = vmax.f32 %v430, 0.0
  %v481 = vmax.f32 %v431, 0.0
  %v482 = vmax.f32 %v432, 0.0
  %v483 = vmax.f32 %v433, 0.0
  %v484 = vmax.f32 %v434, 0.0
  %v485 = vmax.f32 %v435, 0.0
  %v486 = vmax.f32 %v436, 0.0
  %v487 = vmax.f32 %v437, 0.0
  %v488 = vmax.f32 %v438, 0.0
  %v489 = vmax.f32 %v439, 0.0
  %v490 = vmax.f32 %v440, 0.0
  %v491 = vmax.f32 %v441, 0.0
  %v492 = vmax.f32 %v442, 0.0
  %v493 = vmax.f32 %v443, 0.0
  %v494 = vmax.f32 %v444, 0.0
  %v495 = vmax.f32 %v445, 0.0
  %v496 = vmax.f32 %v446, 0.0
  %v497 = vmax.f32 %v447, 0.0
  %v498 = vmax.f32 %v448, 0.0
  %v499 = vmax.f32 %v449, 0.0
  %v500 = vmax.f32 %v450, 0.0
  %v501 = vmax.f32 %v451, 0.0
  %v502 = vmax.f32 %v452, 0.0
  %v503 = vmax.f32 %v453, 0.0
  %v504 = vmax.f32 %v454, 0.0
  %v505 = vmax.f32 %v455, 0.0
  %v506 = vmax.f32 %v456, 0.0
  %v507 = vmax.f32 %v457, 0.0
  %v508 = vmax.f32 %v458, 0.0
  %v509 = vmax.f32 %v459, 0.0
  %v510 = vmax.f32 %v460, 0.0
  %v511 = vmax.f32 %v461, 0.0
  %v512 = vmax.f32 %v462, 0.0
  %v513 = vmax.f32 %v463, 0.0
  %v514 = vmax.f32 %v464, 0.0
  %v515 = vmax.f32 %v465, 0.0
  %v516 = vmax.f32 %v466, 0.0
  %v517 = vmax.f32 %v467, 0.0
  %v518 = vmax.f32 %v468, 0.0
  %v519 = vmax.f32 %v469, 0.0
  %v520 = vmax.f32 %v470, 0.0
  %v521 = vmax.f32 %v471, 0.0
  %v522 = vmax.f32 %v472, 0.0
  %v523 = vmax.f32 %v473, 0.0
  %v524 = vmax.f32 %v474, 0.0
  %525 = vst [vmem:[%s4] sm:$0xff] %v475
  %526 = vst [vmem:[%s4 + $0x8] sm:$0xff] %v476
  %527 = vst [vmem:[%s4 + $0x10] sm:$0xff] %v477
  %528 = vst [vmem:[%s4 + $0x18] sm:$0xff] %v478
  %529 = vst [vmem:[%s4 + $0x20] sm:$0xff] %v479
  %530 = vst [vmem:[%s4 + $0x28] sm:$0xff] %v480
  %531 = vst [vmem:[%s4 + $0x30] sm:$0xff] %v481
  %532 = vst [vmem:[%s4 + $0x38] sm:$0xff] %v482
  %533 = vst [vmem:[%s4 + $0x40] sm:$0xff] %v483
  %534 = vst [vmem:[%s4 + $0x48] sm:$0xff] %v484
  %535 = vst [vmem:[%s4 + $0x50] sm:$0xff] %v485
  %536 = vst [vmem:[%s4 + $0x58] sm:$0xff] %v486
  %537 = vst [vmem:[%s4 + $0x60] sm:$0xff] %v487
  %538 = vst [vmem:[%s4 + $0x68] sm:$0xff] %v488
  %539 = vst [vmem:[%s4 + $0x70] sm:$0xff] %v489
  %540 = vst [vmem:[%s4 + $0x78] sm:$0xff] %v490
  %541 = vst [vmem:[%s4 + $0x80] sm:$0xff] %v491
  %542 = vst [vmem:[%s4 + $0x88] sm:$0xff] %v492
  %543 = vst [vmem:[%s4 + $0x90] sm:$0xff] %v493
  %544 = vst [vmem:[%s4 + $0x98] sm:$0xff] %v494
  %545 = vst [vmem:[%s4 + $0xa0] sm:$0xff] %v495
  %546 = vst [vmem:[%s4 + $0xa8] sm:$0xff] %v496
  %547 = vst [vmem:[%s4 + $0xb0] sm:$0xff] %v497
  %548 = vst [vmem:[%s4 + $0xb8] sm:$0xff] %v498
  %549 = vst [vmem:[%s4 + $0xc0] sm:$0xff] %v499
  %550 = vst [vmem:[%s4 + $0xc8] sm:$0xff] %v500
  %551 = vst [vmem:[%s4 + $0xd0] sm:$0xff] %v501
  %552 = vst [vmem:[%s4 + $0xd8] sm:$0xff] %v502
  %553 = vst [vmem:[%s4 + $0xe0] sm:$0xff] %v503
  %554 = vst [vmem:[%s4 + $0xe8] sm:$0xff] %v504
  %555 = vst [vmem:[%s4 + $0xf0] sm:$0xff] %v505
  %556 = vst [vmem:[%s4 + $0xf8] sm:$0xff] %v506
  %557 = vst [vmem:[%s4 + $0x100] sm:$0xff] %v507
  %558 = vst [vmem:[%s4 + $0x108] sm:$0xff] %v508
  %559 = vst [vmem:[%s4 + $0x110] sm:$0xff] %v509
  %560 = vst [vmem:[%s4 + $0x118] sm:$0xff] %v510
  %561 = vst [vmem:[%s4 + $0x120] sm:$0xff] %v511
  %562 = vst [vmem:[%s4 + $0x128] sm:$0xff] %v512
  %563 = vst [vmem:[%s4 + $0x130] sm:$0xff] %v513
  %564 = vst [vmem:[%s4 + $0x138] sm:$0xff] %v514
  %565 = vst [vmem:[%s4 + $0x140] sm:$0xff] %v515
  %566 = vst [vmem:[%s4 + $0x148] sm:$0xff] %v516
  %567 = vst [vmem:[%s4 + $0x150] sm:$0xff] %v517
  %568 = vst [vmem:[%s4 + $0x158] sm:$0xff] %v518
  %569 = vst [vmem:[%s4 + $0x160] sm:$0xff] %v519
  %570 = vst [vmem:[%s4 + $0x168] sm:$0xff] %v520
  %571 = vst [vmem:[%s4 + $0x170] sm:$0xff] %v521
  %572 = vst [vmem:[%s4 + $0x178] sm:$0xff] %v522
  %573 = vst [vmem:[%s4 + $0x180] sm:$0xff] %v523
  %574 = vst [vmem:[%s4 + $0x188] sm:$0xff] %v524
  // Predicated region
  $region18: #{mrannet_forward.3} parent=0 // pred_check
    _
  $region19: #{mrannet_forward.3} parent=0 // pred_check_branch
    %576 = sbr.rel (0) target = $region21
  $region20: #{mrannet_forward.3} parent=0 // pred_region
    _
  $region21: #{mrannet_forward.3} parent=0 // pred_fallthru
    _
  // Predicated region
  $region22: #{mrannet_forward.3} parent=0 // pred_check
    _
  $region23: #{mrannet_forward.3} parent=0 // pred_check_branch
    %578 = sbr.rel (0) target = $region25
  $region24: #{mrannet_forward.3} parent=0 // pred_region
    _
  $region25: #{mrannet_forward.3} parent=0 // pred_fallthru
    _

// kernel: mrannet_forward.4
$region0: #{mrannet_forward.4}
  #allocation0 [shape = 'u32[]', space=smem, size = 0x4, offset = 0x4, fixed_abs, tag = 'smem constant byte address 0x4 - core index']
  #allocation1 [shape = 'u32[144,128]{1,0:T(1,128)}', space=vmem, size = 0x12000, scoped, tag = 'internal scratch']
  %s0 = inlined_call_operand.vmem [shape: f32[200,1008], index: 0, kind: input, shape index: {}]
  %s1 = inlined_call_operand.vmem [shape: f32[1008,256], index: 1, kind: input, shape index: {}]
  %s2 = inlined_call_operand.vmem [shape: f32[1,256], index: 2, kind: input, shape index: {}]
  %s3 = inlined_call_operand.vmem [shape: f32[1,256], index: 3, kind: input, shape index: {}]
  %s4 = inlined_call_operand.vmem [shape: f32[200,256], index: 4, kind: output, shape index: {}]
  %s5 = sld [smem:[#allocation0]]
  $region26: #{mrannet_forward.4} parent=0
    _
  %s7 = ssub.s32 1, %s5
  %s8 = scalar_select 0, %s7, %s5
  // Predicated region
  $region2: #{mrannet_forward.4} parent=0 // pred_check
    _
  $region3: #{mrannet_forward.4} parent=0 // pred_check_branch
    %10 = sbr.rel (0) target = $region5
  $region4: #{mrannet_forward.4} parent=0 // pred_region
    _
  $region5: #{mrannet_forward.4} parent=0 // pred_fallthru
    _
  // Predicated region
  $region6: #{mrannet_forward.4} parent=0 // pred_check
    _
  $region7: #{mrannet_forward.4} parent=0 // pred_check_branch
    %12 = sbr.rel (0) target = $region9
  $region8: #{mrannet_forward.4} parent=0 // pred_region
    _
  $region9: #{mrannet_forward.4} parent=0 // pred_fallthru
    _
  // Predicated region
  $region10: #{mrannet_forward.4} parent=0 // pred_check
    _
  $region11: #{mrannet_forward.4} parent=0 // pred_check_branch
    %14 = sbr.rel (0) target = $region13
  $region12: #{mrannet_forward.4} parent=0 // pred_region
    _
  $region13: #{mrannet_forward.4} parent=0 // pred_fallthru
    _
  // Predicated region
  $region14: #{mrannet_forward.4} parent=0 // pred_check
    _
  $region15: #{mrannet_forward.4} parent=0 // pred_check_branch
    %16 = sbr.rel (0) target = $region17
  $region16: #{mrannet_forward.4} parent=0 // pred_region
    _
  $region17: #{mrannet_forward.4} parent=0 // pred_fallthru
    _
  %v17 = vld [vmem:[%s0] sm:$0xff]
  %v18 = vld [vmem:[%s0 + $0x8] sm:$0xff]
  %v19 = vld [vmem:[%s0 + $0x10] sm:$0xff]
  %v20 = vld [vmem:[%s0 + $0x18] sm:$0xff]
  %v21 = vld [vmem:[%s0 + $0x20] sm:$0xff]
  %v22 = vld [vmem:[%s0 + $0x28] sm:$0xff]
  %v23 = vld [vmem:[%s0 + $0x30] sm:$0xff]
  %v24 = vld [vmem:[%s0 + $0x38] sm:$0xff]
  %v25 = vld [vmem:[%s0 + $0x40] sm:$0xff]
  %v26 = vld [vmem:[%s0 + $0x48] sm:$0xff]
  %v27 = vld [vmem:[%s0 + $0x50] sm:$0xff]
  %v28 = vld [vmem:[%s0 + $0x58] sm:$0xff]
  %v29 = vld [vmem:[%s0 + $0x60] sm:$0xff]
  %v30 = vld [vmem:[%s0 + $0x68] sm:$0xff]
  %v31 = vld [vmem:[%s0 + $0x70] sm:$0xff]
  %v32 = vld [vmem:[%s0 + $0x78] sm:$0xff]
  %v33 = vld [vmem:[%s0 + $0x80] sm:$0xff]
  %v34 = vld [vmem:[%s0 + $0x88] sm:$0xff]
  %v35 = vld [vmem:[%s0 + $0x90] sm:$0xff]
  %v36 = vld [vmem:[%s0 + $0x98] sm:$0xff]
  %v37 = vld [vmem:[%s0 + $0xa0] sm:$0xff]
  %v38 = vld [vmem:[%s0 + $0xa8] sm:$0xff]
  %v39 = vld [vmem:[%s0 + $0xb0] sm:$0xff]
  %v40 = vld [vmem:[%s0 + $0xb8] sm:$0xff]
  %v41 = vld [vmem:[%s0 + $0xc0] sm:$0xff]
  %v42 = vld [vmem:[%s0 + $0xc8] sm:$0xff]
  %v43 = vld [vmem:[%s0 + $0xd0] sm:$0xff]
  %v44 = vld [vmem:[%s0 + $0xd8] sm:$0xff]
  %v45 = vld [vmem:[%s0 + $0xe0] sm:$0xff]
  %v46 = vld [vmem:[%s0 + $0xe8] sm:$0xff]
  %v47 = vld [vmem:[%s0 + $0xf0] sm:$0xff]
  %v48 = vld [vmem:[%s0 + $0xf8] sm:$0xff]
  %v49 = vld [vmem:[%s0 + $0x100] sm:$0xff]
  %v50 = vld [vmem:[%s0 + $0x108] sm:$0xff]
  %v51 = vld [vmem:[%s0 + $0x110] sm:$0xff]
  %v52 = vld [vmem:[%s0 + $0x118] sm:$0xff]
  %v53 = vld [vmem:[%s0 + $0x120] sm:$0xff]
  %v54 = vld [vmem:[%s0 + $0x128] sm:$0xff]
  %v55 = vld [vmem:[%s0 + $0x130] sm:$0xff]
  %v56 = vld [vmem:[%s0 + $0x138] sm:$0xff]
  %v57 = vld [vmem:[%s0 + $0x140] sm:$0xff]
  %v58 = vld [vmem:[%s0 + $0x148] sm:$0xff]
  %v59 = vld [vmem:[%s0 + $0x150] sm:$0xff]
  %v60 = vld [vmem:[%s0 + $0x158] sm:$0xff]
  %v61 = vld [vmem:[%s0 + $0x160] sm:$0xff]
  %v62 = vld [vmem:[%s0 + $0x168] sm:$0xff]
  %v63 = vld [vmem:[%s0 + $0x170] sm:$0xff]
  %v64 = vld [vmem:[%s0 + $0x178] sm:$0xff]
  %v65 = vld [vmem:[%s0 + $0x180] sm:$0xff]
  %v66 = vld [vmem:[%s0 + $0x188] sm:$0xff]
  %v67 = vld [vmem:[%s0 + $0x190] sm:$0xff]
  %v68 = vld [vmem:[%s0 + $0x198] sm:$0xff]
  %v69 = vld [vmem:[%s0 + $0x1a0] sm:$0xff]
  %v70 = vld [vmem:[%s0 + $0x1a8] sm:$0xff]
  %v71 = vld [vmem:[%s0 + $0x1b0] sm:$0xff]
  %v72 = vld [vmem:[%s0 + $0x1b8] sm:$0xff]
  %v73 = vld [vmem:[%s0 + $0x1c0] sm:$0xff]
  %v74 = vld [vmem:[%s0 + $0x1c8] sm:$0xff]
  %v75 = vld [vmem:[%s0 + $0x1d0] sm:$0xff]
  %v76 = vld [vmem:[%s0 + $0x1d8] sm:$0xff]
  %v77 = vld [vmem:[%s0 + $0x1e0] sm:$0xff]
  %v78 = vld [vmem:[%s0 + $0x1e8] sm:$0xff]
  %v79 = vld [vmem:[%s0 + $0x1f0] sm:$0xff]
  %v80 = vld [vmem:[%s0 + $0x1f8] sm:$0xff]
  %v81 = vld [vmem:[%s0 + $0x200] sm:$0xff]
  %v82 = vld [vmem:[%s0 + $0x208] sm:$0xff]
  %v83 = vld [vmem:[%s0 + $0x210] sm:$0xff]
  %v84 = vld [vmem:[%s0 + $0x218] sm:$0xff]
  %v85 = vld [vmem:[%s0 + $0x220] sm:$0xff]
  %v86 = vld [vmem:[%s0 + $0x228] sm:$0xff]
  %v87 = vld [vmem:[%s0 + $0x230] sm:$0xff]
  %v88 = vld [vmem:[%s0 + $0x238] sm:$0xff]
  %v89 = vld [vmem:[%s0 + $0x240] sm:$0xff]
  %v90 = vld [vmem:[%s0 + $0x248] sm:$0xff]
  %v91 = vld [vmem:[%s0 + $0x250] sm:$0xff]
  %v92 = vld [vmem:[%s0 + $0x258] sm:$0xff]
  %v93 = vld [vmem:[%s0 + $0x260] sm:$0xff]
  %v94 = vld [vmem:[%s0 + $0x268] sm:$0xff]
  %v95 = vld [vmem:[%s0 + $0x270] sm:$0xff]
  %v96 = vld [vmem:[%s0 + $0x278] sm:$0xff]
  %v97 = vld [vmem:[%s0 + $0x280] sm:$0xff]
  %v98 = vld [vmem:[%s0 + $0x288] sm:$0xff]
  %v99 = vld [vmem:[%s0 + $0x290] sm:$0xff]
  %v100 = vld [vmem:[%s0 + $0x298] sm:$0xff]
  %v101 = vld [vmem:[%s0 + $0x2a0] sm:$0xff]
  %v102 = vld [vmem:[%s0 + $0x2a8] sm:$0xff]
  %v103 = vld [vmem:[%s0 + $0x2b0] sm:$0xff]
  %v104 = vld [vmem:[%s0 + $0x2b8] sm:$0xff]
  %v105 = vld [vmem:[%s0 + $0x2c0] sm:$0xff]
  %v106 = vld [vmem:[%s0 + $0x2c8] sm:$0xff]
  %v107 = vld [vmem:[%s0 + $0x2d0] sm:$0xff]
  %v108 = vld [vmem:[%s0 + $0x2d8] sm:$0xff]
  %v109 = vld [vmem:[%s0 + $0x2e0] sm:$0xff]
  %v110 = vld [vmem:[%s0 + $0x2e8] sm:$0xff]
  %v111 = vld [vmem:[%s0 + $0x2f0] sm:$0xff]
  %v112 = vld [vmem:[%s0 + $0x2f8] sm:$0xff]
  %v113 = vld [vmem:[%s0 + $0x300] sm:$0xff]
  %v114 = vld [vmem:[%s0 + $0x308] sm:$0xff]
  %v115 = vld [vmem:[%s0 + $0x310] sm:$0xff]
  %v116 = vld [vmem:[%s0 + $0x318] sm:$0xff]
  %v117 = vld [vmem:[%s0 + $0x320] sm:$0xff]
  %v118 = vld [vmem:[%s0 + $0x328] sm:$0xff]
  %v119 = vld [vmem:[%s0 + $0x330] sm:$0xff]
  %v120 = vld [vmem:[%s0 + $0x338] sm:$0xff]
  %v121 = vld [vmem:[%s0 + $0x340] sm:$0xff]
  %v122 = vld [vmem:[%s0 + $0x348] sm:$0xff]
  %v123 = vld [vmem:[%s0 + $0x350] sm:$0xff]
  %v124 = vld [vmem:[%s0 + $0x358] sm:$0xff]
  %v125 = vld [vmem:[%s0 + $0x360] sm:$0xff]
  %v126 = vld [vmem:[%s0 + $0x368] sm:$0xff]
  %v127 = vld [vmem:[%s0 + $0x370] sm:$0xff]
  %v128 = vld [vmem:[%s0 + $0x378] sm:$0xff]
  %v129 = vld [vmem:[%s0 + $0x380] sm:$0xff]
  %v130 = vld [vmem:[%s0 + $0x388] sm:$0xff]
  %v131 = vld [vmem:[%s0 + $0x390] sm:$0xff]
  %v132 = vld [vmem:[%s0 + $0x398] sm:$0xff]
  %v133 = vld [vmem:[%s0 + $0x3a0] sm:$0xff]
  %v134 = vld [vmem:[%s0 + $0x3a8] sm:$0xff]
  %v135 = vld [vmem:[%s0 + $0x3b0] sm:$0xff]
  %v136 = vld [vmem:[%s0 + $0x3b8] sm:$0xff]
  %v137 = vld [vmem:[%s0 + $0x3c0] sm:$0xff]
  %v138 = vld [vmem:[%s0 + $0x3c8] sm:$0xff]
  %v139 = vld [vmem:[%s0 + $0x3d0] sm:$0xff]
  %v140 = vld [vmem:[%s0 + $0x3d8] sm:$0xff]
  %v141 = vld [vmem:[%s0 + $0x3e0] sm:$0xff]
  %v142 = vld [vmem:[%s0 + $0x3e8] sm:$0xff]
  %v143 = vld [vmem:[%s0 + $0x3f0] sm:$0xff]
  %v144 = vld [vmem:[%s0 + $0x3f8] sm:$0xff]
  %v145 = vld [vmem:[%s0 + $0x400] sm:$0xff]
  %v146 = vld [vmem:[%s0 + $0x408] sm:$0xff]
  %v147 = vld [vmem:[%s0 + $0x410] sm:$0xff]
  %v148 = vld [vmem:[%s0 + $0x418] sm:$0xff]
  %v149 = vld [vmem:[%s0 + $0x420] sm:$0xff]
  %v150 = vld [vmem:[%s0 + $0x428] sm:$0xff]
  %v151 = vld [vmem:[%s0 + $0x430] sm:$0xff]
  %v152 = vld [vmem:[%s0 + $0x438] sm:$0xff]
  %v153 = vld [vmem:[%s0 + $0x440] sm:$0xff]
  %v154 = vld [vmem:[%s0 + $0x448] sm:$0xff]
  %v155 = vld [vmem:[%s0 + $0x450] sm:$0xff]
  %v156 = vld [vmem:[%s0 + $0x458] sm:$0xff]
  %v157 = vld [vmem:[%s0 + $0x460] sm:$0xff]
  %v158 = vld [vmem:[%s0 + $0x468] sm:$0xff]
  %v159 = vld [vmem:[%s0 + $0x470] sm:$0xff]
  %v160 = vld [vmem:[%s0 + $0x478] sm:$0xff]
  %v161 = vld [vmem:[%s0 + $0x480] sm:$0xff]
  %v162 = vld [vmem:[%s0 + $0x488] sm:$0xff]
  %v163 = vld [vmem:[%s0 + $0x490] sm:$0xff]
  %v164 = vld [vmem:[%s0 + $0x498] sm:$0xff]
  %v165 = vld [vmem:[%s0 + $0x4a0] sm:$0xff]
  %v166 = vld [vmem:[%s0 + $0x4a8] sm:$0xff]
  %v167 = vld [vmem:[%s0 + $0x4b0] sm:$0xff]
  %v168 = vld [vmem:[%s0 + $0x4b8] sm:$0xff]
  %v169 = vld [vmem:[%s0 + $0x4c0] sm:$0xff]
  %v170 = vld [vmem:[%s0 + $0x4c8] sm:$0xff]
  %v171 = vld [vmem:[%s0 + $0x4d0] sm:$0xff]
  %v172 = vld [vmem:[%s0 + $0x4d8] sm:$0xff]
  %v173 = vld [vmem:[%s0 + $0x4e0] sm:$0xff]
  %v174 = vld [vmem:[%s0 + $0x4e8] sm:$0xff]
  %v175 = vld [vmem:[%s0 + $0x4f0] sm:$0xff]
  %v176 = vld [vmem:[%s0 + $0x4f8] sm:$0xff]
  %v177 = vld [vmem:[%s0 + $0x500] sm:$0xff]
  %v178 = vld [vmem:[%s0 + $0x508] sm:$0xff]
  %v179 = vld [vmem:[%s0 + $0x510] sm:$0xff]
  %v180 = vld [vmem:[%s0 + $0x518] sm:$0xff]
  %v181 = vld [vmem:[%s0 + $0x520] sm:$0xff]
  %v182 = vld [vmem:[%s0 + $0x528] sm:$0xff]
  %v183 = vld [vmem:[%s0 + $0x530] sm:$0xff]
  %v184 = vld [vmem:[%s0 + $0x538] sm:$0xff]
  %v185 = vld [vmem:[%s0 + $0x540] sm:$0xff]
  %v186 = vld [vmem:[%s0 + $0x548] sm:$0xff]
  %v187 = vld [vmem:[%s0 + $0x550] sm:$0xff]
  %v188 = vld [vmem:[%s0 + $0x558] sm:$0xff]
  %v189 = vld [vmem:[%s0 + $0x560] sm:$0xff]
  %v190 = vld [vmem:[%s0 + $0x568] sm:$0xff]
  %v191 = vld [vmem:[%s0 + $0x570] sm:$0xff]
  %v192 = vld [vmem:[%s0 + $0x578] sm:$0xff]
  %v193 = vld [vmem:[%s0 + $0x580] sm:$0xff]
  %v194 = vld [vmem:[%s0 + $0x588] sm:$0xff]
  %v195 = vld [vmem:[%s0 + $0x590] sm:$0xff]
  %v196 = vld [vmem:[%s0 + $0x598] sm:$0xff]
  %v197 = vld [vmem:[%s0 + $0x5a0] sm:$0xff]
  %v198 = vld [vmem:[%s0 + $0x5a8] sm:$0xff]
  %v199 = vld [vmem:[%s0 + $0x5b0] sm:$0xff]
  %v200 = vld [vmem:[%s0 + $0x5b8] sm:$0xff]
  %v201 = vld [vmem:[%s0 + $0x5c0] sm:$0xff]
  %v202 = vld [vmem:[%s0 + $0x5c8] sm:$0xff]
  %v203 = vld [vmem:[%s0 + $0x5d0] sm:$0xff]
  %v204 = vld [vmem:[%s0 + $0x5d8] sm:$0xff]
  %v205 = vld [vmem:[%s0 + $0x5e0] sm:$0xff]
  %v206 = vld [vmem:[%s0 + $0x5e8] sm:$0xff]
  %v207 = vld [vmem:[%s0 + $0x5f0] sm:$0xff]
  %v208 = vld [vmem:[%s0 + $0x5f8] sm:$0xff]
  %v209 = vld [vmem:[%s0 + $0x600] sm:$0xff]
  %v210 = vld [vmem:[%s0 + $0x608] sm:$0xff]
  %v211 = vld [vmem:[%s0 + $0x610] sm:$0xff]
  %v212 = vld [vmem:[%s0 + $0x618] sm:$0xff]
  %v213 = vld [vmem:[%s0 + $0x620] sm:$0xff]
  %v214 = vld [vmem:[%s0 + $0x628] sm:$0xff]
  %v215 = vld [vmem:[%s0 + $0x630] sm:$0xff]
  %v216 = vld [vmem:[%s0 + $0x638] sm:$0xff]
  %v217 = vld [vmem:[%s1] sm:$0xff]
  %v218 = vld [vmem:[%s1 + $0x8] sm:$0xff]
  %v219 = vld [vmem:[%s1 + $0x10] sm:$0xff]
  %v220 = vld [vmem:[%s1 + $0x18] sm:$0xff]
  %v221 = vld [vmem:[%s1 + $0x20] sm:$0xff]
  %v222 = vld [vmem:[%s1 + $0x28] sm:$0xff]
  %v223 = vld [vmem:[%s1 + $0x30] sm:$0xff]
  %v224 = vld [vmem:[%s1 + $0x38] sm:$0xff]
  %v225 = vld [vmem:[%s1 + $0x40] sm:$0xff]
  %v226 = vld [vmem:[%s1 + $0x48] sm:$0xff]
  %v227 = vld [vmem:[%s1 + $0x50] sm:$0xff]
  %v228 = vld [vmem:[%s1 + $0x58] sm:$0xff]
  %v229 = vld [vmem:[%s1 + $0x60] sm:$0xff]
  %v230 = vld [vmem:[%s1 + $0x68] sm:$0xff]
  %v231 = vld [vmem:[%s1 + $0x70] sm:$0xff]
  %v232 = vld [vmem:[%s1 + $0x78] sm:$0xff]
  %v233 = vld [vmem:[%s1 + $0x80] sm:$0xff]
  %v234 = vld [vmem:[%s1 + $0x88] sm:$0xff]
  %v235 = vld [vmem:[%s1 + $0x90] sm:$0xff]
  %v236 = vld [vmem:[%s1 + $0x98] sm:$0xff]
  %v237 = vld [vmem:[%s1 + $0xa0] sm:$0xff]
  %v238 = vld [vmem:[%s1 + $0xa8] sm:$0xff]
  %v239 = vld [vmem:[%s1 + $0xb0] sm:$0xff]
  %v240 = vld [vmem:[%s1 + $0xb8] sm:$0xff]
  %v241 = vld [vmem:[%s1 + $0xc0] sm:$0xff]
  %v242 = vld [vmem:[%s1 + $0xc8] sm:$0xff]
  %v243 = vld [vmem:[%s1 + $0xd0] sm:$0xff]
  %v244 = vld [vmem:[%s1 + $0xd8] sm:$0xff]
  %v245 = vld [vmem:[%s1 + $0xe0] sm:$0xff]
  %v246 = vld [vmem:[%s1 + $0xe8] sm:$0xff]
  %v247 = vld [vmem:[%s1 + $0xf0] sm:$0xff]
  %v248 = vld [vmem:[%s1 + $0xf8] sm:$0xff]
  %v249 = vld [vmem:[%s1 + $0x100] sm:$0xff]
  %v250 = vld [vmem:[%s1 + $0x108] sm:$0xff]
  %v251 = vld [vmem:[%s1 + $0x110] sm:$0xff]
  %v252 = vld [vmem:[%s1 + $0x118] sm:$0xff]
  %v253 = vld [vmem:[%s1 + $0x120] sm:$0xff]
  %v254 = vld [vmem:[%s1 + $0x128] sm:$0xff]
  %v255 = vld [vmem:[%s1 + $0x130] sm:$0xff]
  %v256 = vld [vmem:[%s1 + $0x138] sm:$0xff]
  %v257 = vld [vmem:[%s1 + $0x140] sm:$0xff]
  %v258 = vld [vmem:[%s1 + $0x148] sm:$0xff]
  %v259 = vld [vmem:[%s1 + $0x150] sm:$0xff]
  %v260 = vld [vmem:[%s1 + $0x158] sm:$0xff]
  %v261 = vld [vmem:[%s1 + $0x160] sm:$0xff]
  %v262 = vld [vmem:[%s1 + $0x168] sm:$0xff]
  %v263 = vld [vmem:[%s1 + $0x170] sm:$0xff]
  %v264 = vld [vmem:[%s1 + $0x178] sm:$0xff]
  %v265 = vld [vmem:[%s1 + $0x180] sm:$0xff]
  %v266 = vld [vmem:[%s1 + $0x188] sm:$0xff]
  %v267 = vld [vmem:[%s1 + $0x190] sm:$0xff]
  %v268 = vld [vmem:[%s1 + $0x198] sm:$0xff]
  %v269 = vld [vmem:[%s1 + $0x1a0] sm:$0xff]
  %v270 = vld [vmem:[%s1 + $0x1a8] sm:$0xff]
  %v271 = vld [vmem:[%s1 + $0x1b0] sm:$0xff]
  %v272 = vld [vmem:[%s1 + $0x1b8] sm:$0xff]
  %v273 = vld [vmem:[%s1 + $0x1c0] sm:$0xff]
  %v274 = vld [vmem:[%s1 + $0x1c8] sm:$0xff]
  %v275 = vld [vmem:[%s1 + $0x1d0] sm:$0xff]
  %v276 = vld [vmem:[%s1 + $0x1d8] sm:$0xff]
  %v277 = vld [vmem:[%s1 + $0x1e0] sm:$0xff]
  %v278 = vld [vmem:[%s1 + $0x1e8] sm:$0xff]
  %v279 = vld [vmem:[%s1 + $0x1f0] sm:$0xff]
  %v280 = vld [vmem:[%s1 + $0x1f8] sm:$0xff]
  %v281 = vld [vmem:[%s1 + $0x200] sm:$0xff]
  %v282 = vld [vmem:[%s1 + $0x208] sm:$0xff]
  %v283 = vld [vmem:[%s1 + $0x210] sm:$0xff]
  %v284 = vld [vmem:[%s1 + $0x218] sm:$0xff]
  %v285 = vld [vmem:[%s1 + $0x220] sm:$0xff]
  %v286 = vld [vmem:[%s1 + $0x228] sm:$0xff]
  %v287 = vld [vmem:[%s1 + $0x230] sm:$0xff]
  %v288 = vld [vmem:[%s1 + $0x238] sm:$0xff]
  %v289 = vld [vmem:[%s1 + $0x240] sm:$0xff]
  %v290 = vld [vmem:[%s1 + $0x248] sm:$0xff]
  %v291 = vld [vmem:[%s1 + $0x250] sm:$0xff]
  %v292 = vld [vmem:[%s1 + $0x258] sm:$0xff]
  %v293 = vld [vmem:[%s1 + $0x260] sm:$0xff]
  %v294 = vld [vmem:[%s1 + $0x268] sm:$0xff]
  %v295 = vld [vmem:[%s1 + $0x270] sm:$0xff]
  %v296 = vld [vmem:[%s1 + $0x278] sm:$0xff]
  %v297 = vld [vmem:[%s1 + $0x280] sm:$0xff]
  %v298 = vld [vmem:[%s1 + $0x288] sm:$0xff]
  %v299 = vld [vmem:[%s1 + $0x290] sm:$0xff]
  %v300 = vld [vmem:[%s1 + $0x298] sm:$0xff]
  %v301 = vld [vmem:[%s1 + $0x2a0] sm:$0xff]
  %v302 = vld [vmem:[%s1 + $0x2a8] sm:$0xff]
  %v303 = vld [vmem:[%s1 + $0x2b0] sm:$0xff]
  %v304 = vld [vmem:[%s1 + $0x2b8] sm:$0xff]
  %v305 = vld [vmem:[%s1 + $0x2c0] sm:$0xff]
  %v306 = vld [vmem:[%s1 + $0x2c8] sm:$0xff]
  %v307 = vld [vmem:[%s1 + $0x2d0] sm:$0xff]
  %v308 = vld [vmem:[%s1 + $0x2d8] sm:$0xff]
  %v309 = vld [vmem:[%s1 + $0x2e0] sm:$0xff]
  %v310 = vld [vmem:[%s1 + $0x2e8] sm:$0xff]
  %v311 = vld [vmem:[%s1 + $0x2f0] sm:$0xff]
  %v312 = vld [vmem:[%s1 + $0x2f8] sm:$0xff]
  %v313 = vld [vmem:[%s1 + $0x300] sm:$0xff]
  %v314 = vld [vmem:[%s1 + $0x308] sm:$0xff]
  %v315 = vld [vmem:[%s1 + $0x310] sm:$0xff]
  %v316 = vld [vmem:[%s1 + $0x318] sm:$0xff]
  %v317 = vld [vmem:[%s1 + $0x320] sm:$0xff]
  %v318 = vld [vmem:[%s1 + $0x328] sm:$0xff]
  %v319 = vld [vmem:[%s1 + $0x330] sm:$0xff]
  %v320 = vld [vmem:[%s1 + $0x338] sm:$0xff]
  %v321 = vld [vmem:[%s1 + $0x340] sm:$0xff]
  %v322 = vld [vmem:[%s1 + $0x348] sm:$0xff]
  %v323 = vld [vmem:[%s1 + $0x350] sm:$0xff]
  %v324 = vld [vmem:[%s1 + $0x358] sm:$0xff]
  %v325 = vld [vmem:[%s1 + $0x360] sm:$0xff]
  %v326 = vld [vmem:[%s1 + $0x368] sm:$0xff]
  %v327 = vld [vmem:[%s1 + $0x370] sm:$0xff]
  %v328 = vld [vmem:[%s1 + $0x378] sm:$0xff]
  %v329 = vld [vmem:[%s1 + $0x380] sm:$0xff]
  %v330 = vld [vmem:[%s1 + $0x388] sm:$0xff]
  %v331 = vld [vmem:[%s1 + $0x390] sm:$0xff]
  %v332 = vld [vmem:[%s1 + $0x398] sm:$0xff]
  %v333 = vld [vmem:[%s1 + $0x3a0] sm:$0xff]
  %v334 = vld [vmem:[%s1 + $0x3a8] sm:$0xff]
  %v335 = vld [vmem:[%s1 + $0x3b0] sm:$0xff]
  %v336 = vld [vmem:[%s1 + $0x3b8] sm:$0xff]
  %v337 = vld [vmem:[%s1 + $0x3c0] sm:$0xff]
  %v338 = vld [vmem:[%s1 + $0x3c8] sm:$0xff]
  %v339 = vld [vmem:[%s1 + $0x3d0] sm:$0xff]
  %v340 = vld [vmem:[%s1 + $0x3d8] sm:$0xff]
  %v341 = vld [vmem:[%s1 + $0x3e0] sm:$0xff]
  %v342 = vld [vmem:[%s1 + $0x3e8] sm:$0xff]
  %v343 = vld [vmem:[%s1 + $0x3f0] sm:$0xff]
  %v344 = vld [vmem:[%s1 + $0x3f8] sm:$0xff]
  %v345 = vld [vmem:[%s1 + $0x400] sm:$0xff]
  %v346 = vld [vmem:[%s1 + $0x408] sm:$0xff]
  %v347 = vld [vmem:[%s1 + $0x410] sm:$0xff]
  %v348 = vld [vmem:[%s1 + $0x418] sm:$0xff]
  %v349 = vld [vmem:[%s1 + $0x420] sm:$0xff]
  %v350 = vld [vmem:[%s1 + $0x428] sm:$0xff]
  %v351 = vld [vmem:[%s1 + $0x430] sm:$0xff]
  %v352 = vld [vmem:[%s1 + $0x438] sm:$0xff]
  %v353 = vld [vmem:[%s1 + $0x440] sm:$0xff]
  %v354 = vld [vmem:[%s1 + $0x448] sm:$0xff]
  %v355 = vld [vmem:[%s1 + $0x450] sm:$0xff]
  %v356 = vld [vmem:[%s1 + $0x458] sm:$0xff]
  %v357 = vld [vmem:[%s1 + $0x460] sm:$0xff]
  %v358 = vld [vmem:[%s1 + $0x468] sm:$0xff]
  %v359 = vld [vmem:[%s1 + $0x470] sm:$0xff]
  %v360 = vld [vmem:[%s1 + $0x478] sm:$0xff]
  %v361 = vld [vmem:[%s1 + $0x480] sm:$0xff]
  %v362 = vld [vmem:[%s1 + $0x488] sm:$0xff]
  %v363 = vld [vmem:[%s1 + $0x490] sm:$0xff]
  %v364 = vld [vmem:[%s1 + $0x498] sm:$0xff]
  %v365 = vld [vmem:[%s1 + $0x4a0] sm:$0xff]
  %v366 = vld [vmem:[%s1 + $0x4a8] sm:$0xff]
  %v367 = vld [vmem:[%s1 + $0x4b0] sm:$0xff]
  %v368 = vld [vmem:[%s1 + $0x4b8] sm:$0xff]
  %v369 = vld [vmem:[%s1 + $0x4c0] sm:$0xff]
  %v370 = vld [vmem:[%s1 + $0x4c8] sm:$0xff]
  %v371 = vld [vmem:[%s1 + $0x4d0] sm:$0xff]
  %v372 = vld [vmem:[%s1 + $0x4d8] sm:$0xff]
  %v373 = vld [vmem:[%s1 + $0x4e0] sm:$0xff]
  %v374 = vld [vmem:[%s1 + $0x4e8] sm:$0xff]
  %v375 = vld [vmem:[%s1 + $0x4f0] sm:$0xff]
  %v376 = vld [vmem:[%s1 + $0x4f8] sm:$0xff]
  %v377 = vld [vmem:[%s1 + $0x500] sm:$0xff]
  %v378 = vld [vmem:[%s1 + $0x508] sm:$0xff]
  %v379 = vld [vmem:[%s1 + $0x510] sm:$0xff]
  %v380 = vld [vmem:[%s1 + $0x518] sm:$0xff]
  %v381 = vld [vmem:[%s1 + $0x520] sm:$0xff]
  %v382 = vld [vmem:[%s1 + $0x528] sm:$0xff]
  %v383 = vld [vmem:[%s1 + $0x530] sm:$0xff]
  %v384 = vld [vmem:[%s1 + $0x538] sm:$0xff]
  %v385 = vld [vmem:[%s1 + $0x540] sm:$0xff]
  %v386 = vld [vmem:[%s1 + $0x548] sm:$0xff]
  %v387 = vld [vmem:[%s1 + $0x550] sm:$0xff]
  %v388 = vld [vmem:[%s1 + $0x558] sm:$0xff]
  %v389 = vld [vmem:[%s1 + $0x560] sm:$0xff]
  %v390 = vld [vmem:[%s1 + $0x568] sm:$0xff]
  %v391 = vld [vmem:[%s1 + $0x570] sm:$0xff]
  %v392 = vld [vmem:[%s1 + $0x578] sm:$0xff]
  %v393 = vld [vmem:[%s1 + $0x580] sm:$0xff]
  %v394 = vld [vmem:[%s1 + $0x588] sm:$0xff]
  %v395 = vld [vmem:[%s1 + $0x590] sm:$0xff]
  %v396 = vld [vmem:[%s1 + $0x598] sm:$0xff]
  %v397 = vld [vmem:[%s1 + $0x5a0] sm:$0xff]
  %v398 = vld [vmem:[%s1 + $0x5a8] sm:$0xff]
  %v399 = vld [vmem:[%s1 + $0x5b0] sm:$0xff]
  %v400 = vld [vmem:[%s1 + $0x5b8] sm:$0xff]
  %v401 = vld [vmem:[%s1 + $0x5c0] sm:$0xff]
  %v402 = vld [vmem:[%s1 + $0x5c8] sm:$0xff]
  %v403 = vld [vmem:[%s1 + $0x5d0] sm:$0xff]
  %v404 = vld [vmem:[%s1 + $0x5d8] sm:$0xff]
  %v405 = vld [vmem:[%s1 + $0x5e0] sm:$0xff]
  %v406 = vld [vmem:[%s1 + $0x5e8] sm:$0xff]
  %v407 = vld [vmem:[%s1 + $0x5f0] sm:$0xff]
  %v408 = vld [vmem:[%s1 + $0x5f8] sm:$0xff]
  %v409 = vld [vmem:[%s1 + $0x600] sm:$0xff]
  %v410 = vld [vmem:[%s1 + $0x608] sm:$0xff]
  %v411 = vld [vmem:[%s1 + $0x610] sm:$0xff]
  %v412 = vld [vmem:[%s1 + $0x618] sm:$0xff]
  %v413 = vld [vmem:[%s1 + $0x620] sm:$0xff]
  %v414 = vld [vmem:[%s1 + $0x628] sm:$0xff]
  %v415 = vld [vmem:[%s1 + $0x630] sm:$0xff]
  %v416 = vld [vmem:[%s1 + $0x638] sm:$0xff]
  %v417 = vld [vmem:[%s1 + $0x640] sm:$0xff]
  %v418 = vld [vmem:[%s1 + $0x648] sm:$0xff]
  %v419 = vld [vmem:[%s1 + $0x650] sm:$0xff]
  %v420 = vld [vmem:[%s1 + $0x658] sm:$0xff]
  %v421 = vld [vmem:[%s1 + $0x660] sm:$0xff]
  %v422 = vld [vmem:[%s1 + $0x668] sm:$0xff]
  %v423 = vld [vmem:[%s1 + $0x670] sm:$0xff]
  %v424 = vld [vmem:[%s1 + $0x678] sm:$0xff]
  %v425 = vld [vmem:[%s1 + $0x680] sm:$0xff]
  %v426 = vld [vmem:[%s1 + $0x688] sm:$0xff]
  %v427 = vld [vmem:[%s1 + $0x690] sm:$0xff]
  %v428 = vld [vmem:[%s1 + $0x698] sm:$0xff]
  %v429 = vld [vmem:[%s1 + $0x6a0] sm:$0xff]
  %v430 = vld [vmem:[%s1 + $0x6a8] sm:$0xff]
  %v431 = vld [vmem:[%s1 + $0x6b0] sm:$0xff]
  %v432 = vld [vmem:[%s1 + $0x6b8] sm:$0xff]
  %v433 = vld [vmem:[%s1 + $0x6c0] sm:$0xff]
  %v434 = vld [vmem:[%s1 + $0x6c8] sm:$0xff]
  %v435 = vld [vmem:[%s1 + $0x6d0] sm:$0xff]
  %v436 = vld [vmem:[%s1 + $0x6d8] sm:$0xff]
  %v437 = vld [vmem:[%s1 + $0x6e0] sm:$0xff]
  %v438 = vld [vmem:[%s1 + $0x6e8] sm:$0xff]
  %v439 = vld [vmem:[%s1 + $0x6f0] sm:$0xff]
  %v440 = vld [vmem:[%s1 + $0x6f8] sm:$0xff]
  %v441 = vld [vmem:[%s1 + $0x700] sm:$0xff]
  %v442 = vld [vmem:[%s1 + $0x708] sm:$0xff]
  %v443 = vld [vmem:[%s1 + $0x710] sm:$0xff]
  %v444 = vld [vmem:[%s1 + $0x718] sm:$0xff]
  %v445 = vld [vmem:[%s1 + $0x720] sm:$0xff]
  %v446 = vld [vmem:[%s1 + $0x728] sm:$0xff]
  %v447 = vld [vmem:[%s1 + $0x730] sm:$0xff]
  %v448 = vld [vmem:[%s1 + $0x738] sm:$0xff]
  %v449 = vld [vmem:[%s1 + $0x740] sm:$0xff]
  %v450 = vld [vmem:[%s1 + $0x748] sm:$0xff]
  %v451 = vld [vmem:[%s1 + $0x750] sm:$0xff]
  %v452 = vld [vmem:[%s1 + $0x758] sm:$0xff]
  %v453 = vld [vmem:[%s1 + $0x760] sm:$0xff]
  %v454 = vld [vmem:[%s1 + $0x768] sm:$0xff]
  %v455 = vld [vmem:[%s1 + $0x770] sm:$0xff]
  %v456 = vld [vmem:[%s1 + $0x778] sm:$0xff]
  %v457 = vld [vmem:[%s1 + $0x780] sm:$0xff]
  %v458 = vld [vmem:[%s1 + $0x788] sm:$0xff]
  %v459 = vld [vmem:[%s1 + $0x790] sm:$0xff]
  %v460 = vld [vmem:[%s1 + $0x798] sm:$0xff]
  %v461 = vld [vmem:[%s1 + $0x7a0] sm:$0xff]
  %v462 = vld [vmem:[%s1 + $0x7a8] sm:$0xff]
  %v463 = vld [vmem:[%s1 + $0x7b0] sm:$0xff]
  %v464 = vld [vmem:[%s1 + $0x7b8] sm:$0xff]
  %v465 = vld [vmem:[%s1 + $0x7c0] sm:$0xff]
  %v466 = vld [vmem:[%s1 + $0x7c8] sm:$0xff]
  %v467 = vld [vmem:[%s1 + $0x7d0] sm:$0xff]
  %v468 = vld [vmem:[%s1 + $0x7d8] sm:$0xff]
  %vm469 = vcmask 916480
  %v471 = vsel %vm469, %v24, 0
  %v474 = vsel %vm469, %v32, 0
  %v477 = vsel %vm469, %v40, 0
  %v480 = vsel %vm469, %v48, 0
  %v483 = vsel %vm469, %v56, 0
  %v486 = vsel %vm469, %v64, 0
  %v489 = vsel %vm469, %v72, 0
  %v492 = vsel %vm469, %v80, 0
  %v495 = vsel %vm469, %v88, 0
  %v498 = vsel %vm469, %v96, 0
  %v501 = vsel %vm469, %v104, 0
  %v504 = vsel %vm469, %v112, 0
  %v507 = vsel %vm469, %v120, 0
  %v510 = vsel %vm469, %v128, 0
  %v513 = vsel %vm469, %v136, 0
  %v516 = vsel %vm469, %v144, 0
  %v519 = vsel %vm469, %v152, 0
  %v522 = vsel %vm469, %v160, 0
  %v525 = vsel %vm469, %v168, 0
  %v528 = vsel %vm469, %v176, 0
  %v531 = vsel %vm469, %v184, 0
  %v534 = vsel %vm469, %v192, 0
  %v537 = vsel %vm469, %v200, 0
  %v540 = vsel %vm469, %v208, 0
  %v543 = vsel %vm469, %v216, 0
  %545 = vmatprep.subr.mxu0 %v248
  %546 = vmatpush1.msra.mxu0 %v247
  %547 = vmatprep.subr.mxu0 %v246
  %548 = vmatpush1.msra.mxu0 %v245
  %549 = vmatprep.subr.mxu0 %v244
  %550 = vmatpush1.msra.mxu0 %v243
  %551 = vmatprep.subr.mxu0 %v242
  %552 = vmatpush1.msra.mxu0 %v241
  %553 = vmatprep.subr.mxu0 %v240
  %554 = vmatpush1.msra.mxu0 %v239
  %555 = vmatprep.subr.mxu0 %v238
  %556 = vmatpush1.msra.mxu0 %v237
  %557 = vmatprep.subr.mxu0 %v236
  %558 = vmatpush1.msra.mxu0 %v235
  %559 = vmatprep.subr.mxu0 %v234
  %560 = vmatpush1.msra.mxu0 %v233
  %561 = vmatprep.subr.mxu0 %v232
  %562 = vmatpush1.msra.mxu0 %v231
  %563 = vmatprep.subr.mxu0 %v230
  %564 = vmatpush1.msra.mxu0 %v229
  %565 = vmatprep.subr.mxu0 %v228
  %566 = vmatpush1.msra.mxu0 %v227
  %567 = vmatprep.subr.mxu0 %v226
  %568 = vmatpush1.msra.mxu0 %v225
  %569 = vmatprep.subr.mxu0 %v224
  %570 = vmatpush1.msra.mxu0 %v223
  %571 = vmatprep.subr.mxu0 %v222
  %572 = vmatpush1.msra.mxu0 %v221
  %573 = vmatprep.subr.mxu0 %v220
  %574 = vmatpush1.msra.mxu0 %v219
  %575 = vmatprep.subr.mxu0 %v218
  %576 = vmatpush1.msra.mxu0 %v217
  %577 = vmatprep.subr.mxu0 %v280
  %578 = vmatpush2.msra.mxu0 %v279
  %579 = vmatprep.subr.mxu0 %v278
  %580 = vmatpush2.msra.mxu0 %v277
  %581 = vmatprep.subr.mxu0 %v276
  %582 = vmatpush2.msra.mxu0 %v275
  %583 = vmatprep.subr.mxu0 %v274
  %584 = vmatpush2.msra.mxu0 %v273
  %585 = vmatprep.subr.mxu0 %v272
  %586 = vmatpush2.msra.mxu0 %v271
  %587 = vmatprep.subr.mxu0 %v270
  %588 = vmatpush2.msra.mxu0 %v269
  %589 = vmatprep.subr.mxu0 %v268
  %590 = vmatpush2.msra.mxu0 %v267
  %591 = vmatprep.subr.mxu0 %v266
  %592 = vmatpush2.msra.mxu0 %v265
  %593 = vmatprep.subr.mxu0 %v264
  %594 = vmatpush2.msra.mxu0 %v263
  %595 = vmatprep.subr.mxu0 %v262
  %596 = vmatpush2.msra.mxu0 %v261
  %597 = vmatprep.subr.mxu0 %v260
  %598 = vmatpush2.msra.mxu0 %v259
  %599 = vmatprep.subr.mxu0 %v258
  %600 = vmatpush2.msra.mxu0 %v257
  %601 = vmatprep.subr.mxu0 %v256
  %602 = vmatpush2.msra.mxu0 %v255
  %603 = vmatprep.subr.mxu0 %v254
  %604 = vmatpush2.msra.mxu0 %v253
  %605 = vmatprep.subr.mxu0 %v252
  %606 = vmatpush2.msra.mxu0 %v251
  %607 = vmatprep.subr.mxu0 %v250
  %608 = vmatpush2.msra.mxu0 %v249
  %609 = vmatprep.mubr.f32.mxu0 %v18
  %610 = vmatmul.mubr.f32.gmra.mxu0 %v17
  %v611 = vpop.f32.mrf.mxu0
  %v612 = vadd.f32 0.0, %v611
  %v613 = vpop.f32.mrf.mxu0
  %v614 = vadd.f32 0.0, %v613
  %615 = vmatprep.mubr.f32.mxu0 %v26
  %616 = vmatmul.mubr.f32.gmra.mxu0 %v25
  %v617 = vpop.f32.mrf.mxu0
  %v618 = vadd.f32 0.0, %v617
  %v619 = vpop.f32.mrf.mxu0
  %v620 = vadd.f32 0.0, %v619
  %621 = vmatprep.mubr.f32.mxu0 %v34
  %622 = vmatmul.mubr.f32.gmra.mxu0 %v33
  %v623 = vpop.f32.mrf.mxu0
  %v624 = vadd.f32 0.0, %v623
  %v625 = vpop.f32.mrf.mxu0
  %v626 = vadd.f32 0.0, %v625
  %627 = vmatprep.mubr.f32.mxu0 %v42
  %628 = vmatmul.mubr.f32.gmra.mxu0 %v41
  %v629 = vpop.f32.mrf.mxu0
  %v630 = vadd.f32 0.0, %v629
  %v631 = vpop.f32.mrf.mxu0
  %v632 = vadd.f32 0.0, %v631
  %633 = vmatprep.mubr.f32.mxu0 %v50
  %634 = vmatmul.mubr.f32.gmra.mxu0 %v49
  %v635 = vpop.f32.mrf.mxu0
  %v636 = vadd.f32 0.0, %v635
  %v637 = vpop.f32.mrf.mxu0
  %v638 = vadd.f32 0.0, %v637
  %639 = vmatprep.mubr.f32.mxu0 %v58
  %640 = vmatmul.mubr.f32.gmra.mxu0 %v57
  %v641 = vpop.f32.mrf.mxu0
  %v642 = vadd.f32 0.0, %v641
  %v643 = vpop.f32.mrf.mxu0
  %v644 = vadd.f32 0.0, %v643
  %645 = vmatprep.mubr.f32.mxu0 %v66
  %646 = vmatmul.mubr.f32.gmra.mxu0 %v65
  %v647 = vpop.f32.mrf.mxu0
  %v648 = vadd.f32 0.0, %v647
  %v649 = vpop.f32.mrf.mxu0
  %v650 = vadd.f32 0.0, %v649
  %651 = vmatprep.mubr.f32.mxu0 %v74
  %652 = vmatmul.mubr.f32.gmra.mxu0 %v73
  %v653 = vpop.f32.mrf.mxu0
  %v654 = vadd.f32 0.0, %v653
  %v655 = vpop.f32.mrf.mxu0
  %v656 = vadd.f32 0.0, %v655
  %657 = vmatprep.mubr.f32.mxu0 %v82
  %658 = vmatmul.mubr.f32.gmra.mxu0 %v81
  %v659 = vpop.f32.mrf.mxu0
  %v660 = vadd.f32 0.0, %v659
  %v661 = vpop.f32.mrf.mxu0
  %v662 = vadd.f32 0.0, %v661
  %663 = vmatprep.mubr.f32.mxu0 %v90
  %664 = vmatmul.mubr.f32.gmra.mxu0 %v89
  %v665 = vpop.f32.mrf.mxu0
  %v666 = vadd.f32 0.0, %v665
  %v667 = vpop.f32.mrf.mxu0
  %v668 = vadd.f32 0.0, %v667
  %669 = vmatprep.mubr.f32.mxu0 %v98
  %670 = vmatmul.mubr.f32.gmra.mxu0 %v97
  %v671 = vpop.f32.mrf.mxu0
  %v672 = vadd.f32 0.0, %v671
  %v673 = vpop.f32.mrf.mxu0
  %v674 = vadd.f32 0.0, %v673
  %675 = vmatprep.mubr.f32.mxu0 %v106
  %676 = vmatmul.mubr.f32.gmra.mxu0 %v105
  %v677 = vpop.f32.mrf.mxu0
  %v678 = vadd.f32 0.0, %v677
  %v679 = vpop.f32.mrf.mxu0
  %v680 = vadd.f32 0.0, %v679
  %681 = vmatprep.mubr.f32.mxu0 %v114
  %682 = vmatmul.mubr.f32.gmra.mxu0 %v113
  %v683 = vpop.f32.mrf.mxu0
  %v684 = vadd.f32 0.0, %v683
  %v685 = vpop.f32.mrf.mxu0
  %v686 = vadd.f32 0.0, %v685
  %687 = vmatprep.mubr.f32.mxu0 %v122
  %688 = vmatmul.mubr.f32.gmra.mxu0 %v121
  %v689 = vpop.f32.mrf.mxu0
  %v690 = vadd.f32 0.0, %v689
  %v691 = vpop.f32.mrf.mxu0
  %v692 = vadd.f32 0.0, %v691
  %693 = vmatprep.mubr.f32.mxu0 %v130
  %694 = vmatmul.mubr.f32.gmra.mxu0 %v129
  %v695 = vpop.f32.mrf.mxu0
  %v696 = vadd.f32 0.0, %v695
  %v697 = vpop.f32.mrf.mxu0
  %v698 = vadd.f32 0.0, %v697
  %699 = vmatprep.mubr.f32.mxu0 %v138
  %700 = vmatmul.mubr.f32.gmra.mxu0 %v137
  %v701 = vpop.f32.mrf.mxu0
  %v702 = vadd.f32 0.0, %v701
  %v703 = vpop.f32.mrf.mxu0
  %v704 = vadd.f32 0.0, %v703
  %705 = vmatprep.mubr.f32.mxu0 %v146
  %706 = vmatmul.mubr.f32.gmra.mxu0 %v145
  %v707 = vpop.f32.mrf.mxu0
  %v708 = vadd.f32 0.0, %v707
  %v709 = vpop.f32.mrf.mxu0
  %v710 = vadd.f32 0.0, %v709
  %711 = vmatprep.mubr.f32.mxu0 %v154
  %712 = vmatmul.mubr.f32.gmra.mxu0 %v153
  %v713 = vpop.f32.mrf.mxu0
  %v714 = vadd.f32 0.0, %v713
  %v715 = vpop.f32.mrf.mxu0
  %v716 = vadd.f32 0.0, %v715
  %717 = vmatprep.mubr.f32.mxu0 %v162
  %718 = vmatmul.mubr.f32.gmra.mxu0 %v161
  %v719 = vpop.f32.mrf.mxu0
  %v720 = vadd.f32 0.0, %v719
  %v721 = vpop.f32.mrf.mxu0
  %v722 = vadd.f32 0.0, %v721
  %723 = vmatprep.mubr.f32.mxu0 %v170
  %724 = vmatmul.mubr.f32.gmra.mxu0 %v169
  %v725 = vpop.f32.mrf.mxu0
  %v726 = vadd.f32 0.0, %v725
  %v727 = vpop.f32.mrf.mxu0
  %v728 = vadd.f32 0.0, %v727
  %729 = vmatprep.mubr.f32.mxu0 %v178
  %730 = vmatmul.mubr.f32.gmra.mxu0 %v177
  %v731 = vpop.f32.mrf.mxu0
  %v732 = vadd.f32 0.0, %v731
  %v733 = vpop.f32.mrf.mxu0
  %v734 = vadd.f32 0.0, %v733
  %735 = vmatprep.mubr.f32.mxu0 %v186
  %736 = vmatmul.mubr.f32.gmra.mxu0 %v185
  %v737 = vpop.f32.mrf.mxu0
  %v738 = vadd.f32 0.0, %v737
  %v739 = vpop.f32.mrf.mxu0
  %v740 = vadd.f32 0.0, %v739
  %741 = vmatprep.mubr.f32.mxu0 %v194
  %742 = vmatmul.mubr.f32.gmra.mxu0 %v193
  %v743 = vpop.f32.mrf.mxu0
  %v744 = vadd.f32 0.0, %v743
  %v745 = vpop.f32.mrf.mxu0
  %v746 = vadd.f32 0.0, %v745
  %747 = vmatprep.mubr.f32.mxu0 %v202
  %748 = vmatmul.mubr.f32.gmra.mxu0 %v201
  %v749 = vpop.f32.mrf.mxu0
  %v750 = vadd.f32 0.0, %v749
  %v751 = vpop.f32.mrf.mxu0
  %v752 = vadd.f32 0.0, %v751
  %753 = vmatprep.mubr.f32.mxu0 %v210
  %754 = vmatmul.mubr.f32.gmra.mxu0 %v209
  %v755 = vpop.f32.mrf.mxu0
  %v756 = vadd.f32 0.0, %v755
  %v757 = vpop.f32.mrf.mxu0
  %v758 = vadd.f32 0.0, %v757
  %759 = vdwg.mxu0
  %760 = vmatprep.subr.mxu0 %v312
  %761 = vmatpush1.msra.mxu0 %v311
  %762 = vmatprep.subr.mxu0 %v310
  %763 = vmatpush1.msra.mxu0 %v309
  %764 = vmatprep.subr.mxu0 %v308
  %765 = vmatpush1.msra.mxu0 %v307
  %766 = vmatprep.subr.mxu0 %v306
  %767 = vmatpush1.msra.mxu0 %v305
  %768 = vmatprep.subr.mxu0 %v304
  %769 = vmatpush1.msra.mxu0 %v303
  %770 = vmatprep.subr.mxu0 %v302
  %771 = vmatpush1.msra.mxu0 %v301
  %772 = vmatprep.subr.mxu0 %v300
  %773 = vmatpush1.msra.mxu0 %v299
  %774 = vmatprep.subr.mxu0 %v298
  %775 = vmatpush1.msra.mxu0 %v297
  %776 = vmatprep.subr.mxu0 %v296
  %777 = vmatpush1.msra.mxu0 %v295
  %778 = vmatprep.subr.mxu0 %v294
  %779 = vmatpush1.msra.mxu0 %v293
  %780 = vmatprep.subr.mxu0 %v292
  %781 = vmatpush1.msra.mxu0 %v291
  %782 = vmatprep.subr.mxu0 %v290
  %783 = vmatpush1.msra.mxu0 %v289
  %784 = vmatprep.subr.mxu0 %v288
  %785 = vmatpush1.msra.mxu0 %v287
  %786 = vmatprep.subr.mxu0 %v286
  %787 = vmatpush1.msra.mxu0 %v285
  %788 = vmatprep.subr.mxu0 %v284
  %789 = vmatpush1.msra.mxu0 %v283
  %790 = vmatprep.subr.mxu0 %v282
  %791 = vmatpush1.msra.mxu0 %v281
  %792 = vmatprep.subr.mxu0 %v344
  %793 = vmatpush2.msra.mxu0 %v343
  %794 = vmatprep.subr.mxu0 %v342
  %795 = vmatpush2.msra.mxu0 %v341
  %796 = vmatprep.subr.mxu0 %v340
  %797 = vmatpush2.msra.mxu0 %v339
  %798 = vmatprep.subr.mxu0 %v338
  %799 = vmatpush2.msra.mxu0 %v337
  %800 = vmatprep.subr.mxu0 %v336
  %801 = vmatpush2.msra.mxu0 %v335
  %802 = vmatprep.subr.mxu0 %v334
  %803 = vmatpush2.msra.mxu0 %v333
  %804 = vmatprep.subr.mxu0 %v332
  %805 = vmatpush2.msra.mxu0 %v331
  %806 = vmatprep.subr.mxu0 %v330
  %807 = vmatpush2.msra.mxu0 %v329
  %808 = vmatprep.subr.mxu0 %v328
  %809 = vmatpush2.msra.mxu0 %v327
  %810 = vmatprep.subr.mxu0 %v326
  %811 = vmatpush2.msra.mxu0 %v325
  %812 = vmatprep.subr.mxu0 %v324
  %813 = vmatpush2.msra.mxu0 %v323
  %814 = vmatprep.subr.mxu0 %v322
  %815 = vmatpush2.msra.mxu0 %v321
  %816 = vmatprep.subr.mxu0 %v320
  %817 = vmatpush2.msra.mxu0 %v319
  %818 = vmatprep.subr.mxu0 %v318
  %819 = vmatpush2.msra.mxu0 %v317
  %820 = vmatprep.subr.mxu0 %v316
  %821 = vmatpush2.msra.mxu0 %v315
  %822 = vmatprep.subr.mxu0 %v314
  %823 = vmatpush2.msra.mxu0 %v313
  %824 = vmatprep.mubr.f32.mxu0 %v20
  %825 = vmatmul.mubr.f32.gmra.mxu0 %v19
  %v826 = vpop.f32.mrf.mxu0
  %v827 = vadd.f32 %v612, %v826
  %v828 = vpop.f32.mrf.mxu0
  %v829 = vadd.f32 %v614, %v828
  %830 = vmatprep.mubr.f32.mxu0 %v28
  %831 = vmatmul.mubr.f32.gmra.mxu0 %v27
  %v832 = vpop.f32.mrf.mxu0
  %v833 = vadd.f32 %v618, %v832
  %v834 = vpop.f32.mrf.mxu0
  %v835 = vadd.f32 %v620, %v834
  %836 = vmatprep.mubr.f32.mxu0 %v36
  %837 = vmatmul.mubr.f32.gmra.mxu0 %v35
  %v838 = vpop.f32.mrf.mxu0
  %v839 = vadd.f32 %v624, %v838
  %v840 = vpop.f32.mrf.mxu0
  %v841 = vadd.f32 %v626, %v840
  %842 = vmatprep.mubr.f32.mxu0 %v44
  %843 = vmatmul.mubr.f32.gmra.mxu0 %v43
  %v844 = vpop.f32.mrf.mxu0
  %v845 = vadd.f32 %v630, %v844
  %v846 = vpop.f32.mrf.mxu0
  %v847 = vadd.f32 %v632, %v846
  %848 = vmatprep.mubr.f32.mxu0 %v52
  %849 = vmatmul.mubr.f32.gmra.mxu0 %v51
  %v850 = vpop.f32.mrf.mxu0
  %v851 = vadd.f32 %v636, %v850
  %v852 = vpop.f32.mrf.mxu0
  %v853 = vadd.f32 %v638, %v852
  %854 = vmatprep.mubr.f32.mxu0 %v60
  %855 = vmatmul.mubr.f32.gmra.mxu0 %v59
  %v856 = vpop.f32.mrf.mxu0
  %v857 = vadd.f32 %v642, %v856
  %v858 = vpop.f32.mrf.mxu0
  %v859 = vadd.f32 %v644, %v858
  %860 = vmatprep.mubr.f32.mxu0 %v68
  %861 = vmatmul.mubr.f32.gmra.mxu0 %v67
  %v862 = vpop.f32.mrf.mxu0
  %v863 = vadd.f32 %v648, %v862
  %v864 = vpop.f32.mrf.mxu0
  %v865 = vadd.f32 %v650, %v864
  %866 = vmatprep.mubr.f32.mxu0 %v76
  %867 = vmatmul.mubr.f32.gmra.mxu0 %v75
  %v868 = vpop.f32.mrf.mxu0
  %v869 = vadd.f32 %v654, %v868
  %v870 = vpop.f32.mrf.mxu0
  %v871 = vadd.f32 %v656, %v870
  %872 = vmatprep.mubr.f32.mxu0 %v84
  %873 = vmatmul.mubr.f32.gmra.mxu0 %v83
  %v874 = vpop.f32.mrf.mxu0
  %v875 = vadd.f32 %v660, %v874
  %v876 = vpop.f32.mrf.mxu0
  %v877 = vadd.f32 %v662, %v876
  %878 = vmatprep.mubr.f32.mxu0 %v92
  %879 = vmatmul.mubr.f32.gmra.mxu0 %v91
  %v880 = vpop.f32.mrf.mxu0
  %v881 = vadd.f32 %v666, %v880
  %v882 = vpop.f32.mrf.mxu0
  %v883 = vadd.f32 %v668, %v882
  %884 = vmatprep.mubr.f32.mxu0 %v100
  %885 = vmatmul.mubr.f32.gmra.mxu0 %v99
  %v886 = vpop.f32.mrf.mxu0
  %v887 = vadd.f32 %v672, %v886
  %v888 = vpop.f32.mrf.mxu0
  %v889 = vadd.f32 %v674, %v888
  %890 = vmatprep.mubr.f32.mxu0 %v108
  %891 = vmatmul.mubr.f32.gmra.mxu0 %v107
  %v892 = vpop.f32.mrf.mxu0
  %v893 = vadd.f32 %v678, %v892
  %v894 = vpop.f32.mrf.mxu0
  %v895 = vadd.f32 %v680, %v894
  %896 = vmatprep.mubr.f32.mxu0 %v116
  %897 = vmatmul.mubr.f32.gmra.mxu0 %v115
  %v898 = vpop.f32.mrf.mxu0
  %v899 = vadd.f32 %v684, %v898
  %v900 = vpop.f32.mrf.mxu0
  %v901 = vadd.f32 %v686, %v900
  %902 = vmatprep.mubr.f32.mxu0 %v124
  %903 = vmatmul.mubr.f32.gmra.mxu0 %v123
  %v904 = vpop.f32.mrf.mxu0
  %v905 = vadd.f32 %v690, %v904
  %v906 = vpop.f32.mrf.mxu0
  %v907 = vadd.f32 %v692, %v906
  %908 = vmatprep.mubr.f32.mxu0 %v132
  %909 = vmatmul.mubr.f32.gmra.mxu0 %v131
  %v910 = vpop.f32.mrf.mxu0
  %v911 = vadd.f32 %v696, %v910
  %v912 = vpop.f32.mrf.mxu0
  %v913 = vadd.f32 %v698, %v912
  %914 = vmatprep.mubr.f32.mxu0 %v140
  %915 = vmatmul.mubr.f32.gmra.mxu0 %v139
  %v916 = vpop.f32.mrf.mxu0
  %v917 = vadd.f32 %v702, %v916
  %v918 = vpop.f32.mrf.mxu0
  %v919 = vadd.f32 %v704, %v918
  %920 = vmatprep.mubr.f32.mxu0 %v148
  %921 = vmatmul.mubr.f32.gmra.mxu0 %v147
  %v922 = vpop.f32.mrf.mxu0
  %v923 = vadd.f32 %v708, %v922
  %v924 = vpop.f32.mrf.mxu0
  %v925 = vadd.f32 %v710, %v924
  %926 = vmatprep.mubr.f32.mxu0 %v156
  %927 = vmatmul.mubr.f32.gmra.mxu0 %v155
  %v928 = vpop.f32.mrf.mxu0
  %v929 = vadd.f32 %v714, %v928
  %v930 = vpop.f32.mrf.mxu0
  %v931 = vadd.f32 %v716, %v930
  %932 = vmatprep.mubr.f32.mxu0 %v164
  %933 = vmatmul.mubr.f32.gmra.mxu0 %v163
  %v934 = vpop.f32.mrf.mxu0
  %v935 = vadd.f32 %v720, %v934
  %v936 = vpop.f32.mrf.mxu0
  %v937 = vadd.f32 %v722, %v936
  %938 = vmatprep.mubr.f32.mxu0 %v172
  %939 = vmatmul.mubr.f32.gmra.mxu0 %v171
  %v940 = vpop.f32.mrf.mxu0
  %v941 = vadd.f32 %v726, %v940
  %v942 = vpop.f32.mrf.mxu0
  %v943 = vadd.f32 %v728, %v942
  %944 = vmatprep.mubr.f32.mxu0 %v180
  %945 = vmatmul.mubr.f32.gmra.mxu0 %v179
  %v946 = vpop.f32.mrf.mxu0
  %v947 = vadd.f32 %v732, %v946
  %v948 = vpop.f32.mrf.mxu0
  %v949 = vadd.f32 %v734, %v948
  %950 = vmatprep.mubr.f32.mxu0 %v188
  %951 = vmatmul.mubr.f32.gmra.mxu0 %v187
  %v952 = vpop.f32.mrf.mxu0
  %v953 = vadd.f32 %v738, %v952
  %v954 = vpop.f32.mrf.mxu0
  %v955 = vadd.f32 %v740, %v954
  %956 = vmatprep.mubr.f32.mxu0 %v196
  %957 = vmatmul.mubr.f32.gmra.mxu0 %v195
  %v958 = vpop.f32.mrf.mxu0
  %v959 = vadd.f32 %v744, %v958
  %v960 = vpop.f32.mrf.mxu0
  %v961 = vadd.f32 %v746, %v960
  %962 = vmatprep.mubr.f32.mxu0 %v204
  %963 = vmatmul.mubr.f32.gmra.mxu0 %v203
  %v964 = vpop.f32.mrf.mxu0
  %v965 = vadd.f32 %v750, %v964
  %v966 = vpop.f32.mrf.mxu0
  %v967 = vadd.f32 %v752, %v966
  %968 = vmatprep.mubr.f32.mxu0 %v212
  %969 = vmatmul.mubr.f32.gmra.mxu0 %v211
  %v970 = vpop.f32.mrf.mxu0
  %v971 = vadd.f32 %v756, %v970
  %v972 = vpop.f32.mrf.mxu0
  %v973 = vadd.f32 %v758, %v972
  %974 = vdwg.mxu0
  %975 = vmatprep.subr.mxu0 %v376
  %976 = vmatpush1.msra.mxu0 %v375
  %977 = vmatprep.subr.mxu0 %v374
  %978 = vmatpush1.msra.mxu0 %v373
  %979 = vmatprep.subr.mxu0 %v372
  %980 = vmatpush1.msra.mxu0 %v371
  %981 = vmatprep.subr.mxu0 %v370
  %982 = vmatpush1.msra.mxu0 %v369
  %983 = vmatprep.subr.mxu0 %v368
  %984 = vmatpush1.msra.mxu0 %v367
  %985 = vmatprep.subr.mxu0 %v366
  %986 = vmatpush1.msra.mxu0 %v365
  %987 = vmatprep.subr.mxu0 %v364
  %988 = vmatpush1.msra.mxu0 %v363
  %989 = vmatprep.subr.mxu0 %v362
  %990 = vmatpush1.msra.mxu0 %v361
  %991 = vmatprep.subr.mxu0 %v360
  %992 = vmatpush1.msra.mxu0 %v359
  %993 = vmatprep.subr.mxu0 %v358
  %994 = vmatpush1.msra.mxu0 %v357
  %995 = vmatprep.subr.mxu0 %v356
  %996 = vmatpush1.msra.mxu0 %v355
  %997 = vmatprep.subr.mxu0 %v354
  %998 = vmatpush1.msra.mxu0 %v353
  %999 = vmatprep.subr.mxu0 %v352
  %1000 = vmatpush1.msra.mxu0 %v351
  %1001 = vmatprep.subr.mxu0 %v350
  %1002 = vmatpush1.msra.mxu0 %v349
  %1003 = vmatprep.subr.mxu0 %v348
  %1004 = vmatpush1.msra.mxu0 %v347
  %1005 = vmatprep.subr.mxu0 %v346
  %1006 = vmatpush1.msra.mxu0 %v345
  %1007 = vmatprep.subr.mxu0 %v408
  %1008 = vmatpush2.msra.mxu0 %v407
  %1009 = vmatprep.subr.mxu0 %v406
  %1010 = vmatpush2.msra.mxu0 %v405
  %1011 = vmatprep.subr.mxu0 %v404
  %1012 = vmatpush2.msra.mxu0 %v403
  %1013 = vmatprep.subr.mxu0 %v402
  %1014 = vmatpush2.msra.mxu0 %v401
  %1015 = vmatprep.subr.mxu0 %v400
  %1016 = vmatpush2.msra.mxu0 %v399
  %1017 = vmatprep.subr.mxu0 %v398
  %1018 = vmatpush2.msra.mxu0 %v397
  %1019 = vmatprep.subr.mxu0 %v396
  %1020 = vmatpush2.msra.mxu0 %v395
  %1021 = vmatprep.subr.mxu0 %v394
  %1022 = vmatpush2.msra.mxu0 %v393
  %1023 = vmatprep.subr.mxu0 %v392
  %1024 = vmatpush2.msra.mxu0 %v391
  %1025 = vmatprep.subr.mxu0 %v390
  %1026 = vmatpush2.msra.mxu0 %v389
  %1027 = vmatprep.subr.mxu0 %v388
  %1028 = vmatpush2.msra.mxu0 %v387
  %1029 = vmatprep.subr.mxu0 %v386
  %1030 = vmatpush2.msra.mxu0 %v385
  %1031 = vmatprep.subr.mxu0 %v384
  %1032 = vmatpush2.msra.mxu0 %v383
  %1033 = vmatprep.subr.mxu0 %v382
  %1034 = vmatpush2.msra.mxu0 %v381
  %1035 = vmatprep.subr.mxu0 %v380
  %1036 = vmatpush2.msra.mxu0 %v379
  %1037 = vmatprep.subr.mxu0 %v378
  %1038 = vmatpush2.msra.mxu0 %v377
  %1039 = vmatprep.mubr.f32.mxu0 %v22
  %1040 = vmatmul.mubr.f32.gmra.mxu0 %v21
  %v1041 = vpop.f32.mrf.mxu0
  %v1042 = vadd.f32 %v827, %v1041
  %v1043 = vpop.f32.mrf.mxu0
  %v1044 = vadd.f32 %v829, %v1043
  %1045 = vmatprep.mubr.f32.mxu0 %v30
  %1046 = vmatmul.mubr.f32.gmra.mxu0 %v29
  %v1047 = vpop.f32.mrf.mxu0
  %v1048 = vadd.f32 %v833, %v1047
  %v1049 = vpop.f32.mrf.mxu0
  %v1050 = vadd.f32 %v835, %v1049
  %1051 = vmatprep.mubr.f32.mxu0 %v38
  %1052 = vmatmul.mubr.f32.gmra.mxu0 %v37
  %v1053 = vpop.f32.mrf.mxu0
  %v1054 = vadd.f32 %v839, %v1053
  %v1055 = vpop.f32.mrf.mxu0
  %v1056 = vadd.f32 %v841, %v1055
  %1057 = vmatprep.mubr.f32.mxu0 %v46
  %1058 = vmatmul.mubr.f32.gmra.mxu0 %v45
  %v1059 = vpop.f32.mrf.mxu0
  %v1060 = vadd.f32 %v845, %v1059
  %v1061 = vpop.f32.mrf.mxu0
  %v1062 = vadd.f32 %v847, %v1061
  %1063 = vmatprep.mubr.f32.mxu0 %v54
  %1064 = vmatmul.mubr.f32.gmra.mxu0 %v53
  %v1065 = vpop.f32.mrf.mxu0
  %v1066 = vadd.f32 %v851, %v1065
  %v1067 = vpop.f32.mrf.mxu0
  %v1068 = vadd.f32 %v853, %v1067
  %1069 = vmatprep.mubr.f32.mxu0 %v62
  %1070 = vmatmul.mubr.f32.gmra.mxu0 %v61
  %v1071 = vpop.f32.mrf.mxu0
  %v1072 = vadd.f32 %v857, %v1071
  %v1073 = vpop.f32.mrf.mxu0
  %v1074 = vadd.f32 %v859, %v1073
  %1075 = vmatprep.mubr.f32.mxu0 %v70
  %1076 = vmatmul.mubr.f32.gmra.mxu0 %v69
  %v1077 = vpop.f32.mrf.mxu0
  %v1078 = vadd.f32 %v863, %v1077
  %v1079 = vpop.f32.mrf.mxu0
  %v1080 = vadd.f32 %v865, %v1079
  %1081 = vmatprep.mubr.f32.mxu0 %v78
  %1082 = vmatmul.mubr.f32.gmra.mxu0 %v77
  %v1083 = vpop.f32.mrf.mxu0
  %v1084 = vadd.f32 %v869, %v1083
  %v1085 = vpop.f32.mrf.mxu0
  %v1086 = vadd.f32 %v871, %v1085
  %1087 = vmatprep.mubr.f32.mxu0 %v86
  %1088 = vmatmul.mubr.f32.gmra.mxu0 %v85
  %v1089 = vpop.f32.mrf.mxu0
  %v1090 = vadd.f32 %v875, %v1089
  %v1091 = vpop.f32.mrf.mxu0
  %v1092 = vadd.f32 %v877, %v1091
  %1093 = vmatprep.mubr.f32.mxu0 %v94
  %1094 = vmatmul.mubr.f32.gmra.mxu0 %v93
  %v1095 = vpop.f32.mrf.mxu0
  %v1096 = vadd.f32 %v881, %v1095
  %v1097 = vpop.f32.mrf.mxu0
  %v1098 = vadd.f32 %v883, %v1097
  %1099 = vmatprep.mubr.f32.mxu0 %v102
  %1100 = vmatmul.mubr.f32.gmra.mxu0 %v101
  %v1101 = vpop.f32.mrf.mxu0
  %v1102 = vadd.f32 %v887, %v1101
  %v1103 = vpop.f32.mrf.mxu0
  %v1104 = vadd.f32 %v889, %v1103
  %1105 = vmatprep.mubr.f32.mxu0 %v110
  %1106 = vmatmul.mubr.f32.gmra.mxu0 %v109
  %v1107 = vpop.f32.mrf.mxu0
  %v1108 = vadd.f32 %v893, %v1107
  %v1109 = vpop.f32.mrf.mxu0
  %v1110 = vadd.f32 %v895, %v1109
  %1111 = vmatprep.mubr.f32.mxu0 %v118
  %1112 = vmatmul.mubr.f32.gmra.mxu0 %v117
  %v1113 = vpop.f32.mrf.mxu0
  %v1114 = vadd.f32 %v899, %v1113
  %v1115 = vpop.f32.mrf.mxu0
  %v1116 = vadd.f32 %v901, %v1115
  %1117 = vmatprep.mubr.f32.mxu0 %v126
  %1118 = vmatmul.mubr.f32.gmra.mxu0 %v125
  %v1119 = vpop.f32.mrf.mxu0
  %v1120 = vadd.f32 %v905, %v1119
  %v1121 = vpop.f32.mrf.mxu0
  %v1122 = vadd.f32 %v907, %v1121
  %1123 = vmatprep.mubr.f32.mxu0 %v134
  %1124 = vmatmul.mubr.f32.gmra.mxu0 %v133
  %v1125 = vpop.f32.mrf.mxu0
  %v1126 = vadd.f32 %v911, %v1125
  %v1127 = vpop.f32.mrf.mxu0
  %v1128 = vadd.f32 %v913, %v1127
  %1129 = vmatprep.mubr.f32.mxu0 %v142
  %1130 = vmatmul.mubr.f32.gmra.mxu0 %v141
  %v1131 = vpop.f32.mrf.mxu0
  %v1132 = vadd.f32 %v917, %v1131
  %v1133 = vpop.f32.mrf.mxu0
  %v1134 = vadd.f32 %v919, %v1133
  %1135 = vmatprep.mubr.f32.mxu0 %v150
  %1136 = vmatmul.mubr.f32.gmra.mxu0 %v149
  %v1137 = vpop.f32.mrf.mxu0
  %v1138 = vadd.f32 %v923, %v1137
  %v1139 = vpop.f32.mrf.mxu0
  %v1140 = vadd.f32 %v925, %v1139
  %1141 = vmatprep.mubr.f32.mxu0 %v158
  %1142 = vmatmul.mubr.f32.gmra.mxu0 %v157
  %v1143 = vpop.f32.mrf.mxu0
  %v1144 = vadd.f32 %v929, %v1143
  %v1145 = vpop.f32.mrf.mxu0
  %v1146 = vadd.f32 %v931, %v1145
  %1147 = vmatprep.mubr.f32.mxu0 %v166
  %1148 = vmatmul.mubr.f32.gmra.mxu0 %v165
  %v1149 = vpop.f32.mrf.mxu0
  %v1150 = vadd.f32 %v935, %v1149
  %v1151 = vpop.f32.mrf.mxu0
  %v1152 = vadd.f32 %v937, %v1151
  %1153 = vmatprep.mubr.f32.mxu0 %v174
  %1154 = vmatmul.mubr.f32.gmra.mxu0 %v173
  %v1155 = vpop.f32.mrf.mxu0
  %v1156 = vadd.f32 %v941, %v1155
  %v1157 = vpop.f32.mrf.mxu0
  %v1158 = vadd.f32 %v943, %v1157
  %1159 = vmatprep.mubr.f32.mxu0 %v182
  %1160 = vmatmul.mubr.f32.gmra.mxu0 %v181
  %v1161 = vpop.f32.mrf.mxu0
  %v1162 = vadd.f32 %v947, %v1161
  %v1163 = vpop.f32.mrf.mxu0
  %v1164 = vadd.f32 %v949, %v1163
  %1165 = vmatprep.mubr.f32.mxu0 %v190
  %1166 = vmatmul.mubr.f32.gmra.mxu0 %v189
  %v1167 = vpop.f32.mrf.mxu0
  %v1168 = vadd.f32 %v953, %v1167
  %v1169 = vpop.f32.mrf.mxu0
  %v1170 = vadd.f32 %v955, %v1169
  %1171 = vmatprep.mubr.f32.mxu0 %v198
  %1172 = vmatmul.mubr.f32.gmra.mxu0 %v197
  %v1173 = vpop.f32.mrf.mxu0
  %v1174 = vadd.f32 %v959, %v1173
  %v1175 = vpop.f32.mrf.mxu0
  %v1176 = vadd.f32 %v961, %v1175
  %1177 = vmatprep.mubr.f32.mxu0 %v206
  %1178 = vmatmul.mubr.f32.gmra.mxu0 %v205
  %v1179 = vpop.f32.mrf.mxu0
  %v1180 = vadd.f32 %v965, %v1179
  %v1181 = vpop.f32.mrf.mxu0
  %v1182 = vadd.f32 %v967, %v1181
  %1183 = vmatprep.mubr.f32.mxu0 %v214
  %1184 = vmatmul.mubr.f32.gmra.mxu0 %v213
  %v1185 = vpop.f32.mrf.mxu0
  %v1186 = vadd.f32 %v971, %v1185
  %v1187 = vpop.f32.mrf.mxu0
  %v1188 = vadd.f32 %v973, %v1187
  %1189 = vdwg.mxu0
  %1190 = vmatprep.subr.mxu0 %v440
  %1191 = vmatpush1.msra.mxu0 %v439
  %1192 = vmatprep.subr.mxu0 %v438
  %1193 = vmatpush1.msra.mxu0 %v437
  %1194 = vmatprep.subr.mxu0 %v436
  %1195 = vmatpush1.msra.mxu0 %v435
  %1196 = vmatprep.subr.mxu0 %v434
  %1197 = vmatpush1.msra.mxu0 %v433
  %1198 = vmatprep.subr.mxu0 %v432
  %1199 = vmatpush1.msra.mxu0 %v431
  %1200 = vmatprep.subr.mxu0 %v430
  %1201 = vmatpush1.msra.mxu0 %v429
  %1202 = vmatprep.subr.mxu0 %v428
  %1203 = vmatpush1.msra.mxu0 %v427
  %1204 = vmatprep.subr.mxu0 %v426
  %1205 = vmatpush1.msra.mxu0 %v425
  %1206 = vmatprep.subr.mxu0 %v424
  %1207 = vmatpush1.msra.mxu0 %v423
  %1208 = vmatprep.subr.mxu0 %v422
  %1209 = vmatpush1.msra.mxu0 %v421
  %1210 = vmatprep.subr.mxu0 %v420
  %1211 = vmatpush1.msra.mxu0 %v419
  %1212 = vmatprep.subr.mxu0 %v418
  %1213 = vmatpush1.msra.mxu0 %v417
  %1214 = vmatprep.subr.mxu0 %v416
  %1215 = vmatpush1.msra.mxu0 %v415
  %1216 = vmatprep.subr.mxu0 %v414
  %1217 = vmatpush1.msra.mxu0 %v413
  %1218 = vmatprep.subr.mxu0 %v412
  %1219 = vmatpush1.msra.mxu0 %v411
  %1220 = vmatprep.subr.mxu0 %v410
  %1221 = vmatpush1.msra.mxu0 %v409
  %1222 = vmatprep.subr.mxu0 0.0
  %1223 = vmatpush2.msra.mxu0 0.0
  %1224 = vmatprep.subr.mxu0 0.0
  %1225 = vmatpush2.msra.mxu0 0.0
  %1226 = vmatprep.subr.mxu0 %v468
  %1227 = vmatpush2.msra.mxu0 %v467
  %1228 = vmatprep.subr.mxu0 %v466
  %1229 = vmatpush2.msra.mxu0 %v465
  %1230 = vmatprep.subr.mxu0 %v464
  %1231 = vmatpush2.msra.mxu0 %v463
  %1232 = vmatprep.subr.mxu0 %v462
  %1233 = vmatpush2.msra.mxu0 %v461
  %1234 = vmatprep.subr.mxu0 %v460
  %1235 = vmatpush2.msra.mxu0 %v459
  %1236 = vmatprep.subr.mxu0 %v458
  %1237 = vmatpush2.msra.mxu0 %v457
  %1238 = vmatprep.subr.mxu0 %v456
  %1239 = vmatpush2.msra.mxu0 %v455
  %1240 = vmatprep.subr.mxu0 %v454
  %1241 = vmatpush2.msra.mxu0 %v453
  %1242 = vmatprep.subr.mxu0 %v452
  %1243 = vmatpush2.msra.mxu0 %v451
  %1244 = vmatprep.subr.mxu0 %v450
  %1245 = vmatpush2.msra.mxu0 %v449
  %1246 = vmatprep.subr.mxu0 %v448
  %1247 = vmatpush2.msra.mxu0 %v447
  %1248 = vmatprep.subr.mxu0 %v446
  %1249 = vmatpush2.msra.mxu0 %v445
  %1250 = vmatprep.subr.mxu0 %v444
  %1251 = vmatpush2.msra.mxu0 %v443
  %1252 = vmatprep.subr.mxu0 %v442
  %1253 = vmatpush2.msra.mxu0 %v441
  %1254 = vmatprep.mubr.f32.mxu0 %v471
  %1255 = vmatmul.mubr.f32.gmra.mxu0 %v23
  %v1256 = vpop.f32.mrf.mxu0
  %v1257 = vadd.f32 %v1042, %v1256
  %v1258 = vpop.f32.mrf.mxu0
  %v1259 = vadd.f32 %v1044, %v1258
  %1260 = vmatprep.mubr.f32.mxu0 %v474
  %1261 = vmatmul.mubr.f32.gmra.mxu0 %v31
  %v1262 = vpop.f32.mrf.mxu0
  %v1263 = vadd.f32 %v1048, %v1262
  %v1264 = vpop.f32.mrf.mxu0
  %v1265 = vadd.f32 %v1050, %v1264
  %1266 = vmatprep.mubr.f32.mxu0 %v477
  %1267 = vmatmul.mubr.f32.gmra.mxu0 %v39
  %v1268 = vpop.f32.mrf.mxu0
  %v1269 = vadd.f32 %v1054, %v1268
  %v1270 = vpop.f32.mrf.mxu0
  %v1271 = vadd.f32 %v1056, %v1270
  %1272 = vmatprep.mubr.f32.mxu0 %v480
  %1273 = vmatmul.mubr.f32.gmra.mxu0 %v47
  %v1274 = vpop.f32.mrf.mxu0
  %v1275 = vadd.f32 %v1060, %v1274
  %v1276 = vpop.f32.mrf.mxu0
  %v1277 = vadd.f32 %v1062, %v1276
  %1278 = vmatprep.mubr.f32.mxu0 %v483
  %1279 = vmatmul.mubr.f32.gmra.mxu0 %v55
  %v1280 = vpop.f32.mrf.mxu0
  %v1281 = vadd.f32 %v1066, %v1280
  %v1282 = vpop.f32.mrf.mxu0
  %v1283 = vadd.f32 %v1068, %v1282
  %1284 = vmatprep.mubr.f32.mxu0 %v486
  %1285 = vmatmul.mubr.f32.gmra.mxu0 %v63
  %v1286 = vpop.f32.mrf.mxu0
  %v1287 = vadd.f32 %v1072, %v1286
  %v1288 = vpop.f32.mrf.mxu0
  %v1289 = vadd.f32 %v1074, %v1288
  %1290 = vmatprep.mubr.f32.mxu0 %v489
  %1291 = vmatmul.mubr.f32.gmra.mxu0 %v71
  %v1292 = vpop.f32.mrf.mxu0
  %v1293 = vadd.f32 %v1078, %v1292
  %v1294 = vpop.f32.mrf.mxu0
  %v1295 = vadd.f32 %v1080, %v1294
  %1296 = vmatprep.mubr.f32.mxu0 %v492
  %1297 = vmatmul.mubr.f32.gmra.mxu0 %v79
  %v1298 = vpop.f32.mrf.mxu0
  %v1299 = vadd.f32 %v1084, %v1298
  %v1300 = vpop.f32.mrf.mxu0
  %v1301 = vadd.f32 %v1086, %v1300
  %1302 = vmatprep.mubr.f32.mxu0 %v495
  %1303 = vmatmul.mubr.f32.gmra.mxu0 %v87
  %v1304 = vpop.f32.mrf.mxu0
  %v1305 = vadd.f32 %v1090, %v1304
  %v1306 = vpop.f32.mrf.mxu0
  %v1307 = vadd.f32 %v1092, %v1306
  %1308 = vmatprep.mubr.f32.mxu0 %v498
  %1309 = vmatmul.mubr.f32.gmra.mxu0 %v95
  %v1310 = vpop.f32.mrf.mxu0
  %v1311 = vadd.f32 %v1096, %v1310
  %v1312 = vpop.f32.mrf.mxu0
  %v1313 = vadd.f32 %v1098, %v1312
  %1314 = vmatprep.mubr.f32.mxu0 %v501
  %1315 = vmatmul.mubr.f32.gmra.mxu0 %v103
  %v1316 = vpop.f32.mrf.mxu0
  %v1317 = vadd.f32 %v1102, %v1316
  %v1318 = vpop.f32.mrf.mxu0
  %v1319 = vadd.f32 %v1104, %v1318
  %1320 = vmatprep.mubr.f32.mxu0 %v504
  %1321 = vmatmul.mubr.f32.gmra.mxu0 %v111
  %v1322 = vpop.f32.mrf.mxu0
  %v1323 = vadd.f32 %v1108, %v1322
  %v1324 = vpop.f32.mrf.mxu0
  %v1325 = vadd.f32 %v1110, %v1324
  %1326 = vmatprep.mubr.f32.mxu0 %v507
  %1327 = vmatmul.mubr.f32.gmra.mxu0 %v119
  %v1328 = vpop.f32.mrf.mxu0
  %v1329 = vadd.f32 %v1114, %v1328
  %v1330 = vpop.f32.mrf.mxu0
  %v1331 = vadd.f32 %v1116, %v1330
  %1332 = vmatprep.mubr.f32.mxu0 %v510
  %1333 = vmatmul.mubr.f32.gmra.mxu0 %v127
  %v1334 = vpop.f32.mrf.mxu0
  %v1335 = vadd.f32 %v1120, %v1334
  %v1336 = vpop.f32.mrf.mxu0
  %v1337 = vadd.f32 %v1122, %v1336
  %1338 = vmatprep.mubr.f32.mxu0 %v513
  %1339 = vmatmul.mubr.f32.gmra.mxu0 %v135
  %v1340 = vpop.f32.mrf.mxu0
  %v1341 = vadd.f32 %v1126, %v1340
  %v1342 = vpop.f32.mrf.mxu0
  %v1343 = vadd.f32 %v1128, %v1342
  %1344 = vmatprep.mubr.f32.mxu0 %v516
  %1345 = vmatmul.mubr.f32.gmra.mxu0 %v143
  %v1346 = vpop.f32.mrf.mxu0
  %v1347 = vadd.f32 %v1132, %v1346
  %v1348 = vpop.f32.mrf.mxu0
  %v1349 = vadd.f32 %v1134, %v1348
  %1350 = vmatprep.mubr.f32.mxu0 %v519
  %1351 = vmatmul.mubr.f32.gmra.mxu0 %v151
  %v1352 = vpop.f32.mrf.mxu0
  %v1353 = vadd.f32 %v1138, %v1352
  %v1354 = vpop.f32.mrf.mxu0
  %v1355 = vadd.f32 %v1140, %v1354
  %1356 = vmatprep.mubr.f32.mxu0 %v522
  %1357 = vmatmul.mubr.f32.gmra.mxu0 %v159
  %v1358 = vpop.f32.mrf.mxu0
  %v1359 = vadd.f32 %v1144, %v1358
  %v1360 = vpop.f32.mrf.mxu0
  %v1361 = vadd.f32 %v1146, %v1360
  %1362 = vmatprep.mubr.f32.mxu0 %v525
  %1363 = vmatmul.mubr.f32.gmra.mxu0 %v167
  %v1364 = vpop.f32.mrf.mxu0
  %v1365 = vadd.f32 %v1150, %v1364
  %v1366 = vpop.f32.mrf.mxu0
  %v1367 = vadd.f32 %v1152, %v1366
  %1368 = vmatprep.mubr.f32.mxu0 %v528
  %1369 = vmatmul.mubr.f32.gmra.mxu0 %v175
  %v1370 = vpop.f32.mrf.mxu0
  %v1371 = vadd.f32 %v1156, %v1370
  %v1372 = vpop.f32.mrf.mxu0
  %v1373 = vadd.f32 %v1158, %v1372
  %1374 = vmatprep.mubr.f32.mxu0 %v531
  %1375 = vmatmul.mubr.f32.gmra.mxu0 %v183
  %v1376 = vpop.f32.mrf.mxu0
  %v1377 = vadd.f32 %v1162, %v1376
  %v1378 = vpop.f32.mrf.mxu0
  %v1379 = vadd.f32 %v1164, %v1378
  %1380 = vmatprep.mubr.f32.mxu0 %v534
  %1381 = vmatmul.mubr.f32.gmra.mxu0 %v191
  %v1382 = vpop.f32.mrf.mxu0
  %v1383 = vadd.f32 %v1168, %v1382
  %v1384 = vpop.f32.mrf.mxu0
  %v1385 = vadd.f32 %v1170, %v1384
  %1386 = vmatprep.mubr.f32.mxu0 %v537
  %1387 = vmatmul.mubr.f32.gmra.mxu0 %v199
  %v1388 = vpop.f32.mrf.mxu0
  %v1389 = vadd.f32 %v1174, %v1388
  %v1390 = vpop.f32.mrf.mxu0
  %v1391 = vadd.f32 %v1176, %v1390
  %1392 = vmatprep.mubr.f32.mxu0 %v540
  %1393 = vmatmul.mubr.f32.gmra.mxu0 %v207
  %v1394 = vpop.f32.mrf.mxu0
  %v1395 = vadd.f32 %v1180, %v1394
  %v1396 = vpop.f32.mrf.mxu0
  %v1397 = vadd.f32 %v1182, %v1396
  %1398 = vmatprep.mubr.f32.mxu0 %v543
  %1399 = vmatmul.mubr.f32.gmra.mxu0 %v215
  %v1400 = vpop.f32.mrf.mxu0
  %v1401 = vadd.f32 %v1186, %v1400
  %v1402 = vpop.f32.mrf.mxu0
  %v1403 = vadd.f32 %v1188, %v1402
  %1404 = vdwg.mxu0
  %v1405 = vld [vmem:[%s2] sm:$0x3]
  %v1407 = vlaneseq
  %v1408 = vshrl.u32 %v1407, 7
  %v1409 = vsub.s32 0, %v1408
  %v1410 = vrot.slane %v1405, %v1409
  %v1411 = vlaneseq
  %v1412 = vshrl.u32 %v1411, 7
  %v1413 = vsub.s32 1, %v1412
  %v1414 = vrot.slane %v1405, %v1413
  %v1417 = vmul.f32 %v1257, %v1410
  %v1418 = vmul.f32 %v1259, %v1414
  %v1419 = vmul.f32 %v1263, %v1410
  %v1420 = vmul.f32 %v1265, %v1414
  %v1421 = vmul.f32 %v1269, %v1410
  %v1422 = vmul.f32 %v1271, %v1414
  %v1423 = vmul.f32 %v1275, %v1410
  %v1424 = vmul.f32 %v1277, %v1414
  %v1425 = vmul.f32 %v1281, %v1410
  %v1426 = vmul.f32 %v1283, %v1414
  %v1427 = vmul.f32 %v1287, %v1410
  %v1428 = vmul.f32 %v1289, %v1414
  %v1429 = vmul.f32 %v1293, %v1410
  %v1430 = vmul.f32 %v1295, %v1414
  %v1431 = vmul.f32 %v1299, %v1410
  %v1432 = vmul.f32 %v1301, %v1414
  %v1433 = vmul.f32 %v1305, %v1410
  %v1434 = vmul.f32 %v1307, %v1414
  %v1435 = vmul.f32 %v1311, %v1410
  %v1436 = vmul.f32 %v1313, %v1414
  %v1437 = vmul.f32 %v1317, %v1410
  %v1438 = vmul.f32 %v1319, %v1414
  %v1439 = vmul.f32 %v1323, %v1410
  %v1440 = vmul.f32 %v1325, %v1414
  %v1441 = vmul.f32 %v1329, %v1410
  %v1442 = vmul.f32 %v1331, %v1414
  %v1443 = vmul.f32 %v1335, %v1410
  %v1444 = vmul.f32 %v1337, %v1414
  %v1445 = vmul.f32 %v1341, %v1410
  %v1446 = vmul.f32 %v1343, %v1414
  %v1447 = vmul.f32 %v1347, %v1410
  %v1448 = vmul.f32 %v1349, %v1414
  %v1449 = vmul.f32 %v1353, %v1410
  %v1450 = vmul.f32 %v1355, %v1414
  %v1451 = vmul.f32 %v1359, %v1410
  %v1452 = vmul.f32 %v1361, %v1414
  %v1453 = vmul.f32 %v1365, %v1410
  %v1454 = vmul.f32 %v1367, %v1414
  %v1455 = vmul.f32 %v1371, %v1410
  %v1456 = vmul.f32 %v1373, %v1414
  %v1457 = vmul.f32 %v1377, %v1410
  %v1458 = vmul.f32 %v1379, %v1414
  %v1459 = vmul.f32 %v1383, %v1410
  %v1460 = vmul.f32 %v1385, %v1414
  %v1461 = vmul.f32 %v1389, %v1410
  %v1462 = vmul.f32 %v1391, %v1414
  %v1463 = vmul.f32 %v1395, %v1410
  %v1464 = vmul.f32 %v1397, %v1414
  %v1465 = vmul.f32 %v1401, %v1410
  %v1466 = vmul.f32 %v1403, %v1414
  %v1467 = vld [vmem:[%s3] sm:$0x3]
  %v1469 = vlaneseq
  %v1470 = vshrl.u32 %v1469, 7
  %v1471 = vsub.s32 0, %v1470
  %v1472 = vrot.slane %v1467, %v1471
  %v1473 = vlaneseq
  %v1474 = vshrl.u32 %v1473, 7
  %v1475 = vsub.s32 1, %v1474
  %v1476 = vrot.slane %v1467, %v1475
  %v1479 = vadd.f32 %v1417, %v1472
  %v1480 = vadd.f32 %v1418, %v1476
  %v1481 = vadd.f32 %v1419, %v1472
  %v1482 = vadd.f32 %v1420, %v1476
  %v1483 = vadd.f32 %v1421, %v1472
  %v1484 = vadd.f32 %v1422, %v1476
  %v1485 = vadd.f32 %v1423, %v1472
  %v1486 = vadd.f32 %v1424, %v1476
  %v1487 = vadd.f32 %v1425, %v1472
  %v1488 = vadd.f32 %v1426, %v1476
  %v1489 = vadd.f32 %v1427, %v1472
  %v1490 = vadd.f32 %v1428, %v1476
  %v1491 = vadd.f32 %v1429, %v1472
  %v1492 = vadd.f32 %v1430, %v1476
  %v1493 = vadd.f32 %v1431, %v1472
  %v1494 = vadd.f32 %v1432, %v1476
  %v1495 = vadd.f32 %v1433, %v1472
  %v1496 = vadd.f32 %v1434, %v1476
  %v1497 = vadd.f32 %v1435, %v1472
  %v1498 = vadd.f32 %v1436, %v1476
  %v1499 = vadd.f32 %v1437, %v1472
  %v1500 = vadd.f32 %v1438, %v1476
  %v1501 = vadd.f32 %v1439, %v1472
  %v1502 = vadd.f32 %v1440, %v1476
  %v1503 = vadd.f32 %v1441, %v1472
  %v1504 = vadd.f32 %v1442, %v1476
  %v1505 = vadd.f32 %v1443, %v1472
  %v1506 = vadd.f32 %v1444, %v1476
  %v1507 = vadd.f32 %v1445, %v1472
  %v1508 = vadd.f32 %v1446, %v1476
  %v1509 = vadd.f32 %v1447, %v1472
  %v1510 = vadd.f32 %v1448, %v1476
  %v1511 = vadd.f32 %v1449, %v1472
  %v1512 = vadd.f32 %v1450, %v1476
  %v1513 = vadd.f32 %v1451, %v1472
  %v1514 = vadd.f32 %v1452, %v1476
  %v1515 = vadd.f32 %v1453, %v1472
  %v1516 = vadd.f32 %v1454, %v1476
  %v1517 = vadd.f32 %v1455, %v1472
  %v1518 = vadd.f32 %v1456, %v1476
  %v1519 = vadd.f32 %v1457, %v1472
  %v1520 = vadd.f32 %v1458, %v1476
  %v1521 = vadd.f32 %v1459, %v1472
  %v1522 = vadd.f32 %v1460, %v1476
  %v1523 = vadd.f32 %v1461, %v1472
  %v1524 = vadd.f32 %v1462, %v1476
  %v1525 = vadd.f32 %v1463, %v1472
  %v1526 = vadd.f32 %v1464, %v1476
  %v1527 = vadd.f32 %v1465, %v1472
  %v1528 = vadd.f32 %v1466, %v1476
  %v1529 = vmax.f32 %v1479, 0.0
  %v1530 = vmax.f32 %v1480, 0.0
  %v1531 = vmax.f32 %v1481, 0.0
  %v1532 = vmax.f32 %v1482, 0.0
  %v1533 = vmax.f32 %v1483, 0.0
  %v1534 = vmax.f32 %v1484, 0.0
  %v1535 = vmax.f32 %v1485, 0.0
  %v1536 = vmax.f32 %v1486, 0.0
  %v1537 = vmax.f32 %v1487, 0.0
  %v1538 = vmax.f32 %v1488, 0.0
  %v1539 = vmax.f32 %v1489, 0.0
  %v1540 = vmax.f32 %v1490, 0.0
  %v1541 = vmax.f32 %v1491, 0.0
  %v1542 = vmax.f32 %v1492, 0.0
  %v1543 = vmax.f32 %v1493, 0.0
  %v1544 = vmax.f32 %v1494, 0.0
  %v1545 = vmax.f32 %v1495, 0.0
  %v1546 = vmax.f32 %v1496, 0.0
  %v1547 = vmax.f32 %v1497, 0.0
  %v1548 = vmax.f32 %v1498, 0.0
  %v1549 = vmax.f32 %v1499, 0.0
  %v1550 = vmax.f32 %v1500, 0.0
  %v1551 = vmax.f32 %v1501, 0.0
  %v1552 = vmax.f32 %v1502, 0.0
  %v1553 = vmax.f32 %v1503, 0.0
  %v1554 = vmax.f32 %v1504, 0.0
  %v1555 = vmax.f32 %v1505, 0.0
  %v1556 = vmax.f32 %v1506, 0.0
  %v1557 = vmax.f32 %v1507, 0.0
  %v1558 = vmax.f32 %v1508, 0.0
  %v1559 = vmax.f32 %v1509, 0.0
  %v1560 = vmax.f32 %v1510, 0.0
  %v1561 = vmax.f32 %v1511, 0.0
  %v1562 = vmax.f32 %v1512, 0.0
  %v1563 = vmax.f32 %v1513, 0.0
  %v1564 = vmax.f32 %v1514, 0.0
  %v1565 = vmax.f32 %v1515, 0.0
  %v1566 = vmax.f32 %v1516, 0.0
  %v1567 = vmax.f32 %v1517, 0.0
  %v1568 = vmax.f32 %v1518, 0.0
  %v1569 = vmax.f32 %v1519, 0.0
  %v1570 = vmax.f32 %v1520, 0.0
  %v1571 = vmax.f32 %v1521, 0.0
  %v1572 = vmax.f32 %v1522, 0.0
  %v1573 = vmax.f32 %v1523, 0.0
  %v1574 = vmax.f32 %v1524, 0.0
  %v1575 = vmax.f32 %v1525, 0.0
  %v1576 = vmax.f32 %v1526, 0.0
  %v1577 = vmax.f32 %v1527, 0.0
  %v1578 = vmax.f32 %v1528, 0.0
  %1579 = vst [vmem:[%s4] sm:$0xff] %v1529
  %1580 = vst [vmem:[%s4 + $0x8] sm:$0xff] %v1530
  %1581 = vst [vmem:[%s4 + $0x10] sm:$0xff] %v1531
  %1582 = vst [vmem:[%s4 + $0x18] sm:$0xff] %v1532
  %1583 = vst [vmem:[%s4 + $0x20] sm:$0xff] %v1533
  %1584 = vst [vmem:[%s4 + $0x28] sm:$0xff] %v1534
  %1585 = vst [vmem:[%s4 + $0x30] sm:$0xff] %v1535
  %1586 = vst [vmem:[%s4 + $0x38] sm:$0xff] %v1536
  %1587 = vst [vmem:[%s4 + $0x40] sm:$0xff] %v1537
  %1588 = vst [vmem:[%s4 + $0x48] sm:$0xff] %v1538
  %1589 = vst [vmem:[%s4 + $0x50] sm:$0xff] %v1539
  %1590 = vst [vmem:[%s4 + $0x58] sm:$0xff] %v1540
  %1591 = vst [vmem:[%s4 + $0x60] sm:$0xff] %v1541
  %1592 = vst [vmem:[%s4 + $0x68] sm:$0xff] %v1542
  %1593 = vst [vmem:[%s4 + $0x70] sm:$0xff] %v1543
  %1594 = vst [vmem:[%s4 + $0x78] sm:$0xff] %v1544
  %1595 = vst [vmem:[%s4 + $0x80] sm:$0xff] %v1545
  %1596 = vst [vmem:[%s4 + $0x88] sm:$0xff] %v1546
  %1597 = vst [vmem:[%s4 + $0x90] sm:$0xff] %v1547
  %1598 = vst [vmem:[%s4 + $0x98] sm:$0xff] %v1548
  %1599 = vst [vmem:[%s4 + $0xa0] sm:$0xff] %v1549
  %1600 = vst [vmem:[%s4 + $0xa8] sm:$0xff] %v1550
  %1601 = vst [vmem:[%s4 + $0xb0] sm:$0xff] %v1551
  %1602 = vst [vmem:[%s4 + $0xb8] sm:$0xff] %v1552
  %1603 = vst [vmem:[%s4 + $0xc0] sm:$0xff] %v1553
  %1604 = vst [vmem:[%s4 + $0xc8] sm:$0xff] %v1554
  %1605 = vst [vmem:[%s4 + $0xd0] sm:$0xff] %v1555
  %1606 = vst [vmem:[%s4 + $0xd8] sm:$0xff] %v1556
  %1607 = vst [vmem:[%s4 + $0xe0] sm:$0xff] %v1557
  %1608 = vst [vmem:[%s4 + $0xe8] sm:$0xff] %v1558
  %1609 = vst [vmem:[%s4 + $0xf0] sm:$0xff] %v1559
  %1610 = vst [vmem:[%s4 + $0xf8] sm:$0xff] %v1560
  %1611 = vst [vmem:[%s4 + $0x100] sm:$0xff] %v1561
  %1612 = vst [vmem:[%s4 + $0x108] sm:$0xff] %v1562
  %1613 = vst [vmem:[%s4 + $0x110] sm:$0xff] %v1563
  %1614 = vst [vmem:[%s4 + $0x118] sm:$0xff] %v1564
  %1615 = vst [vmem:[%s4 + $0x120] sm:$0xff] %v1565
  %1616 = vst [vmem:[%s4 + $0x128] sm:$0xff] %v1566
  %1617 = vst [vmem:[%s4 + $0x130] sm:$0xff] %v1567
  %1618 = vst [vmem:[%s4 + $0x138] sm:$0xff] %v1568
  %1619 = vst [vmem:[%s4 + $0x140] sm:$0xff] %v1569
  %1620 = vst [vmem:[%s4 + $0x148] sm:$0xff] %v1570
  %1621 = vst [vmem:[%s4 + $0x150] sm:$0xff] %v1571
  %1622 = vst [vmem:[%s4 + $0x158] sm:$0xff] %v1572
  %1623 = vst [vmem:[%s4 + $0x160] sm:$0xff] %v1573
  %1624 = vst [vmem:[%s4 + $0x168] sm:$0xff] %v1574
  %1625 = vst [vmem:[%s4 + $0x170] sm:$0xff] %v1575
  %1626 = vst [vmem:[%s4 + $0x178] sm:$0xff] %v1576
  %1627 = vst [vmem:[%s4 + $0x180] sm:$0xff] %v1577
  %1628 = vst [vmem:[%s4 + $0x188] sm:$0xff] %v1578
  // Predicated region
  $region18: #{mrannet_forward.4} parent=0 // pred_check
    _
  $region19: #{mrannet_forward.4} parent=0 // pred_check_branch
    %1630 = sbr.rel (0) target = $region21
  $region20: #{mrannet_forward.4} parent=0 // pred_region
    _
  $region21: #{mrannet_forward.4} parent=0 // pred_fallthru
    _
  // Predicated region
  $region22: #{mrannet_forward.4} parent=0 // pred_check
    _
  $region23: #{mrannet_forward.4} parent=0 // pred_check_branch
    %1632 = sbr.rel (0) target = $region25
  $region24: #{mrannet_forward.4} parent=0 // pred_region
    _
  $region25: #{mrannet_forward.4} parent=0 // pred_fallthru
    _

// kernel: mrannet_forward.5
$region0: #{mrannet_forward.5}
  #allocation0 [shape = 'u32[]', space=smem, size = 0x4, offset = 0x4, fixed_abs, tag = 'smem constant byte address 0x4 - core index']
  #allocation1 [shape = 'u32[144,128]{1,0:T(1,128)}', space=vmem, size = 0x12000, scoped, tag = 'internal scratch']
  %s0 = inlined_call_operand.vmem [shape: f32[200,864], index: 0, kind: input, shape index: {}]
  %s1 = inlined_call_operand.vmem [shape: f32[864,192], index: 1, kind: input, shape index: {}]
  %s2 = inlined_call_operand.vmem [shape: f32[1,192], index: 2, kind: input, shape index: {}]
  %s3 = inlined_call_operand.vmem [shape: f32[1,192], index: 3, kind: input, shape index: {}]
  %s4 = inlined_call_operand.vmem [shape: f32[200,64], index: 4, kind: input, shape index: {}]
  %s5 = inlined_call_operand.vmem [shape: f32[200,128], index: 5, kind: input, shape index: {}]
  %s6 = inlined_call_operand.vmem [shape: f32[200,64], index: 6, kind: input, shape index: {}]
  %s7 = inlined_call_operand.vmem [shape: f32[4,200], index: 7, kind: input, shape index: {}]
  %s8 = inlined_call_operand.vmem [shape: f32[448,256], index: 8, kind: input, shape index: {}]
  %s9 = inlined_call_operand.vmem [shape: f32[1,256], index: 9, kind: input, shape index: {}]
  %s10 = inlined_call_operand.vmem [shape: f32[256,128], index: 10, kind: input, shape index: {}]
  %s11 = inlined_call_operand.vmem [shape: f32[1,128], index: 11, kind: input, shape index: {}]
  %s12 = inlined_call_operand.vmem [shape: f32[4,128], index: 12, kind: output, shape index: {}]
  %s13 = sld [smem:[#allocation0]]
  $region58: #{mrannet_forward.5} parent=0
    _
  %s15 = ssub.s32 1, %s13
  %s16 = scalar_select 0, %s15, %s13
  // Predicated region
  $region2: #{mrannet_forward.5} parent=0 // pred_check
    _
  $region3: #{mrannet_forward.5} parent=0 // pred_check_branch
    %18 = sbr.rel (0) target = $region5
  $region4: #{mrannet_forward.5} parent=0 // pred_region
    _
  $region5: #{mrannet_forward.5} parent=0 // pred_fallthru
    _
  // Predicated region
  $region6: #{mrannet_forward.5} parent=0 // pred_check
    _
  $region7: #{mrannet_forward.5} parent=0 // pred_check_branch
    %20 = sbr.rel (0) target = $region9
  $region8: #{mrannet_forward.5} parent=0 // pred_region
    _
  $region9: #{mrannet_forward.5} parent=0 // pred_fallthru
    _
  // Predicated region
  $region10: #{mrannet_forward.5} parent=0 // pred_check
    _
  $region11: #{mrannet_forward.5} parent=0 // pred_check_branch
    %22 = sbr.rel (0) target = $region13
  $region12: #{mrannet_forward.5} parent=0 // pred_region
    _
  $region13: #{mrannet_forward.5} parent=0 // pred_fallthru
    _
  // Predicated region
  $region14: #{mrannet_forward.5} parent=0 // pred_check
    _
  $region15: #{mrannet_forward.5} parent=0 // pred_check_branch
    %24 = sbr.rel (0) target = $region17
  $region16: #{mrannet_forward.5} parent=0 // pred_region
    _
  $region17: #{mrannet_forward.5} parent=0 // pred_fallthru
    _
  // Predicated region
  $region18: #{mrannet_forward.5} parent=0 // pred_check
    _
  $region19: #{mrannet_forward.5} parent=0 // pred_check_branch
    %26 = sbr.rel (0) target = $region21
  $region20: #{mrannet_forward.5} parent=0 // pred_region
    _
  $region21: #{mrannet_forward.5} parent=0 // pred_fallthru
    _
  // Predicated region
  $region22: #{mrannet_forward.5} parent=0 // pred_check
    _
  $region23: #{mrannet_forward.5} parent=0 // pred_check_branch
    %28 = sbr.rel (0) target = $region25
  $region24: #{mrannet_forward.5} parent=0 // pred_region
    _
  $region25: #{mrannet_forward.5} parent=0 // pred_fallthru
    _
  // Predicated region
  $region26: #{mrannet_forward.5} parent=0 // pred_check
    _
  $region27: #{mrannet_forward.5} parent=0 // pred_check_branch
    %30 = sbr.rel (0) target = $region29
  $region28: #{mrannet_forward.5} parent=0 // pred_region
    _
  $region29: #{mrannet_forward.5} parent=0 // pred_fallthru
    _
  // Predicated region
  $region30: #{mrannet_forward.5} parent=0 // pred_check
    _
  $region31: #{mrannet_forward.5} parent=0 // pred_check_branch
    %32 = sbr.rel (0) target = $region33
  $region32: #{mrannet_forward.5} parent=0 // pred_region
    _
  $region33: #{mrannet_forward.5} parent=0 // pred_fallthru
    _
  // Predicated region
  $region34: #{mrannet_forward.5} parent=0 // pred_check
    _
  $region35: #{mrannet_forward.5} parent=0 // pred_check_branch
    %34 = sbr.rel (0) target = $region37
  $region36: #{mrannet_forward.5} parent=0 // pred_region
    _
  $region37: #{mrannet_forward.5} parent=0 // pred_fallthru
    _
  // Predicated region
  $region38: #{mrannet_forward.5} parent=0 // pred_check
    _
  $region39: #{mrannet_forward.5} parent=0 // pred_check_branch
    %36 = sbr.rel (0) target = $region41
  $region40: #{mrannet_forward.5} parent=0 // pred_region
    _
  $region41: #{mrannet_forward.5} parent=0 // pred_fallthru
    _
  // Predicated region
  $region42: #{mrannet_forward.5} parent=0 // pred_check
    _
  $region43: #{mrannet_forward.5} parent=0 // pred_check_branch
    %38 = sbr.rel (0) target = $region45
  $region44: #{mrannet_forward.5} parent=0 // pred_region
    _
  $region45: #{mrannet_forward.5} parent=0 // pred_fallthru
    _
  // Predicated region
  $region46: #{mrannet_forward.5} parent=0 // pred_check
    _
  $region47: #{mrannet_forward.5} parent=0 // pred_check_branch
    %40 = sbr.rel (0) target = $region49
  $region48: #{mrannet_forward.5} parent=0 // pred_region
    _
  $region49: #{mrannet_forward.5} parent=0 // pred_fallthru
    _
  %v41 = vld [vmem:[%s0] sm:$0xff]
  %v42 = vld [vmem:[%s0 + $0x8] sm:$0xff]
  %v43 = vld [vmem:[%s0 + $0x10] sm:$0xff]
  %v44 = vld [vmem:[%s0 + $0x18] sm:$0xff]
  %v45 = vld [vmem:[%s0 + $0x20] sm:$0xff]
  %v46 = vld [vmem:[%s0 + $0x28] sm:$0xff]
  %v47 = vld [vmem:[%s0 + $0x30] sm:$0xff]
  %v48 = vld [vmem:[%s0 + $0x38] sm:$0xff]
  %v49 = vld [vmem:[%s0 + $0x40] sm:$0xff]
  %v50 = vld [vmem:[%s0 + $0x48] sm:$0xff]
  %v51 = vld [vmem:[%s0 + $0x50] sm:$0xff]
  %v52 = vld [vmem:[%s0 + $0x58] sm:$0xff]
  %v53 = vld [vmem:[%s0 + $0x60] sm:$0xff]
  %v54 = vld [vmem:[%s0 + $0x68] sm:$0xff]
  %v55 = vld [vmem:[%s0 + $0x70] sm:$0xff]
  %v56 = vld [vmem:[%s0 + $0x78] sm:$0xff]
  %v57 = vld [vmem:[%s0 + $0x80] sm:$0xff]
  %v58 = vld [vmem:[%s0 + $0x88] sm:$0xff]
  %v59 = vld [vmem:[%s0 + $0x90] sm:$0xff]
  %v60 = vld [vmem:[%s0 + $0x98] sm:$0xff]
  %v61 = vld [vmem:[%s0 + $0xa0] sm:$0xff]
  %v62 = vld [vmem:[%s0 + $0xa8] sm:$0xff]
  %v63 = vld [vmem:[%s0 + $0xb0] sm:$0xff]
  %v64 = vld [vmem:[%s0 + $0xb8] sm:$0xff]
  %v65 = vld [vmem:[%s0 + $0xc0] sm:$0xff]
  %v66 = vld [vmem:[%s0 + $0xc8] sm:$0xff]
  %v67 = vld [vmem:[%s0 + $0xd0] sm:$0xff]
  %v68 = vld [vmem:[%s0 + $0xd8] sm:$0xff]
  %v69 = vld [vmem:[%s0 + $0xe0] sm:$0xff]
  %v70 = vld [vmem:[%s0 + $0xe8] sm:$0xff]
  %v71 = vld [vmem:[%s0 + $0xf0] sm:$0xff]
  %v72 = vld [vmem:[%s0 + $0xf8] sm:$0xff]
  %v73 = vld [vmem:[%s0 + $0x100] sm:$0xff]
  %v74 = vld [vmem:[%s0 + $0x108] sm:$0xff]
  %v75 = vld [vmem:[%s0 + $0x110] sm:$0xff]
  %v76 = vld [vmem:[%s0 + $0x118] sm:$0xff]
  %v77 = vld [vmem:[%s0 + $0x120] sm:$0xff]
  %v78 = vld [vmem:[%s0 + $0x128] sm:$0xff]
  %v79 = vld [vmem:[%s0 + $0x130] sm:$0xff]
  %v80 = vld [vmem:[%s0 + $0x138] sm:$0xff]
  %v81 = vld [vmem:[%s0 + $0x140] sm:$0xff]
  %v82 = vld [vmem:[%s0 + $0x148] sm:$0xff]
  %v83 = vld [vmem:[%s0 + $0x150] sm:$0xff]
  %v84 = vld [vmem:[%s0 + $0x158] sm:$0xff]
  %v85 = vld [vmem:[%s0 + $0x160] sm:$0xff]
  %v86 = vld [vmem:[%s0 + $0x168] sm:$0xff]
  %v87 = vld [vmem:[%s0 + $0x170] sm:$0xff]
  %v88 = vld [vmem:[%s0 + $0x178] sm:$0xff]
  %v89 = vld [vmem:[%s0 + $0x180] sm:$0xff]
  %v90 = vld [vmem:[%s0 + $0x188] sm:$0xff]
  %v91 = vld [vmem:[%s0 + $0x190] sm:$0xff]
  %v92 = vld [vmem:[%s0 + $0x198] sm:$0xff]
  %v93 = vld [vmem:[%s0 + $0x1a0] sm:$0xff]
  %v94 = vld [vmem:[%s0 + $0x1a8] sm:$0xff]
  %v95 = vld [vmem:[%s0 + $0x1b0] sm:$0xff]
  %v96 = vld [vmem:[%s0 + $0x1b8] sm:$0xff]
  %v97 = vld [vmem:[%s0 + $0x1c0] sm:$0xff]
  %v98 = vld [vmem:[%s0 + $0x1c8] sm:$0xff]
  %v99 = vld [vmem:[%s0 + $0x1d0] sm:$0xff]
  %v100 = vld [vmem:[%s0 + $0x1d8] sm:$0xff]
  %v101 = vld [vmem:[%s0 + $0x1e0] sm:$0xff]
  %v102 = vld [vmem:[%s0 + $0x1e8] sm:$0xff]
  %v103 = vld [vmem:[%s0 + $0x1f0] sm:$0xff]
  %v104 = vld [vmem:[%s0 + $0x1f8] sm:$0xff]
  %v105 = vld [vmem:[%s0 + $0x200] sm:$0xff]
  %v106 = vld [vmem:[%s0 + $0x208] sm:$0xff]
  %v107 = vld [vmem:[%s0 + $0x210] sm:$0xff]
  %v108 = vld [vmem:[%s0 + $0x218] sm:$0xff]
  %v109 = vld [vmem:[%s0 + $0x220] sm:$0xff]
  %v110 = vld [vmem:[%s0 + $0x228] sm:$0xff]
  %v111 = vld [vmem:[%s0 + $0x230] sm:$0xff]
  %v112 = vld [vmem:[%s0 + $0x238] sm:$0xff]
  %v113 = vld [vmem:[%s0 + $0x240] sm:$0xff]
  %v114 = vld [vmem:[%s0 + $0x248] sm:$0xff]
  %v115 = vld [vmem:[%s0 + $0x250] sm:$0xff]
  %v116 = vld [vmem:[%s0 + $0x258] sm:$0xff]
  %v117 = vld [vmem:[%s0 + $0x260] sm:$0xff]
  %v118 = vld [vmem:[%s0 + $0x268] sm:$0xff]
  %v119 = vld [vmem:[%s0 + $0x270] sm:$0xff]
  %v120 = vld [vmem:[%s0 + $0x278] sm:$0xff]
  %v121 = vld [vmem:[%s0 + $0x280] sm:$0xff]
  %v122 = vld [vmem:[%s0 + $0x288] sm:$0xff]
  %v123 = vld [vmem:[%s0 + $0x290] sm:$0xff]
  %v124 = vld [vmem:[%s0 + $0x298] sm:$0xff]
  %v125 = vld [vmem:[%s0 + $0x2a0] sm:$0xff]
  %v126 = vld [vmem:[%s0 + $0x2a8] sm:$0xff]
  %v127 = vld [vmem:[%s0 + $0x2b0] sm:$0xff]
  %v128 = vld [vmem:[%s0 + $0x2b8] sm:$0xff]
  %v129 = vld [vmem:[%s0 + $0x2c0] sm:$0xff]
  %v130 = vld [vmem:[%s0 + $0x2c8] sm:$0xff]
  %v131 = vld [vmem:[%s0 + $0x2d0] sm:$0xff]
  %v132 = vld [vmem:[%s0 + $0x2d8] sm:$0xff]
  %v133 = vld [vmem:[%s0 + $0x2e0] sm:$0xff]
  %v134 = vld [vmem:[%s0 + $0x2e8] sm:$0xff]
  %v135 = vld [vmem:[%s0 + $0x2f0] sm:$0xff]
  %v136 = vld [vmem:[%s0 + $0x2f8] sm:$0xff]
  %v137 = vld [vmem:[%s0 + $0x300] sm:$0xff]
  %v138 = vld [vmem:[%s0 + $0x308] sm:$0xff]
  %v139 = vld [vmem:[%s0 + $0x310] sm:$0xff]
  %v140 = vld [vmem:[%s0 + $0x318] sm:$0xff]
  %v141 = vld [vmem:[%s0 + $0x320] sm:$0xff]
  %v142 = vld [vmem:[%s0 + $0x328] sm:$0xff]
  %v143 = vld [vmem:[%s0 + $0x330] sm:$0xff]
  %v144 = vld [vmem:[%s0 + $0x338] sm:$0xff]
  %v145 = vld [vmem:[%s0 + $0x340] sm:$0xff]
  %v146 = vld [vmem:[%s0 + $0x348] sm:$0xff]
  %v147 = vld [vmem:[%s0 + $0x350] sm:$0xff]
  %v148 = vld [vmem:[%s0 + $0x358] sm:$0xff]
  %v149 = vld [vmem:[%s0 + $0x360] sm:$0xff]
  %v150 = vld [vmem:[%s0 + $0x368] sm:$0xff]
  %v151 = vld [vmem:[%s0 + $0x370] sm:$0xff]
  %v152 = vld [vmem:[%s0 + $0x378] sm:$0xff]
  %v153 = vld [vmem:[%s0 + $0x380] sm:$0xff]
  %v154 = vld [vmem:[%s0 + $0x388] sm:$0xff]
  %v155 = vld [vmem:[%s0 + $0x390] sm:$0xff]
  %v156 = vld [vmem:[%s0 + $0x398] sm:$0xff]
  %v157 = vld [vmem:[%s0 + $0x3a0] sm:$0xff]
  %v158 = vld [vmem:[%s0 + $0x3a8] sm:$0xff]
  %v159 = vld [vmem:[%s0 + $0x3b0] sm:$0xff]
  %v160 = vld [vmem:[%s0 + $0x3b8] sm:$0xff]
  %v161 = vld [vmem:[%s0 + $0x3c0] sm:$0xff]
  %v162 = vld [vmem:[%s0 + $0x3c8] sm:$0xff]
  %v163 = vld [vmem:[%s0 + $0x3d0] sm:$0xff]
  %v164 = vld [vmem:[%s0 + $0x3d8] sm:$0xff]
  %v165 = vld [vmem:[%s0 + $0x3e0] sm:$0xff]
  %v166 = vld [vmem:[%s0 + $0x3e8] sm:$0xff]
  %v167 = vld [vmem:[%s0 + $0x3f0] sm:$0xff]
  %v168 = vld [vmem:[%s0 + $0x3f8] sm:$0xff]
  %v169 = vld [vmem:[%s0 + $0x400] sm:$0xff]
  %v170 = vld [vmem:[%s0 + $0x408] sm:$0xff]
  %v171 = vld [vmem:[%s0 + $0x410] sm:$0xff]
  %v172 = vld [vmem:[%s0 + $0x418] sm:$0xff]
  %v173 = vld [vmem:[%s0 + $0x420] sm:$0xff]
  %v174 = vld [vmem:[%s0 + $0x428] sm:$0xff]
  %v175 = vld [vmem:[%s0 + $0x430] sm:$0xff]
  %v176 = vld [vmem:[%s0 + $0x438] sm:$0xff]
  %v177 = vld [vmem:[%s0 + $0x440] sm:$0xff]
  %v178 = vld [vmem:[%s0 + $0x448] sm:$0xff]
  %v179 = vld [vmem:[%s0 + $0x450] sm:$0xff]
  %v180 = vld [vmem:[%s0 + $0x458] sm:$0xff]
  %v181 = vld [vmem:[%s0 + $0x460] sm:$0xff]
  %v182 = vld [vmem:[%s0 + $0x468] sm:$0xff]
  %v183 = vld [vmem:[%s0 + $0x470] sm:$0xff]
  %v184 = vld [vmem:[%s0 + $0x478] sm:$0xff]
  %v185 = vld [vmem:[%s0 + $0x480] sm:$0xff]
  %v186 = vld [vmem:[%s0 + $0x488] sm:$0xff]
  %v187 = vld [vmem:[%s0 + $0x490] sm:$0xff]
  %v188 = vld [vmem:[%s0 + $0x498] sm:$0xff]
  %v189 = vld [vmem:[%s0 + $0x4a0] sm:$0xff]
  %v190 = vld [vmem:[%s0 + $0x4a8] sm:$0xff]
  %v191 = vld [vmem:[%s0 + $0x4b0] sm:$0xff]
  %v192 = vld [vmem:[%s0 + $0x4b8] sm:$0xff]
  %v193 = vld [vmem:[%s0 + $0x4c0] sm:$0xff]
  %v194 = vld [vmem:[%s0 + $0x4c8] sm:$0xff]
  %v195 = vld [vmem:[%s0 + $0x4d0] sm:$0xff]
  %v196 = vld [vmem:[%s0 + $0x4d8] sm:$0xff]
  %v197 = vld [vmem:[%s0 + $0x4e0] sm:$0xff]
  %v198 = vld [vmem:[%s0 + $0x4e8] sm:$0xff]
  %v199 = vld [vmem:[%s0 + $0x4f0] sm:$0xff]
  %v200 = vld [vmem:[%s0 + $0x4f8] sm:$0xff]
  %v201 = vld [vmem:[%s0 + $0x500] sm:$0xff]
  %v202 = vld [vmem:[%s0 + $0x508] sm:$0xff]
  %v203 = vld [vmem:[%s0 + $0x510] sm:$0xff]
  %v204 = vld [vmem:[%s0 + $0x518] sm:$0xff]
  %v205 = vld [vmem:[%s0 + $0x520] sm:$0xff]
  %v206 = vld [vmem:[%s0 + $0x528] sm:$0xff]
  %v207 = vld [vmem:[%s0 + $0x530] sm:$0xff]
  %v208 = vld [vmem:[%s0 + $0x538] sm:$0xff]
  %v209 = vld [vmem:[%s0 + $0x540] sm:$0xff]
  %v210 = vld [vmem:[%s0 + $0x548] sm:$0xff]
  %v211 = vld [vmem:[%s0 + $0x550] sm:$0xff]
  %v212 = vld [vmem:[%s0 + $0x558] sm:$0xff]
  %v213 = vld [vmem:[%s0 + $0x560] sm:$0xff]
  %v214 = vld [vmem:[%s0 + $0x568] sm:$0xff]
  %v215 = vld [vmem:[%s0 + $0x570] sm:$0xff]
  %v216 = vld [vmem:[%s1] sm:$0xff]
  %v217 = vld [vmem:[%s1 + $0x8] sm:$0xff]
  %v218 = vld [vmem:[%s1 + $0x10] sm:$0xff]
  %v219 = vld [vmem:[%s1 + $0x18] sm:$0xff]
  %v220 = vld [vmem:[%s1 + $0x20] sm:$0xff]
  %v221 = vld [vmem:[%s1 + $0x28] sm:$0xff]
  %v222 = vld [vmem:[%s1 + $0x30] sm:$0xff]
  %v223 = vld [vmem:[%s1 + $0x38] sm:$0xff]
  %v224 = vld [vmem:[%s1 + $0x40] sm:$0xff]
  %v225 = vld [vmem:[%s1 + $0x48] sm:$0xff]
  %v226 = vld [vmem:[%s1 + $0x50] sm:$0xff]
  %v227 = vld [vmem:[%s1 + $0x58] sm:$0xff]
  %v228 = vld [vmem:[%s1 + $0x60] sm:$0xff]
  %v229 = vld [vmem:[%s1 + $0x68] sm:$0xff]
  %v230 = vld [vmem:[%s1 + $0x70] sm:$0xff]
  %v231 = vld [vmem:[%s1 + $0x78] sm:$0xff]
  %v232 = vld [vmem:[%s1 + $0x80] sm:$0xff]
  %v233 = vld [vmem:[%s1 + $0x88] sm:$0xff]
  %v234 = vld [vmem:[%s1 + $0x90] sm:$0xff]
  %v235 = vld [vmem:[%s1 + $0x98] sm:$0xff]
  %v236 = vld [vmem:[%s1 + $0xa0] sm:$0xff]
  %v237 = vld [vmem:[%s1 + $0xa8] sm:$0xff]
  %v238 = vld [vmem:[%s1 + $0xb0] sm:$0xff]
  %v239 = vld [vmem:[%s1 + $0xb8] sm:$0xff]
  %v240 = vld [vmem:[%s1 + $0xc0] sm:$0xff]
  %v241 = vld [vmem:[%s1 + $0xc8] sm:$0xff]
  %v242 = vld [vmem:[%s1 + $0xd0] sm:$0xff]
  %v243 = vld [vmem:[%s1 + $0xd8] sm:$0xff]
  %v244 = vld [vmem:[%s1 + $0xe0] sm:$0xff]
  %v245 = vld [vmem:[%s1 + $0xe8] sm:$0xff]
  %v246 = vld [vmem:[%s1 + $0xf0] sm:$0xff]
  %v247 = vld [vmem:[%s1 + $0xf8] sm:$0xff]
  %v248 = vld [vmem:[%s1 + $0x100] sm:$0xff]
  %v249 = vld [vmem:[%s1 + $0x108] sm:$0xff]
  %v250 = vld [vmem:[%s1 + $0x110] sm:$0xff]
  %v251 = vld [vmem:[%s1 + $0x118] sm:$0xff]
  %v252 = vld [vmem:[%s1 + $0x120] sm:$0xff]
  %v253 = vld [vmem:[%s1 + $0x128] sm:$0xff]
  %v254 = vld [vmem:[%s1 + $0x130] sm:$0xff]
  %v255 = vld [vmem:[%s1 + $0x138] sm:$0xff]
  %v256 = vld [vmem:[%s1 + $0x140] sm:$0xff]
  %v257 = vld [vmem:[%s1 + $0x148] sm:$0xff]
  %v258 = vld [vmem:[%s1 + $0x150] sm:$0xff]
  %v259 = vld [vmem:[%s1 + $0x158] sm:$0xff]
  %v260 = vld [vmem:[%s1 + $0x160] sm:$0xff]
  %v261 = vld [vmem:[%s1 + $0x168] sm:$0xff]
  %v262 = vld [vmem:[%s1 + $0x170] sm:$0xff]
  %v263 = vld [vmem:[%s1 + $0x178] sm:$0xff]
  %v264 = vld [vmem:[%s1 + $0x180] sm:$0xff]
  %v265 = vld [vmem:[%s1 + $0x188] sm:$0xff]
  %v266 = vld [vmem:[%s1 + $0x190] sm:$0xff]
  %v267 = vld [vmem:[%s1 + $0x198] sm:$0xff]
  %v268 = vld [vmem:[%s1 + $0x1a0] sm:$0xff]
  %v269 = vld [vmem:[%s1 + $0x1a8] sm:$0xff]
  %v270 = vld [vmem:[%s1 + $0x1b0] sm:$0xff]
  %v271 = vld [vmem:[%s1 + $0x1b8] sm:$0xff]
  %v272 = vld [vmem:[%s1 + $0x1c0] sm:$0xff]
  %v273 = vld [vmem:[%s1 + $0x1c8] sm:$0xff]
  %v274 = vld [vmem:[%s1 + $0x1d0] sm:$0xff]
  %v275 = vld [vmem:[%s1 + $0x1d8] sm:$0xff]
  %v276 = vld [vmem:[%s1 + $0x1e0] sm:$0xff]
  %v277 = vld [vmem:[%s1 + $0x1e8] sm:$0xff]
  %v278 = vld [vmem:[%s1 + $0x1f0] sm:$0xff]
  %v279 = vld [vmem:[%s1 + $0x1f8] sm:$0xff]
  %v280 = vld [vmem:[%s1 + $0x200] sm:$0xff]
  %v281 = vld [vmem:[%s1 + $0x208] sm:$0xff]
  %v282 = vld [vmem:[%s1 + $0x210] sm:$0xff]
  %v283 = vld [vmem:[%s1 + $0x218] sm:$0xff]
  %v284 = vld [vmem:[%s1 + $0x220] sm:$0xff]
  %v285 = vld [vmem:[%s1 + $0x228] sm:$0xff]
  %v286 = vld [vmem:[%s1 + $0x230] sm:$0xff]
  %v287 = vld [vmem:[%s1 + $0x238] sm:$0xff]
  %v288 = vld [vmem:[%s1 + $0x240] sm:$0xff]
  %v289 = vld [vmem:[%s1 + $0x248] sm:$0xff]
  %v290 = vld [vmem:[%s1 + $0x250] sm:$0xff]
  %v291 = vld [vmem:[%s1 + $0x258] sm:$0xff]
  %v292 = vld [vmem:[%s1 + $0x260] sm:$0xff]
  %v293 = vld [vmem:[%s1 + $0x268] sm:$0xff]
  %v294 = vld [vmem:[%s1 + $0x270] sm:$0xff]
  %v295 = vld [vmem:[%s1 + $0x278] sm:$0xff]
  %v296 = vld [vmem:[%s1 + $0x280] sm:$0xff]
  %v297 = vld [vmem:[%s1 + $0x288] sm:$0xff]
  %v298 = vld [vmem:[%s1 + $0x290] sm:$0xff]
  %v299 = vld [vmem:[%s1 + $0x298] sm:$0xff]
  %v300 = vld [vmem:[%s1 + $0x2a0] sm:$0xff]
  %v301 = vld [vmem:[%s1 + $0x2a8] sm:$0xff]
  %v302 = vld [vmem:[%s1 + $0x2b0] sm:$0xff]
  %v303 = vld [vmem:[%s1 + $0x2b8] sm:$0xff]
  %v304 = vld [vmem:[%s1 + $0x2c0] sm:$0xff]
  %v305 = vld [vmem:[%s1 + $0x2c8] sm:$0xff]
  %v306 = vld [vmem:[%s1 + $0x2d0] sm:$0xff]
  %v307 = vld [vmem:[%s1 + $0x2d8] sm:$0xff]
  %v308 = vld [vmem:[%s1 + $0x2e0] sm:$0xff]
  %v309 = vld [vmem:[%s1 + $0x2e8] sm:$0xff]
  %v310 = vld [vmem:[%s1 + $0x2f0] sm:$0xff]
  %v311 = vld [vmem:[%s1 + $0x2f8] sm:$0xff]
  %v312 = vld [vmem:[%s1 + $0x300] sm:$0xff]
  %v313 = vld [vmem:[%s1 + $0x308] sm:$0xff]
  %v314 = vld [vmem:[%s1 + $0x310] sm:$0xff]
  %v315 = vld [vmem:[%s1 + $0x318] sm:$0xff]
  %v316 = vld [vmem:[%s1 + $0x320] sm:$0xff]
  %v317 = vld [vmem:[%s1 + $0x328] sm:$0xff]
  %v318 = vld [vmem:[%s1 + $0x330] sm:$0xff]
  %v319 = vld [vmem:[%s1 + $0x338] sm:$0xff]
  %v320 = vld [vmem:[%s1 + $0x340] sm:$0xff]
  %v321 = vld [vmem:[%s1 + $0x348] sm:$0xff]
  %v322 = vld [vmem:[%s1 + $0x350] sm:$0xff]
  %v323 = vld [vmem:[%s1 + $0x358] sm:$0xff]
  %v324 = vld [vmem:[%s1 + $0x360] sm:$0xff]
  %v325 = vld [vmem:[%s1 + $0x368] sm:$0xff]
  %v326 = vld [vmem:[%s1 + $0x370] sm:$0xff]
  %v327 = vld [vmem:[%s1 + $0x378] sm:$0xff]
  %v328 = vld [vmem:[%s1 + $0x380] sm:$0xff]
  %v329 = vld [vmem:[%s1 + $0x388] sm:$0xff]
  %v330 = vld [vmem:[%s1 + $0x390] sm:$0xff]
  %v331 = vld [vmem:[%s1 + $0x398] sm:$0xff]
  %v332 = vld [vmem:[%s1 + $0x3a0] sm:$0xff]
  %v333 = vld [vmem:[%s1 + $0x3a8] sm:$0xff]
  %v334 = vld [vmem:[%s1 + $0x3b0] sm:$0xff]
  %v335 = vld [vmem:[%s1 + $0x3b8] sm:$0xff]
  %v336 = vld [vmem:[%s1 + $0x3c0] sm:$0xff]
  %v337 = vld [vmem:[%s1 + $0x3c8] sm:$0xff]
  %v338 = vld [vmem:[%s1 + $0x3d0] sm:$0xff]
  %v339 = vld [vmem:[%s1 + $0x3d8] sm:$0xff]
  %v340 = vld [vmem:[%s1 + $0x3e0] sm:$0xff]
  %v341 = vld [vmem:[%s1 + $0x3e8] sm:$0xff]
  %v342 = vld [vmem:[%s1 + $0x3f0] sm:$0xff]
  %v343 = vld [vmem:[%s1 + $0x3f8] sm:$0xff]
  %v344 = vld [vmem:[%s1 + $0x400] sm:$0xff]
  %v345 = vld [vmem:[%s1 + $0x408] sm:$0xff]
  %v346 = vld [vmem:[%s1 + $0x410] sm:$0xff]
  %v347 = vld [vmem:[%s1 + $0x418] sm:$0xff]
  %v348 = vld [vmem:[%s1 + $0x420] sm:$0xff]
  %v349 = vld [vmem:[%s1 + $0x428] sm:$0xff]
  %v350 = vld [vmem:[%s1 + $0x430] sm:$0xff]
  %v351 = vld [vmem:[%s1 + $0x438] sm:$0xff]
  %v352 = vld [vmem:[%s1 + $0x440] sm:$0xff]
  %v353 = vld [vmem:[%s1 + $0x448] sm:$0xff]
  %v354 = vld [vmem:[%s1 + $0x450] sm:$0xff]
  %v355 = vld [vmem:[%s1 + $0x458] sm:$0xff]
  %v356 = vld [vmem:[%s1 + $0x460] sm:$0xff]
  %v357 = vld [vmem:[%s1 + $0x468] sm:$0xff]
  %v358 = vld [vmem:[%s1 + $0x470] sm:$0xff]
  %v359 = vld [vmem:[%s1 + $0x478] sm:$0xff]
  %v360 = vld [vmem:[%s1 + $0x480] sm:$0xff]
  %v361 = vld [vmem:[%s1 + $0x488] sm:$0xff]
  %v362 = vld [vmem:[%s1 + $0x490] sm:$0xff]
  %v363 = vld [vmem:[%s1 + $0x498] sm:$0xff]
  %v364 = vld [vmem:[%s1 + $0x4a0] sm:$0xff]
  %v365 = vld [vmem:[%s1 + $0x4a8] sm:$0xff]
  %v366 = vld [vmem:[%s1 + $0x4b0] sm:$0xff]
  %v367 = vld [vmem:[%s1 + $0x4b8] sm:$0xff]
  %v368 = vld [vmem:[%s1 + $0x4c0] sm:$0xff]
  %v369 = vld [vmem:[%s1 + $0x4c8] sm:$0xff]
  %v370 = vld [vmem:[%s1 + $0x4d0] sm:$0xff]
  %v371 = vld [vmem:[%s1 + $0x4d8] sm:$0xff]
  %v372 = vld [vmem:[%s1 + $0x4e0] sm:$0xff]
  %v373 = vld [vmem:[%s1 + $0x4e8] sm:$0xff]
  %v374 = vld [vmem:[%s1 + $0x4f0] sm:$0xff]
  %v375 = vld [vmem:[%s1 + $0x4f8] sm:$0xff]
  %v376 = vld [vmem:[%s1 + $0x500] sm:$0xff]
  %v377 = vld [vmem:[%s1 + $0x508] sm:$0xff]
  %v378 = vld [vmem:[%s1 + $0x510] sm:$0xff]
  %v379 = vld [vmem:[%s1 + $0x518] sm:$0xff]
  %v380 = vld [vmem:[%s1 + $0x520] sm:$0xff]
  %v381 = vld [vmem:[%s1 + $0x528] sm:$0xff]
  %v382 = vld [vmem:[%s1 + $0x530] sm:$0xff]
  %v383 = vld [vmem:[%s1 + $0x538] sm:$0xff]
  %v384 = vld [vmem:[%s1 + $0x540] sm:$0xff]
  %v385 = vld [vmem:[%s1 + $0x548] sm:$0xff]
  %v386 = vld [vmem:[%s1 + $0x550] sm:$0xff]
  %v387 = vld [vmem:[%s1 + $0x558] sm:$0xff]
  %v388 = vld [vmem:[%s1 + $0x560] sm:$0xff]
  %v389 = vld [vmem:[%s1 + $0x568] sm:$0xff]
  %v390 = vld [vmem:[%s1 + $0x570] sm:$0xff]
  %v391 = vld [vmem:[%s1 + $0x578] sm:$0xff]
  %v392 = vld [vmem:[%s1 + $0x580] sm:$0xff]
  %v393 = vld [vmem:[%s1 + $0x588] sm:$0xff]
  %v394 = vld [vmem:[%s1 + $0x590] sm:$0xff]
  %v395 = vld [vmem:[%s1 + $0x598] sm:$0xff]
  %v396 = vld [vmem:[%s1 + $0x5a0] sm:$0xff]
  %v397 = vld [vmem:[%s1 + $0x5a8] sm:$0xff]
  %v398 = vld [vmem:[%s1 + $0x5b0] sm:$0xff]
  %v399 = vld [vmem:[%s1 + $0x5b8] sm:$0xff]
  %v400 = vld [vmem:[%s1 + $0x5c0] sm:$0xff]
  %v401 = vld [vmem:[%s1 + $0x5c8] sm:$0xff]
  %v402 = vld [vmem:[%s1 + $0x5d0] sm:$0xff]
  %v403 = vld [vmem:[%s1 + $0x5d8] sm:$0xff]
  %v404 = vld [vmem:[%s1 + $0x5e0] sm:$0xff]
  %v405 = vld [vmem:[%s1 + $0x5e8] sm:$0xff]
  %v406 = vld [vmem:[%s1 + $0x5f0] sm:$0xff]
  %v407 = vld [vmem:[%s1 + $0x5f8] sm:$0xff]
  %v408 = vld [vmem:[%s1 + $0x600] sm:$0xff]
  %v409 = vld [vmem:[%s1 + $0x608] sm:$0xff]
  %v410 = vld [vmem:[%s1 + $0x610] sm:$0xff]
  %v411 = vld [vmem:[%s1 + $0x618] sm:$0xff]
  %v412 = vld [vmem:[%s1 + $0x620] sm:$0xff]
  %v413 = vld [vmem:[%s1 + $0x628] sm:$0xff]
  %v414 = vld [vmem:[%s1 + $0x630] sm:$0xff]
  %v415 = vld [vmem:[%s1 + $0x638] sm:$0xff]
  %v416 = vld [vmem:[%s1 + $0x640] sm:$0xff]
  %v417 = vld [vmem:[%s1 + $0x648] sm:$0xff]
  %v418 = vld [vmem:[%s1 + $0x650] sm:$0xff]
  %v419 = vld [vmem:[%s1 + $0x658] sm:$0xff]
  %v420 = vld [vmem:[%s1 + $0x660] sm:$0xff]
  %v421 = vld [vmem:[%s1 + $0x668] sm:$0xff]
  %v422 = vld [vmem:[%s1 + $0x670] sm:$0xff]
  %v423 = vld [vmem:[%s1 + $0x678] sm:$0xff]
  %v424 = vld [vmem:[%s1 + $0x680] sm:$0xff]
  %v425 = vld [vmem:[%s1 + $0x688] sm:$0xff]
  %v426 = vld [vmem:[%s1 + $0x690] sm:$0xff]
  %v427 = vld [vmem:[%s1 + $0x698] sm:$0xff]
  %v428 = vld [vmem:[%s1 + $0x6a0] sm:$0xff]
  %v429 = vld [vmem:[%s1 + $0x6a8] sm:$0xff]
  %v430 = vld [vmem:[%s1 + $0x6b0] sm:$0xff]
  %v431 = vld [vmem:[%s1 + $0x6b8] sm:$0xff]
  %vm432 = vcmask 785408
  %v434 = vsel %vm432, %v47, 0
  %v437 = vsel %vm432, %v54, 0
  %v440 = vsel %vm432, %v61, 0
  %v443 = vsel %vm432, %v68, 0
  %v446 = vsel %vm432, %v75, 0
  %v449 = vsel %vm432, %v82, 0
  %v452 = vsel %vm432, %v89, 0
  %v455 = vsel %vm432, %v96, 0
  %v458 = vsel %vm432, %v103, 0
  %v461 = vsel %vm432, %v110, 0
  %v464 = vsel %vm432, %v117, 0
  %v467 = vsel %vm432, %v124, 0
  %v470 = vsel %vm432, %v131, 0
  %v473 = vsel %vm432, %v138, 0
  %v476 = vsel %vm432, %v145, 0
  %v479 = vsel %vm432, %v152, 0
  %v482 = vsel %vm432, %v159, 0
  %v485 = vsel %vm432, %v166, 0
  %v488 = vsel %vm432, %v173, 0
  %v491 = vsel %vm432, %v180, 0
  %v494 = vsel %vm432, %v187, 0
  %v497 = vsel %vm432, %v194, 0
  %v500 = vsel %vm432, %v201, 0
  %v503 = vsel %vm432, %v208, 0
  %v506 = vsel %vm432, %v215, 0
  %508 = vmatprep.subr.mxu0 %v247
  %509 = vmatpush1.msra.mxu0 %v246
  %510 = vmatprep.subr.mxu0 %v245
  %511 = vmatpush1.msra.mxu0 %v244
  %512 = vmatprep.subr.mxu0 %v243
  %513 = vmatpush1.msra.mxu0 %v242
  %514 = vmatprep.subr.mxu0 %v241
  %515 = vmatpush1.msra.mxu0 %v240
  %516 = vmatprep.subr.mxu0 %v239
  %517 = vmatpush1.msra.mxu0 %v238
  %518 = vmatprep.subr.mxu0 %v237
  %519 = vmatpush1.msra.mxu0 %v236
  %520 = vmatprep.subr.mxu0 %v235
  %521 = vmatpush1.msra.mxu0 %v234
  %522 = vmatprep.subr.mxu0 %v233
  %523 = vmatpush1.msra.mxu0 %v232
  %524 = vmatprep.subr.mxu0 %v231
  %525 = vmatpush1.msra.mxu0 %v230
  %526 = vmatprep.subr.mxu0 %v229
  %527 = vmatpush1.msra.mxu0 %v228
  %528 = vmatprep.subr.mxu0 %v227
  %529 = vmatpush1.msra.mxu0 %v226
  %530 = vmatprep.subr.mxu0 %v225
  %531 = vmatpush1.msra.mxu0 %v224
  %532 = vmatprep.subr.mxu0 %v223
  %533 = vmatpush1.msra.mxu0 %v222
  %534 = vmatprep.subr.mxu0 %v221
  %535 = vmatpush1.msra.mxu0 %v220
  %536 = vmatprep.subr.mxu0 %v219
  %537 = vmatpush1.msra.mxu0 %v218
  %538 = vmatprep.subr.mxu0 %v217
  %539 = vmatpush1.msra.mxu0 %v216
  %540 = vmatprep.subr.mxu0 %v279
  %541 = vmatpush2.msra.mxu0 %v278
  %542 = vmatprep.subr.mxu0 %v277
  %543 = vmatpush2.msra.mxu0 %v276
  %544 = vmatprep.subr.mxu0 %v275
  %545 = vmatpush2.msra.mxu0 %v274
  %546 = vmatprep.subr.mxu0 %v273
  %547 = vmatpush2.msra.mxu0 %v272
  %548 = vmatprep.subr.mxu0 %v271
  %549 = vmatpush2.msra.mxu0 %v270
  %550 = vmatprep.subr.mxu0 %v269
  %551 = vmatpush2.msra.mxu0 %v268
  %552 = vmatprep.subr.mxu0 %v267
  %553 = vmatpush2.msra.mxu0 %v266
  %554 = vmatprep.subr.mxu0 %v265
  %555 = vmatpush2.msra.mxu0 %v264
  %556 = vmatprep.subr.mxu0 %v263
  %557 = vmatpush2.msra.mxu0 %v262
  %558 = vmatprep.subr.mxu0 %v261
  %559 = vmatpush2.msra.mxu0 %v260
  %560 = vmatprep.subr.mxu0 %v259
  %561 = vmatpush2.msra.mxu0 %v258
  %562 = vmatprep.subr.mxu0 %v257
  %563 = vmatpush2.msra.mxu0 %v256
  %564 = vmatprep.subr.mxu0 %v255
  %565 = vmatpush2.msra.mxu0 %v254
  %566 = vmatprep.subr.mxu0 %v253
  %567 = vmatpush2.msra.mxu0 %v252
  %568 = vmatprep.subr.mxu0 %v251
  %569 = vmatpush2.msra.mxu0 %v250
  %570 = vmatprep.subr.mxu0 %v249
  %571 = vmatpush2.msra.mxu0 %v248
  %572 = vmatprep.mubr.f32.mxu0 %v42
  %573 = vmatmul.mubr.f32.gmra.mxu0 %v41
  %v574 = vpop.f32.mrf.mxu0
  %v575 = vadd.f32 0.0, %v574
  %v576 = vpop.f32.mrf.mxu0
  %v577 = vadd.f32 0.0, %v576
  %578 = vmatprep.mubr.f32.mxu0 %v49
  %579 = vmatmul.mubr.f32.gmra.mxu0 %v48
  %v580 = vpop.f32.mrf.mxu0
  %v581 = vadd.f32 0.0, %v580
  %v582 = vpop.f32.mrf.mxu0
  %v583 = vadd.f32 0.0, %v582
  %584 = vmatprep.mubr.f32.mxu0 %v56
  %585 = vmatmul.mubr.f32.gmra.mxu0 %v55
  %v586 = vpop.f32.mrf.mxu0
  %v587 = vadd.f32 0.0, %v586
  %v588 = vpop.f32.mrf.mxu0
  %v589 = vadd.f32 0.0, %v588
  %590 = vmatprep.mubr.f32.mxu0 %v63
  %591 = vmatmul.mubr.f32.gmra.mxu0 %v62
  %v592 = vpop.f32.mrf.mxu0
  %v593 = vadd.f32 0.0, %v592
  %v594 = vpop.f32.mrf.mxu0
  %v595 = vadd.f32 0.0, %v594
  %596 = vmatprep.mubr.f32.mxu0 %v70
  %597 = vmatmul.mubr.f32.gmra.mxu0 %v69
  %v598 = vpop.f32.mrf.mxu0
  %v599 = vadd.f32 0.0, %v598
  %v600 = vpop.f32.mrf.mxu0
  %v601 = vadd.f32 0.0, %v600
  %602 = vmatprep.mubr.f32.mxu0 %v77
  %603 = vmatmul.mubr.f32.gmra.mxu0 %v76
  %v604 = vpop.f32.mrf.mxu0
  %v605 = vadd.f32 0.0, %v604
  %v606 = vpop.f32.mrf.mxu0
  %v607 = vadd.f32 0.0, %v606
  %608 = vmatprep.mubr.f32.mxu0 %v84
  %609 = vmatmul.mubr.f32.gmra.mxu0 %v83
  %v610 = vpop.f32.mrf.mxu0
  %v611 = vadd.f32 0.0, %v610
  %v612 = vpop.f32.mrf.mxu0
  %v613 = vadd.f32 0.0, %v612
  %614 = vmatprep.mubr.f32.mxu0 %v91
  %615 = vmatmul.mubr.f32.gmra.mxu0 %v90
  %v616 = vpop.f32.mrf.mxu0
  %v617 = vadd.f32 0.0, %v616
  %v618 = vpop.f32.mrf.mxu0
  %v619 = vadd.f32 0.0, %v618
  %620 = vmatprep.mubr.f32.mxu0 %v98
  %621 = vmatmul.mubr.f32.gmra.mxu0 %v97
  %v622 = vpop.f32.mrf.mxu0
  %v623 = vadd.f32 0.0, %v622
  %v624 = vpop.f32.mrf.mxu0
  %v625 = vadd.f32 0.0, %v624
  %626 = vmatprep.mubr.f32.mxu0 %v105
  %627 = vmatmul.mubr.f32.gmra.mxu0 %v104
  %v628 = vpop.f32.mrf.mxu0
  %v629 = vadd.f32 0.0, %v628
  %v630 = vpop.f32.mrf.mxu0
  %v631 = vadd.f32 0.0, %v630
  %632 = vmatprep.mubr.f32.mxu0 %v112
  %633 = vmatmul.mubr.f32.gmra.mxu0 %v111
  %v634 = vpop.f32.mrf.mxu0
  %v635 = vadd.f32 0.0, %v634
  %v636 = vpop.f32.mrf.mxu0
  %v637 = vadd.f32 0.0, %v636
  %638 = vmatprep.mubr.f32.mxu0 %v119
  %639 = vmatmul.mubr.f32.gmra.mxu0 %v118
  %v640 = vpop.f32.mrf.mxu0
  %v641 = vadd.f32 0.0, %v640
  %v642 = vpop.f32.mrf.mxu0
  %v643 = vadd.f32 0.0, %v642
  %644 = vmatprep.mubr.f32.mxu0 %v126
  %645 = vmatmul.mubr.f32.gmra.mxu0 %v125
  %v646 = vpop.f32.mrf.mxu0
  %v647 = vadd.f32 0.0, %v646
  %v648 = vpop.f32.mrf.mxu0
  %v649 = vadd.f32 0.0, %v648
  %650 = vmatprep.mubr.f32.mxu0 %v133
  %651 = vmatmul.mubr.f32.gmra.mxu0 %v132
  %v652 = vpop.f32.mrf.mxu0
  %v653 = vadd.f32 0.0, %v652
  %v654 = vpop.f32.mrf.mxu0
  %v655 = vadd.f32 0.0, %v654
  %656 = vmatprep.mubr.f32.mxu0 %v140
  %657 = vmatmul.mubr.f32.gmra.mxu0 %v139
  %v658 = vpop.f32.mrf.mxu0
  %v659 = vadd.f32 0.0, %v658
  %v660 = vpop.f32.mrf.mxu0
  %v661 = vadd.f32 0.0, %v660
  %662 = vmatprep.mubr.f32.mxu0 %v147
  %663 = vmatmul.mubr.f32.gmra.mxu0 %v146
  %v664 = vpop.f32.mrf.mxu0
  %v665 = vadd.f32 0.0, %v664
  %v666 = vpop.f32.mrf.mxu0
  %v667 = vadd.f32 0.0, %v666
  %668 = vmatprep.mubr.f32.mxu0 %v154
  %669 = vmatmul.mubr.f32.gmra.mxu0 %v153
  %v670 = vpop.f32.mrf.mxu0
  %v671 = vadd.f32 0.0, %v670
  %v672 = vpop.f32.mrf.mxu0
  %v673 = vadd.f32 0.0, %v672
  %674 = vmatprep.mubr.f32.mxu0 %v161
  %675 = vmatmul.mubr.f32.gmra.mxu0 %v160
  %v676 = vpop.f32.mrf.mxu0
  %v677 = vadd.f32 0.0, %v676
  %v678 = vpop.f32.mrf.mxu0
  %v679 = vadd.f32 0.0, %v678
  %680 = vmatprep.mubr.f32.mxu0 %v168
  %681 = vmatmul.mubr.f32.gmra.mxu0 %v167
  %v682 = vpop.f32.mrf.mxu0
  %v683 = vadd.f32 0.0, %v682
  %v684 = vpop.f32.mrf.mxu0
  %v685 = vadd.f32 0.0, %v684
  %686 = vmatprep.mubr.f32.mxu0 %v175
  %687 = vmatmul.mubr.f32.gmra.mxu0 %v174
  %v688 = vpop.f32.mrf.mxu0
  %v689 = vadd.f32 0.0, %v688
  %v690 = vpop.f32.mrf.mxu0
  %v691 = vadd.f32 0.0, %v690
  %692 = vmatprep.mubr.f32.mxu0 %v182
  %693 = vmatmul.mubr.f32.gmra.mxu0 %v181
  %v694 = vpop.f32.mrf.mxu0
  %v695 = vadd.f32 0.0, %v694
  %v696 = vpop.f32.mrf.mxu0
  %v697 = vadd.f32 0.0, %v696
  %698 = vmatprep.mubr.f32.mxu0 %v189
  %699 = vmatmul.mubr.f32.gmra.mxu0 %v188
  %v700 = vpop.f32.mrf.mxu0
  %v701 = vadd.f32 0.0, %v700
  %v702 = vpop.f32.mrf.mxu0
  %v703 = vadd.f32 0.0, %v702
  %704 = vmatprep.mubr.f32.mxu0 %v196
  %705 = vmatmul.mubr.f32.gmra.mxu0 %v195
  %v706 = vpop.f32.mrf.mxu0
  %v707 = vadd.f32 0.0, %v706
  %v708 = vpop.f32.mrf.mxu0
  %v709 = vadd.f32 0.0, %v708
  %710 = vmatprep.mubr.f32.mxu0 %v203
  %711 = vmatmul.mubr.f32.gmra.mxu0 %v202
  %v712 = vpop.f32.mrf.mxu0
  %v713 = vadd.f32 0.0, %v712
  %v714 = vpop.f32.mrf.mxu0
  %v715 = vadd.f32 0.0, %v714
  %716 = vmatprep.mubr.f32.mxu0 %v210
  %717 = vmatmul.mubr.f32.gmra.mxu0 %v209
  %v718 = vpop.f32.mrf.mxu0
  %v719 = vadd.f32 0.0, %v718
  %v720 = vpop.f32.mrf.mxu0
  %v721 = vadd.f32 0.0, %v720
  %722 = vdwg.mxu0
  %723 = vmatprep.subr.mxu0 %v311
  %724 = vmatpush1.msra.mxu0 %v310
  %725 = vmatprep.subr.mxu0 %v309
  %726 = vmatpush1.msra.mxu0 %v308
  %727 = vmatprep.subr.mxu0 %v307
  %728 = vmatpush1.msra.mxu0 %v306
  %729 = vmatprep.subr.mxu0 %v305
  %730 = vmatpush1.msra.mxu0 %v304
  %731 = vmatprep.subr.mxu0 %v303
  %732 = vmatpush1.msra.mxu0 %v302
  %733 = vmatprep.subr.mxu0 %v301
  %734 = vmatpush1.msra.mxu0 %v300
  %735 = vmatprep.subr.mxu0 %v299
  %736 = vmatpush1.msra.mxu0 %v298
  %737 = vmatprep.subr.mxu0 %v297
  %738 = vmatpush1.msra.mxu0 %v296
  %739 = vmatprep.subr.mxu0 %v295
  %740 = vmatpush1.msra.mxu0 %v294
  %741 = vmatprep.subr.mxu0 %v293
  %742 = vmatpush1.msra.mxu0 %v292
  %743 = vmatprep.subr.mxu0 %v291
  %744 = vmatpush1.msra.mxu0 %v290
  %745 = vmatprep.subr.mxu0 %v289
  %746 = vmatpush1.msra.mxu0 %v288
  %747 = vmatprep.subr.mxu0 %v287
  %748 = vmatpush1.msra.mxu0 %v286
  %749 = vmatprep.subr.mxu0 %v285
  %750 = vmatpush1.msra.mxu0 %v284
  %751 = vmatprep.subr.mxu0 %v283
  %752 = vmatpush1.msra.mxu0 %v282
  %753 = vmatprep.subr.mxu0 %v281
  %754 = vmatpush1.msra.mxu0 %v280
  %755 = vmatprep.subr.mxu0 %v343
  %756 = vmatpush2.msra.mxu0 %v342
  %757 = vmatprep.subr.mxu0 %v341
  %758 = vmatpush2.msra.mxu0 %v340
  %759 = vmatprep.subr.mxu0 %v339
  %760 = vmatpush2.msra.mxu0 %v338
  %761 = vmatprep.subr.mxu0 %v337
  %762 = vmatpush2.msra.mxu0 %v336
  %763 = vmatprep.subr.mxu0 %v335
  %764 = vmatpush2.msra.mxu0 %v334
  %765 = vmatprep.subr.mxu0 %v333
  %766 = vmatpush2.msra.mxu0 %v332
  %767 = vmatprep.subr.mxu0 %v331
  %768 = vmatpush2.msra.mxu0 %v330
  %769 = vmatprep.subr.mxu0 %v329
  %770 = vmatpush2.msra.mxu0 %v328
  %771 = vmatprep.subr.mxu0 %v327
  %772 = vmatpush2.msra.mxu0 %v326
  %773 = vmatprep.subr.mxu0 %v325
  %774 = vmatpush2.msra.mxu0 %v324
  %775 = vmatprep.subr.mxu0 %v323
  %776 = vmatpush2.msra.mxu0 %v322
  %777 = vmatprep.subr.mxu0 %v321
  %778 = vmatpush2.msra.mxu0 %v320
  %779 = vmatprep.subr.mxu0 %v319
  %780 = vmatpush2.msra.mxu0 %v318
  %781 = vmatprep.subr.mxu0 %v317
  %782 = vmatpush2.msra.mxu0 %v316
  %783 = vmatprep.subr.mxu0 %v315
  %784 = vmatpush2.msra.mxu0 %v314
  %785 = vmatprep.subr.mxu0 %v313
  %786 = vmatpush2.msra.mxu0 %v312
  %787 = vmatprep.mubr.f32.mxu0 %v44
  %788 = vmatmul.mubr.f32.gmra.mxu0 %v43
  %v789 = vpop.f32.mrf.mxu0
  %v790 = vadd.f32 %v575, %v789
  %v791 = vpop.f32.mrf.mxu0
  %v792 = vadd.f32 %v577, %v791
  %793 = vmatprep.mubr.f32.mxu0 %v51
  %794 = vmatmul.mubr.f32.gmra.mxu0 %v50
  %v795 = vpop.f32.mrf.mxu0
  %v796 = vadd.f32 %v581, %v795
  %v797 = vpop.f32.mrf.mxu0
  %v798 = vadd.f32 %v583, %v797
  %799 = vmatprep.mubr.f32.mxu0 %v58
  %800 = vmatmul.mubr.f32.gmra.mxu0 %v57
  %v801 = vpop.f32.mrf.mxu0
  %v802 = vadd.f32 %v587, %v801
  %v803 = vpop.f32.mrf.mxu0
  %v804 = vadd.f32 %v589, %v803
  %805 = vmatprep.mubr.f32.mxu0 %v65
  %806 = vmatmul.mubr.f32.gmra.mxu0 %v64
  %v807 = vpop.f32.mrf.mxu0
  %v808 = vadd.f32 %v593, %v807
  %v809 = vpop.f32.mrf.mxu0
  %v810 = vadd.f32 %v595, %v809
  %811 = vmatprep.mubr.f32.mxu0 %v72
  %812 = vmatmul.mubr.f32.gmra.mxu0 %v71
  %v813 = vpop.f32.mrf.mxu0
  %v814 = vadd.f32 %v599, %v813
  %v815 = vpop.f32.mrf.mxu0
  %v816 = vadd.f32 %v601, %v815
  %817 = vmatprep.mubr.f32.mxu0 %v79
  %818 = vmatmul.mubr.f32.gmra.mxu0 %v78
  %v819 = vpop.f32.mrf.mxu0
  %v820 = vadd.f32 %v605, %v819
  %v821 = vpop.f32.mrf.mxu0
  %v822 = vadd.f32 %v607, %v821
  %823 = vmatprep.mubr.f32.mxu0 %v86
  %824 = vmatmul.mubr.f32.gmra.mxu0 %v85
  %v825 = vpop.f32.mrf.mxu0
  %v826 = vadd.f32 %v611, %v825
  %v827 = vpop.f32.mrf.mxu0
  %v828 = vadd.f32 %v613, %v827
  %829 = vmatprep.mubr.f32.mxu0 %v93
  %830 = vmatmul.mubr.f32.gmra.mxu0 %v92
  %v831 = vpop.f32.mrf.mxu0
  %v832 = vadd.f32 %v617, %v831
  %v833 = vpop.f32.mrf.mxu0
  %v834 = vadd.f32 %v619, %v833
  %835 = vmatprep.mubr.f32.mxu0 %v100
  %836 = vmatmul.mubr.f32.gmra.mxu0 %v99
  %v837 = vpop.f32.mrf.mxu0
  %v838 = vadd.f32 %v623, %v837
  %v839 = vpop.f32.mrf.mxu0
  %v840 = vadd.f32 %v625, %v839
  %841 = vmatprep.mubr.f32.mxu0 %v107
  %842 = vmatmul.mubr.f32.gmra.mxu0 %v106
  %v843 = vpop.f32.mrf.mxu0
  %v844 = vadd.f32 %v629, %v843
  %v845 = vpop.f32.mrf.mxu0
  %v846 = vadd.f32 %v631, %v845
  %847 = vmatprep.mubr.f32.mxu0 %v114
  %848 = vmatmul.mubr.f32.gmra.mxu0 %v113
  %v849 = vpop.f32.mrf.mxu0
  %v850 = vadd.f32 %v635, %v849
  %v851 = vpop.f32.mrf.mxu0
  %v852 = vadd.f32 %v637, %v851
  %853 = vmatprep.mubr.f32.mxu0 %v121
  %854 = vmatmul.mubr.f32.gmra.mxu0 %v120
  %v855 = vpop.f32.mrf.mxu0
  %v856 = vadd.f32 %v641, %v855
  %v857 = vpop.f32.mrf.mxu0
  %v858 = vadd.f32 %v643, %v857
  %859 = vmatprep.mubr.f32.mxu0 %v128
  %860 = vmatmul.mubr.f32.gmra.mxu0 %v127
  %v861 = vpop.f32.mrf.mxu0
  %v862 = vadd.f32 %v647, %v861
  %v863 = vpop.f32.mrf.mxu0
  %v864 = vadd.f32 %v649, %v863
  %865 = vmatprep.mubr.f32.mxu0 %v135
  %866 = vmatmul.mubr.f32.gmra.mxu0 %v134
  %v867 = vpop.f32.mrf.mxu0
  %v868 = vadd.f32 %v653, %v867
  %v869 = vpop.f32.mrf.mxu0
  %v870 = vadd.f32 %v655, %v869
  %871 = vmatprep.mubr.f32.mxu0 %v142
  %872 = vmatmul.mubr.f32.gmra.mxu0 %v141
  %v873 = vpop.f32.mrf.mxu0
  %v874 = vadd.f32 %v659, %v873
  %v875 = vpop.f32.mrf.mxu0
  %v876 = vadd.f32 %v661, %v875
  %877 = vmatprep.mubr.f32.mxu0 %v149
  %878 = vmatmul.mubr.f32.gmra.mxu0 %v148
  %v879 = vpop.f32.mrf.mxu0
  %v880 = vadd.f32 %v665, %v879
  %v881 = vpop.f32.mrf.mxu0
  %v882 = vadd.f32 %v667, %v881
  %883 = vmatprep.mubr.f32.mxu0 %v156
  %884 = vmatmul.mubr.f32.gmra.mxu0 %v155
  %v885 = vpop.f32.mrf.mxu0
  %v886 = vadd.f32 %v671, %v885
  %v887 = vpop.f32.mrf.mxu0
  %v888 = vadd.f32 %v673, %v887
  %889 = vmatprep.mubr.f32.mxu0 %v163
  %890 = vmatmul.mubr.f32.gmra.mxu0 %v162
  %v891 = vpop.f32.mrf.mxu0
  %v892 = vadd.f32 %v677, %v891
  %v893 = vpop.f32.mrf.mxu0
  %v894 = vadd.f32 %v679, %v893
  %895 = vmatprep.mubr.f32.mxu0 %v170
  %896 = vmatmul.mubr.f32.gmra.mxu0 %v169
  %v897 = vpop.f32.mrf.mxu0
  %v898 = vadd.f32 %v683, %v897
  %v899 = vpop.f32.mrf.mxu0
  %v900 = vadd.f32 %v685, %v899
  %901 = vmatprep.mubr.f32.mxu0 %v177
  %902 = vmatmul.mubr.f32.gmra.mxu0 %v176
  %v903 = vpop.f32.mrf.mxu0
  %v904 = vadd.f32 %v689, %v903
  %v905 = vpop.f32.mrf.mxu0
  %v906 = vadd.f32 %v691, %v905
  %907 = vmatprep.mubr.f32.mxu0 %v184
  %908 = vmatmul.mubr.f32.gmra.mxu0 %v183
  %v909 = vpop.f32.mrf.mxu0
  %v910 = vadd.f32 %v695, %v909
  %v911 = vpop.f32.mrf.mxu0
  %v912 = vadd.f32 %v697, %v911
  %913 = vmatprep.mubr.f32.mxu0 %v191
  %914 = vmatmul.mubr.f32.gmra.mxu0 %v190
  %v915 = vpop.f32.mrf.mxu0
  %v916 = vadd.f32 %v701, %v915
  %v917 = vpop.f32.mrf.mxu0
  %v918 = vadd.f32 %v703, %v917
  %919 = vmatprep.mubr.f32.mxu0 %v198
  %920 = vmatmul.mubr.f32.gmra.mxu0 %v197
  %v921 = vpop.f32.mrf.mxu0
  %v922 = vadd.f32 %v707, %v921
  %v923 = vpop.f32.mrf.mxu0
  %v924 = vadd.f32 %v709, %v923
  %925 = vmatprep.mubr.f32.mxu0 %v205
  %926 = vmatmul.mubr.f32.gmra.mxu0 %v204
  %v927 = vpop.f32.mrf.mxu0
  %v928 = vadd.f32 %v713, %v927
  %v929 = vpop.f32.mrf.mxu0
  %v930 = vadd.f32 %v715, %v929
  %931 = vmatprep.mubr.f32.mxu0 %v212
  %932 = vmatmul.mubr.f32.gmra.mxu0 %v211
  %v933 = vpop.f32.mrf.mxu0
  %v934 = vadd.f32 %v719, %v933
  %v935 = vpop.f32.mrf.mxu0
  %v936 = vadd.f32 %v721, %v935
  %937 = vdwg.mxu0
  %938 = vmatprep.subr.mxu0 %v375
  %939 = vmatpush1.msra.mxu0 %v374
  %940 = vmatprep.subr.mxu0 %v373
  %941 = vmatpush1.msra.mxu0 %v372
  %942 = vmatprep.subr.mxu0 %v371
  %943 = vmatpush1.msra.mxu0 %v370
  %944 = vmatprep.subr.mxu0 %v369
  %945 = vmatpush1.msra.mxu0 %v368
  %946 = vmatprep.subr.mxu0 %v367
  %947 = vmatpush1.msra.mxu0 %v366
  %948 = vmatprep.subr.mxu0 %v365
  %949 = vmatpush1.msra.mxu0 %v364
  %950 = vmatprep.subr.mxu0 %v363
  %951 = vmatpush1.msra.mxu0 %v362
  %952 = vmatprep.subr.mxu0 %v361
  %953 = vmatpush1.msra.mxu0 %v360
  %954 = vmatprep.subr.mxu0 %v359
  %955 = vmatpush1.msra.mxu0 %v358
  %956 = vmatprep.subr.mxu0 %v357
  %957 = vmatpush1.msra.mxu0 %v356
  %958 = vmatprep.subr.mxu0 %v355
  %959 = vmatpush1.msra.mxu0 %v354
  %960 = vmatprep.subr.mxu0 %v353
  %961 = vmatpush1.msra.mxu0 %v352
  %962 = vmatprep.subr.mxu0 %v351
  %963 = vmatpush1.msra.mxu0 %v350
  %964 = vmatprep.subr.mxu0 %v349
  %965 = vmatpush1.msra.mxu0 %v348
  %966 = vmatprep.subr.mxu0 %v347
  %967 = vmatpush1.msra.mxu0 %v346
  %968 = vmatprep.subr.mxu0 %v345
  %969 = vmatpush1.msra.mxu0 %v344
  %970 = vmatprep.subr.mxu0 %v407
  %971 = vmatpush2.msra.mxu0 %v406
  %972 = vmatprep.subr.mxu0 %v405
  %973 = vmatpush2.msra.mxu0 %v404
  %974 = vmatprep.subr.mxu0 %v403
  %975 = vmatpush2.msra.mxu0 %v402
  %976 = vmatprep.subr.mxu0 %v401
  %977 = vmatpush2.msra.mxu0 %v400
  %978 = vmatprep.subr.mxu0 %v399
  %979 = vmatpush2.msra.mxu0 %v398
  %980 = vmatprep.subr.mxu0 %v397
  %981 = vmatpush2.msra.mxu0 %v396
  %982 = vmatprep.subr.mxu0 %v395
  %983 = vmatpush2.msra.mxu0 %v394
  %984 = vmatprep.subr.mxu0 %v393
  %985 = vmatpush2.msra.mxu0 %v392
  %986 = vmatprep.subr.mxu0 %v391
  %987 = vmatpush2.msra.mxu0 %v390
  %988 = vmatprep.subr.mxu0 %v389
  %989 = vmatpush2.msra.mxu0 %v388
  %990 = vmatprep.subr.mxu0 %v387
  %991 = vmatpush2.msra.mxu0 %v386
  %992 = vmatprep.subr.mxu0 %v385
  %993 = vmatpush2.msra.mxu0 %v384
  %994 = vmatprep.subr.mxu0 %v383
  %995 = vmatpush2.msra.mxu0 %v382
  %996 = vmatprep.subr.mxu0 %v381
  %997 = vmatpush2.msra.mxu0 %v380
  %998 = vmatprep.subr.mxu0 %v379
  %999 = vmatpush2.msra.mxu0 %v378
  %1000 = vmatprep.subr.mxu0 %v377
  %1001 = vmatpush2.msra.mxu0 %v376
  %1002 = vmatprep.mubr.f32.mxu0 %v46
  %1003 = vmatmul.mubr.f32.gmra.mxu0 %v45
  %v1004 = vpop.f32.mrf.mxu0
  %v1005 = vadd.f32 %v790, %v1004
  %v1006 = vpop.f32.mrf.mxu0
  %v1007 = vadd.f32 %v792, %v1006
  %1008 = vmatprep.mubr.f32.mxu0 %v53
  %1009 = vmatmul.mubr.f32.gmra.mxu0 %v52
  %v1010 = vpop.f32.mrf.mxu0
  %v1011 = vadd.f32 %v796, %v1010
  %v1012 = vpop.f32.mrf.mxu0
  %v1013 = vadd.f32 %v798, %v1012
  %1014 = vmatprep.mubr.f32.mxu0 %v60
  %1015 = vmatmul.mubr.f32.gmra.mxu0 %v59
  %v1016 = vpop.f32.mrf.mxu0
  %v1017 = vadd.f32 %v802, %v1016
  %v1018 = vpop.f32.mrf.mxu0
  %v1019 = vadd.f32 %v804, %v1018
  %1020 = vmatprep.mubr.f32.mxu0 %v67
  %1021 = vmatmul.mubr.f32.gmra.mxu0 %v66
  %v1022 = vpop.f32.mrf.mxu0
  %v1023 = vadd.f32 %v808, %v1022
  %v1024 = vpop.f32.mrf.mxu0
  %v1025 = vadd.f32 %v810, %v1024
  %1026 = vmatprep.mubr.f32.mxu0 %v74
  %1027 = vmatmul.mubr.f32.gmra.mxu0 %v73
  %v1028 = vpop.f32.mrf.mxu0
  %v1029 = vadd.f32 %v814, %v1028
  %v1030 = vpop.f32.mrf.mxu0
  %v1031 = vadd.f32 %v816, %v1030
  %1032 = vmatprep.mubr.f32.mxu0 %v81
  %1033 = vmatmul.mubr.f32.gmra.mxu0 %v80
  %v1034 = vpop.f32.mrf.mxu0
  %v1035 = vadd.f32 %v820, %v1034
  %v1036 = vpop.f32.mrf.mxu0
  %v1037 = vadd.f32 %v822, %v1036
  %1038 = vmatprep.mubr.f32.mxu0 %v88
  %1039 = vmatmul.mubr.f32.gmra.mxu0 %v87
  %v1040 = vpop.f32.mrf.mxu0
  %v1041 = vadd.f32 %v826, %v1040
  %v1042 = vpop.f32.mrf.mxu0
  %v1043 = vadd.f32 %v828, %v1042
  %1044 = vmatprep.mubr.f32.mxu0 %v95
  %1045 = vmatmul.mubr.f32.gmra.mxu0 %v94
  %v1046 = vpop.f32.mrf.mxu0
  %v1047 = vadd.f32 %v832, %v1046
  %v1048 = vpop.f32.mrf.mxu0
  %v1049 = vadd.f32 %v834, %v1048
  %1050 = vmatprep.mubr.f32.mxu0 %v102
  %1051 = vmatmul.mubr.f32.gmra.mxu0 %v101
  %v1052 = vpop.f32.mrf.mxu0
  %v1053 = vadd.f32 %v838, %v1052
  %v1054 = vpop.f32.mrf.mxu0
  %v1055 = vadd.f32 %v840, %v1054
  %1056 = vmatprep.mubr.f32.mxu0 %v109
  %1057 = vmatmul.mubr.f32.gmra.mxu0 %v108
  %v1058 = vpop.f32.mrf.mxu0
  %v1059 = vadd.f32 %v844, %v1058
  %v1060 = vpop.f32.mrf.mxu0
  %v1061 = vadd.f32 %v846, %v1060
  %1062 = vmatprep.mubr.f32.mxu0 %v116
  %1063 = vmatmul.mubr.f32.gmra.mxu0 %v115
  %v1064 = vpop.f32.mrf.mxu0
  %v1065 = vadd.f32 %v850, %v1064
  %v1066 = vpop.f32.mrf.mxu0
  %v1067 = vadd.f32 %v852, %v1066
  %1068 = vmatprep.mubr.f32.mxu0 %v123
  %1069 = vmatmul.mubr.f32.gmra.mxu0 %v122
  %v1070 = vpop.f32.mrf.mxu0
  %v1071 = vadd.f32 %v856, %v1070
  %v1072 = vpop.f32.mrf.mxu0
  %v1073 = vadd.f32 %v858, %v1072
  %1074 = vmatprep.mubr.f32.mxu0 %v130
  %1075 = vmatmul.mubr.f32.gmra.mxu0 %v129
  %v1076 = vpop.f32.mrf.mxu0
  %v1077 = vadd.f32 %v862, %v1076
  %v1078 = vpop.f32.mrf.mxu0
  %v1079 = vadd.f32 %v864, %v1078
  %1080 = vmatprep.mubr.f32.mxu0 %v137
  %1081 = vmatmul.mubr.f32.gmra.mxu0 %v136
  %v1082 = vpop.f32.mrf.mxu0
  %v1083 = vadd.f32 %v868, %v1082
  %v1084 = vpop.f32.mrf.mxu0
  %v1085 = vadd.f32 %v870, %v1084
  %1086 = vmatprep.mubr.f32.mxu0 %v144
  %1087 = vmatmul.mubr.f32.gmra.mxu0 %v143
  %v1088 = vpop.f32.mrf.mxu0
  %v1089 = vadd.f32 %v874, %v1088
  %v1090 = vpop.f32.mrf.mxu0
  %v1091 = vadd.f32 %v876, %v1090
  %1092 = vmatprep.mubr.f32.mxu0 %v151
  %1093 = vmatmul.mubr.f32.gmra.mxu0 %v150
  %v1094 = vpop.f32.mrf.mxu0
  %v1095 = vadd.f32 %v880, %v1094
  %v1096 = vpop.f32.mrf.mxu0
  %v1097 = vadd.f32 %v882, %v1096
  %1098 = vmatprep.mubr.f32.mxu0 %v158
  %1099 = vmatmul.mubr.f32.gmra.mxu0 %v157
  %v1100 = vpop.f32.mrf.mxu0
  %v1101 = vadd.f32 %v886, %v1100
  %v1102 = vpop.f32.mrf.mxu0
  %v1103 = vadd.f32 %v888, %v1102
  %1104 = vmatprep.mubr.f32.mxu0 %v165
  %1105 = vmatmul.mubr.f32.gmra.mxu0 %v164
  %v1106 = vpop.f32.mrf.mxu0
  %v1107 = vadd.f32 %v892, %v1106
  %v1108 = vpop.f32.mrf.mxu0
  %v1109 = vadd.f32 %v894, %v1108
  %1110 = vmatprep.mubr.f32.mxu0 %v172
  %1111 = vmatmul.mubr.f32.gmra.mxu0 %v171
  %v1112 = vpop.f32.mrf.mxu0
  %v1113 = vadd.f32 %v898, %v1112
  %v1114 = vpop.f32.mrf.mxu0
  %v1115 = vadd.f32 %v900, %v1114
  %1116 = vmatprep.mubr.f32.mxu0 %v179
  %1117 = vmatmul.mubr.f32.gmra.mxu0 %v178
  %v1118 = vpop.f32.mrf.mxu0
  %v1119 = vadd.f32 %v904, %v1118
  %v1120 = vpop.f32.mrf.mxu0
  %v1121 = vadd.f32 %v906, %v1120
  %1122 = vmatprep.mubr.f32.mxu0 %v186
  %1123 = vmatmul.mubr.f32.gmra.mxu0 %v185
  %v1124 = vpop.f32.mrf.mxu0
  %v1125 = vadd.f32 %v910, %v1124
  %v1126 = vpop.f32.mrf.mxu0
  %v1127 = vadd.f32 %v912, %v1126
  %1128 = vmatprep.mubr.f32.mxu0 %v193
  %1129 = vmatmul.mubr.f32.gmra.mxu0 %v192
  %v1130 = vpop.f32.mrf.mxu0
  %v1131 = vadd.f32 %v916, %v1130
  %v1132 = vpop.f32.mrf.mxu0
  %v1133 = vadd.f32 %v918, %v1132
  %1134 = vmatprep.mubr.f32.mxu0 %v200
  %1135 = vmatmul.mubr.f32.gmra.mxu0 %v199
  %v1136 = vpop.f32.mrf.mxu0
  %v1137 = vadd.f32 %v922, %v1136
  %v1138 = vpop.f32.mrf.mxu0
  %v1139 = vadd.f32 %v924, %v1138
  %1140 = vmatprep.mubr.f32.mxu0 %v207
  %1141 = vmatmul.mubr.f32.gmra.mxu0 %v206
  %v1142 = vpop.f32.mrf.mxu0
  %v1143 = vadd.f32 %v928, %v1142
  %v1144 = vpop.f32.mrf.mxu0
  %v1145 = vadd.f32 %v930, %v1144
  %1146 = vmatprep.mubr.f32.mxu0 %v214
  %1147 = vmatmul.mubr.f32.gmra.mxu0 %v213
  %v1148 = vpop.f32.mrf.mxu0
  %v1149 = vadd.f32 %v934, %v1148
  %v1150 = vpop.f32.mrf.mxu0
  %v1151 = vadd.f32 %v936, %v1150
  %1152 = vdwg.mxu0
  %1153 = vmatprep.subr.mxu0 0.0
  %1154 = vmatpush1.msra.mxu0 0.0
  %1155 = vmatprep.subr.mxu0 0.0
  %1156 = vmatpush1.msra.mxu0 0.0
  %1157 = vmatprep.subr.mxu0 0.0
  %1158 = vmatpush1.msra.mxu0 0.0
  %1159 = vmatprep.subr.mxu0 0.0
  %1160 = vmatpush1.msra.mxu0 0.0
  %1161 = vmatprep.subr.mxu0 %v431
  %1162 = vmatpush1.msra.mxu0 %v430
  %1163 = vmatprep.subr.mxu0 %v429
  %1164 = vmatpush1.msra.mxu0 %v428
  %1165 = vmatprep.subr.mxu0 %v427
  %1166 = vmatpush1.msra.mxu0 %v426
  %1167 = vmatprep.subr.mxu0 %v425
  %1168 = vmatpush1.msra.mxu0 %v424
  %1169 = vmatprep.subr.mxu0 %v423
  %1170 = vmatpush1.msra.mxu0 %v422
  %1171 = vmatprep.subr.mxu0 %v421
  %1172 = vmatpush1.msra.mxu0 %v420
  %1173 = vmatprep.subr.mxu0 %v419
  %1174 = vmatpush1.msra.mxu0 %v418
  %1175 = vmatprep.subr.mxu0 %v417
  %1176 = vmatpush1.msra.mxu0 %v416
  %1177 = vmatprep.subr.mxu0 %v415
  %1178 = vmatpush1.msra.mxu0 %v414
  %1179 = vmatprep.subr.mxu0 %v413
  %1180 = vmatpush1.msra.mxu0 %v412
  %1181 = vmatprep.subr.mxu0 %v411
  %1182 = vmatpush1.msra.mxu0 %v410
  %1183 = vmatprep.subr.mxu0 %v409
  %1184 = vmatpush1.msra.mxu0 %v408
  %1185 = vmatprep.subr.mxu0 0.0
  %1186 = vmatpush2.msra.mxu0 0.0
  %1187 = vmatprep.subr.mxu0 0.0
  %1188 = vmatpush2.msra.mxu0 0.0
  %1189 = vmatprep.subr.mxu0 0.0
  %1190 = vmatpush2.msra.mxu0 0.0
  %1191 = vmatprep.subr.mxu0 0.0
  %1192 = vmatpush2.msra.mxu0 0.0
  %1193 = vmatprep.subr.mxu0 0.0
  %1194 = vmatpush2.msra.mxu0 0.0
  %1195 = vmatprep.subr.mxu0 0.0
  %1196 = vmatpush2.msra.mxu0 0.0
  %1197 = vmatprep.subr.mxu0 0.0
  %1198 = vmatpush2.msra.mxu0 0.0
  %1199 = vmatprep.subr.mxu0 0.0
  %1200 = vmatpush2.msra.mxu0 0.0
  %1201 = vmatprep.subr.mxu0 0.0
  %1202 = vmatpush2.msra.mxu0 0.0
  %1203 = vmatprep.subr.mxu0 0.0
  %1204 = vmatpush2.msra.mxu0 0.0
  %1205 = vmatprep.subr.mxu0 0.0
  %1206 = vmatpush2.msra.mxu0 0.0
  %1207 = vmatprep.subr.mxu0 0.0
  %1208 = vmatpush2.msra.mxu0 0.0
  %1209 = vmatprep.subr.mxu0 0.0
  %1210 = vmatpush2.msra.mxu0 0.0
  %1211 = vmatprep.subr.mxu0 0.0
  %1212 = vmatpush2.msra.mxu0 0.0
  %1213 = vmatprep.subr.mxu0 0.0
  %1214 = vmatpush2.msra.mxu0 0.0
  %1215 = vmatprep.subr.mxu0 0.0
  %1216 = vmatpush2.msra.mxu0 0.0
  %1217 = vmatprep.mubr.f32.mxu0 0.0
  %1218 = vmatmul.mubr.f32.gmra.mxu0 %v434
  %v1219 = vpop.f32.mrf.mxu0
  %v1220 = vadd.f32 %v1005, %v1219
  %v1221 = vpop.f32.mrf.mxu0
  %v1222 = vadd.f32 %v1007, %v1221
  %1223 = vmatprep.mubr.f32.mxu0 0.0
  %1224 = vmatmul.mubr.f32.gmra.mxu0 %v437
  %v1225 = vpop.f32.mrf.mxu0
  %v1226 = vadd.f32 %v1011, %v1225
  %v1227 = vpop.f32.mrf.mxu0
  %v1228 = vadd.f32 %v1013, %v1227
  %1229 = vmatprep.mubr.f32.mxu0 0.0
  %1230 = vmatmul.mubr.f32.gmra.mxu0 %v440
  %v1231 = vpop.f32.mrf.mxu0
  %v1232 = vadd.f32 %v1017, %v1231
  %v1233 = vpop.f32.mrf.mxu0
  %v1234 = vadd.f32 %v1019, %v1233
  %1235 = vmatprep.mubr.f32.mxu0 0.0
  %1236 = vmatmul.mubr.f32.gmra.mxu0 %v443
  %v1237 = vpop.f32.mrf.mxu0
  %v1238 = vadd.f32 %v1023, %v1237
  %v1239 = vpop.f32.mrf.mxu0
  %v1240 = vadd.f32 %v1025, %v1239
  %1241 = vmatprep.mubr.f32.mxu0 0.0
  %1242 = vmatmul.mubr.f32.gmra.mxu0 %v446
  %v1243 = vpop.f32.mrf.mxu0
  %v1244 = vadd.f32 %v1029, %v1243
  %v1245 = vpop.f32.mrf.mxu0
  %v1246 = vadd.f32 %v1031, %v1245
  %1247 = vmatprep.mubr.f32.mxu0 0.0
  %1248 = vmatmul.mubr.f32.gmra.mxu0 %v449
  %v1249 = vpop.f32.mrf.mxu0
  %v1250 = vadd.f32 %v1035, %v1249
  %v1251 = vpop.f32.mrf.mxu0
  %v1252 = vadd.f32 %v1037, %v1251
  %1253 = vmatprep.mubr.f32.mxu0 0.0
  %1254 = vmatmul.mubr.f32.gmra.mxu0 %v452
  %v1255 = vpop.f32.mrf.mxu0
  %v1256 = vadd.f32 %v1041, %v1255
  %v1257 = vpop.f32.mrf.mxu0
  %v1258 = vadd.f32 %v1043, %v1257
  %1259 = vmatprep.mubr.f32.mxu0 0.0
  %1260 = vmatmul.mubr.f32.gmra.mxu0 %v455
  %v1261 = vpop.f32.mrf.mxu0
  %v1262 = vadd.f32 %v1047, %v1261
  %v1263 = vpop.f32.mrf.mxu0
  %v1264 = vadd.f32 %v1049, %v1263
  %1265 = vmatprep.mubr.f32.mxu0 0.0
  %1266 = vmatmul.mubr.f32.gmra.mxu0 %v458
  %v1267 = vpop.f32.mrf.mxu0
  %v1268 = vadd.f32 %v1053, %v1267
  %v1269 = vpop.f32.mrf.mxu0
  %v1270 = vadd.f32 %v1055, %v1269
  %1271 = vmatprep.mubr.f32.mxu0 0.0
  %1272 = vmatmul.mubr.f32.gmra.mxu0 %v461
  %v1273 = vpop.f32.mrf.mxu0
  %v1274 = vadd.f32 %v1059, %v1273
  %v1275 = vpop.f32.mrf.mxu0
  %v1276 = vadd.f32 %v1061, %v1275
  %1277 = vmatprep.mubr.f32.mxu0 0.0
  %1278 = vmatmul.mubr.f32.gmra.mxu0 %v464
  %v1279 = vpop.f32.mrf.mxu0
  %v1280 = vadd.f32 %v1065, %v1279
  %v1281 = vpop.f32.mrf.mxu0
  %v1282 = vadd.f32 %v1067, %v1281
  %1283 = vmatprep.mubr.f32.mxu0 0.0
  %1284 = vmatmul.mubr.f32.gmra.mxu0 %v467
  %v1285 = vpop.f32.mrf.mxu0
  %v1286 = vadd.f32 %v1071, %v1285
  %v1287 = vpop.f32.mrf.mxu0
  %v1288 = vadd.f32 %v1073, %v1287
  %1289 = vmatprep.mubr.f32.mxu0 0.0
  %1290 = vmatmul.mubr.f32.gmra.mxu0 %v470
  %v1291 = vpop.f32.mrf.mxu0
  %v1292 = vadd.f32 %v1077, %v1291
  %v1293 = vpop.f32.mrf.mxu0
  %v1294 = vadd.f32 %v1079, %v1293
  %1295 = vmatprep.mubr.f32.mxu0 0.0
  %1296 = vmatmul.mubr.f32.gmra.mxu0 %v473
  %v1297 = vpop.f32.mrf.mxu0
  %v1298 = vadd.f32 %v1083, %v1297
  %v1299 = vpop.f32.mrf.mxu0
  %v1300 = vadd.f32 %v1085, %v1299
  %1301 = vmatprep.mubr.f32.mxu0 0.0
  %1302 = vmatmul.mubr.f32.gmra.mxu0 %v476
  %v1303 = vpop.f32.mrf.mxu0
  %v1304 = vadd.f32 %v1089, %v1303
  %v1305 = vpop.f32.mrf.mxu0
  %v1306 = vadd.f32 %v1091, %v1305
  %1307 = vmatprep.mubr.f32.mxu0 0.0
  %1308 = vmatmul.mubr.f32.gmra.mxu0 %v479
  %v1309 = vpop.f32.mrf.mxu0
  %v1310 = vadd.f32 %v1095, %v1309
  %v1311 = vpop.f32.mrf.mxu0
  %v1312 = vadd.f32 %v1097, %v1311
  %1313 = vmatprep.mubr.f32.mxu0 0.0
  %1314 = vmatmul.mubr.f32.gmra.mxu0 %v482
  %v1315 = vpop.f32.mrf.mxu0
  %v1316 = vadd.f32 %v1101, %v1315
  %v1317 = vpop.f32.mrf.mxu0
  %v1318 = vadd.f32 %v1103, %v1317
  %1319 = vmatprep.mubr.f32.mxu0 0.0
  %1320 = vmatmul.mubr.f32.gmra.mxu0 %v485
  %v1321 = vpop.f32.mrf.mxu0
  %v1322 = vadd.f32 %v1107, %v1321
  %v1323 = vpop.f32.mrf.mxu0
  %v1324 = vadd.f32 %v1109, %v1323
  %1325 = vmatprep.mubr.f32.mxu0 0.0
  %1326 = vmatmul.mubr.f32.gmra.mxu0 %v488
  %v1327 = vpop.f32.mrf.mxu0
  %v1328 = vadd.f32 %v1113, %v1327
  %v1329 = vpop.f32.mrf.mxu0
  %v1330 = vadd.f32 %v1115, %v1329
  %1331 = vmatprep.mubr.f32.mxu0 0.0
  %1332 = vmatmul.mubr.f32.gmra.mxu0 %v491
  %v1333 = vpop.f32.mrf.mxu0
  %v1334 = vadd.f32 %v1119, %v1333
  %v1335 = vpop.f32.mrf.mxu0
  %v1336 = vadd.f32 %v1121, %v1335
  %1337 = vmatprep.mubr.f32.mxu0 0.0
  %1338 = vmatmul.mubr.f32.gmra.mxu0 %v494
  %v1339 = vpop.f32.mrf.mxu0
  %v1340 = vadd.f32 %v1125, %v1339
  %v1341 = vpop.f32.mrf.mxu0
  %v1342 = vadd.f32 %v1127, %v1341
  %1343 = vmatprep.mubr.f32.mxu0 0.0
  %1344 = vmatmul.mubr.f32.gmra.mxu0 %v497
  %v1345 = vpop.f32.mrf.mxu0
  %v1346 = vadd.f32 %v1131, %v1345
  %v1347 = vpop.f32.mrf.mxu0
  %v1348 = vadd.f32 %v1133, %v1347
  %1349 = vmatprep.mubr.f32.mxu0 0.0
  %1350 = vmatmul.mubr.f32.gmra.mxu0 %v500
  %v1351 = vpop.f32.mrf.mxu0
  %v1352 = vadd.f32 %v1137, %v1351
  %v1353 = vpop.f32.mrf.mxu0
  %v1354 = vadd.f32 %v1139, %v1353
  %1355 = vmatprep.mubr.f32.mxu0 0.0
  %1356 = vmatmul.mubr.f32.gmra.mxu0 %v503
  %v1357 = vpop.f32.mrf.mxu0
  %v1358 = vadd.f32 %v1143, %v1357
  %v1359 = vpop.f32.mrf.mxu0
  %v1360 = vadd.f32 %v1145, %v1359
  %1361 = vmatprep.mubr.f32.mxu0 0.0
  %1362 = vmatmul.mubr.f32.gmra.mxu0 %v506
  %v1363 = vpop.f32.mrf.mxu0
  %v1364 = vadd.f32 %v1149, %v1363
  %v1365 = vpop.f32.mrf.mxu0
  %v1366 = vadd.f32 %v1151, %v1365
  %1367 = vdwg.mxu0
  %v1368 = vld [vmem:[%s2] sm:$0x3]
  %v1370 = vlaneseq
  %v1371 = vshrl.u32 %v1370, 7
  %v1372 = vsub.s32 0, %v1371
  %v1373 = vrot.slane %v1368, %v1372
  %v1374 = vlaneseq
  %v1375 = vshrl.u32 %v1374, 7
  %v1376 = vsub.s32 1, %v1375
  %v1377 = vrot.slane %v1368, %v1376
  %v1380 = vmul.f32 %v1220, %v1373
  %v1381 = vmul.f32 %v1222, %v1377
  %v1382 = vmul.f32 %v1226, %v1373
  %v1383 = vmul.f32 %v1228, %v1377
  %v1384 = vmul.f32 %v1232, %v1373
  %v1385 = vmul.f32 %v1234, %v1377
  %v1386 = vmul.f32 %v1238, %v1373
  %v1387 = vmul.f32 %v1240, %v1377
  %v1388 = vmul.f32 %v1244, %v1373
  %v1389 = vmul.f32 %v1246, %v1377
  %v1390 = vmul.f32 %v1250, %v1373
  %v1391 = vmul.f32 %v1252, %v1377
  %v1392 = vmul.f32 %v1256, %v1373
  %v1393 = vmul.f32 %v1258, %v1377
  %v1394 = vmul.f32 %v1262, %v1373
  %v1395 = vmul.f32 %v1264, %v1377
  %v1396 = vmul.f32 %v1268, %v1373
  %v1397 = vmul.f32 %v1270, %v1377
  %v1398 = vmul.f32 %v1274, %v1373
  %v1399 = vmul.f32 %v1276, %v1377
  %v1400 = vmul.f32 %v1280, %v1373
  %v1401 = vmul.f32 %v1282, %v1377
  %v1402 = vmul.f32 %v1286, %v1373
  %v1403 = vmul.f32 %v1288, %v1377
  %v1404 = vmul.f32 %v1292, %v1373
  %v1405 = vmul.f32 %v1294, %v1377
  %v1406 = vmul.f32 %v1298, %v1373
  %v1407 = vmul.f32 %v1300, %v1377
  %v1408 = vmul.f32 %v1304, %v1373
  %v1409 = vmul.f32 %v1306, %v1377
  %v1410 = vmul.f32 %v1310, %v1373
  %v1411 = vmul.f32 %v1312, %v1377
  %v1412 = vmul.f32 %v1316, %v1373
  %v1413 = vmul.f32 %v1318, %v1377
  %v1414 = vmul.f32 %v1322, %v1373
  %v1415 = vmul.f32 %v1324, %v1377
  %v1416 = vmul.f32 %v1328, %v1373
  %v1417 = vmul.f32 %v1330, %v1377
  %v1418 = vmul.f32 %v1334, %v1373
  %v1419 = vmul.f32 %v1336, %v1377
  %v1420 = vmul.f32 %v1340, %v1373
  %v1421 = vmul.f32 %v1342, %v1377
  %v1422 = vmul.f32 %v1346, %v1373
  %v1423 = vmul.f32 %v1348, %v1377
  %v1424 = vmul.f32 %v1352, %v1373
  %v1425 = vmul.f32 %v1354, %v1377
  %v1426 = vmul.f32 %v1358, %v1373
  %v1427 = vmul.f32 %v1360, %v1377
  %v1428 = vmul.f32 %v1364, %v1373
  %v1429 = vmul.f32 %v1366, %v1377
  %v1430 = vld [vmem:[%s3] sm:$0x3]
  %v1432 = vlaneseq
  %v1433 = vshrl.u32 %v1432, 7
  %v1434 = vsub.s32 0, %v1433
  %v1435 = vrot.slane %v1430, %v1434
  %v1436 = vlaneseq
  %v1437 = vshrl.u32 %v1436, 7
  %v1438 = vsub.s32 1, %v1437
  %v1439 = vrot.slane %v1430, %v1438
  %v1442 = vadd.f32 %v1380, %v1435
  %v1443 = vadd.f32 %v1381, %v1439
  %v1444 = vadd.f32 %v1382, %v1435
  %v1445 = vadd.f32 %v1383, %v1439
  %v1446 = vadd.f32 %v1384, %v1435
  %v1447 = vadd.f32 %v1385, %v1439
  %v1448 = vadd.f32 %v1386, %v1435
  %v1449 = vadd.f32 %v1387, %v1439
  %v1450 = vadd.f32 %v1388, %v1435
  %v1451 = vadd.f32 %v1389, %v1439
  %v1452 = vadd.f32 %v1390, %v1435
  %v1453 = vadd.f32 %v1391, %v1439
  %v1454 = vadd.f32 %v1392, %v1435
  %v1455 = vadd.f32 %v1393, %v1439
  %v1456 = vadd.f32 %v1394, %v1435
  %v1457 = vadd.f32 %v1395, %v1439
  %v1458 = vadd.f32 %v1396, %v1435
  %v1459 = vadd.f32 %v1397, %v1439
  %v1460 = vadd.f32 %v1398, %v1435
  %v1461 = vadd.f32 %v1399, %v1439
  %v1462 = vadd.f32 %v1400, %v1435
  %v1463 = vadd.f32 %v1401, %v1439
  %v1464 = vadd.f32 %v1402, %v1435
  %v1465 = vadd.f32 %v1403, %v1439
  %v1466 = vadd.f32 %v1404, %v1435
  %v1467 = vadd.f32 %v1405, %v1439
  %v1468 = vadd.f32 %v1406, %v1435
  %v1469 = vadd.f32 %v1407, %v1439
  %v1470 = vadd.f32 %v1408, %v1435
  %v1471 = vadd.f32 %v1409, %v1439
  %v1472 = vadd.f32 %v1410, %v1435
  %v1473 = vadd.f32 %v1411, %v1439
  %v1474 = vadd.f32 %v1412, %v1435
  %v1475 = vadd.f32 %v1413, %v1439
  %v1476 = vadd.f32 %v1414, %v1435
  %v1477 = vadd.f32 %v1415, %v1439
  %v1478 = vadd.f32 %v1416, %v1435
  %v1479 = vadd.f32 %v1417, %v1439
  %v1480 = vadd.f32 %v1418, %v1435
  %v1481 = vadd.f32 %v1419, %v1439
  %v1482 = vadd.f32 %v1420, %v1435
  %v1483 = vadd.f32 %v1421, %v1439
  %v1484 = vadd.f32 %v1422, %v1435
  %v1485 = vadd.f32 %v1423, %v1439
  %v1486 = vadd.f32 %v1424, %v1435
  %v1487 = vadd.f32 %v1425, %v1439
  %v1488 = vadd.f32 %v1426, %v1435
  %v1489 = vadd.f32 %v1427, %v1439
  %v1490 = vadd.f32 %v1428, %v1435
  %v1491 = vadd.f32 %v1429, %v1439
  %v1492 = vmax.f32 %v1442, 0.0
  %v1493 = vmax.f32 %v1443, 0.0
  %v1494 = vmax.f32 %v1444, 0.0
  %v1495 = vmax.f32 %v1445, 0.0
  %v1496 = vmax.f32 %v1446, 0.0
  %v1497 = vmax.f32 %v1447, 0.0
  %v1498 = vmax.f32 %v1448, 0.0
  %v1499 = vmax.f32 %v1449, 0.0
  %v1500 = vmax.f32 %v1450, 0.0
  %v1501 = vmax.f32 %v1451, 0.0
  %v1502 = vmax.f32 %v1452, 0.0
  %v1503 = vmax.f32 %v1453, 0.0
  %v1504 = vmax.f32 %v1454, 0.0
  %v1505 = vmax.f32 %v1455, 0.0
  %v1506 = vmax.f32 %v1456, 0.0
  %v1507 = vmax.f32 %v1457, 0.0
  %v1508 = vmax.f32 %v1458, 0.0
  %v1509 = vmax.f32 %v1459, 0.0
  %v1510 = vmax.f32 %v1460, 0.0
  %v1511 = vmax.f32 %v1461, 0.0
  %v1512 = vmax.f32 %v1462, 0.0
  %v1513 = vmax.f32 %v1463, 0.0
  %v1514 = vmax.f32 %v1464, 0.0
  %v1515 = vmax.f32 %v1465, 0.0
  %v1516 = vmax.f32 %v1466, 0.0
  %v1517 = vmax.f32 %v1467, 0.0
  %v1518 = vmax.f32 %v1468, 0.0
  %v1519 = vmax.f32 %v1469, 0.0
  %v1520 = vmax.f32 %v1470, 0.0
  %v1521 = vmax.f32 %v1471, 0.0
  %v1522 = vmax.f32 %v1472, 0.0
  %v1523 = vmax.f32 %v1473, 0.0
  %v1524 = vmax.f32 %v1474, 0.0
  %v1525 = vmax.f32 %v1475, 0.0
  %v1526 = vmax.f32 %v1476, 0.0
  %v1527 = vmax.f32 %v1477, 0.0
  %v1528 = vmax.f32 %v1478, 0.0
  %v1529 = vmax.f32 %v1479, 0.0
  %v1530 = vmax.f32 %v1480, 0.0
  %v1531 = vmax.f32 %v1481, 0.0
  %v1532 = vmax.f32 %v1482, 0.0
  %v1533 = vmax.f32 %v1483, 0.0
  %v1534 = vmax.f32 %v1484, 0.0
  %v1535 = vmax.f32 %v1485, 0.0
  %v1536 = vmax.f32 %v1486, 0.0
  %v1537 = vmax.f32 %v1487, 0.0
  %v1538 = vmax.f32 %v1488, 0.0
  %v1539 = vmax.f32 %v1489, 0.0
  %v1540 = vmax.f32 %v1490, 0.0
  %v1541 = vmax.f32 %v1491, 0.0
  %v1542 = vld [vmem:[%s7] sm:$0xff]
  %v1543 = vld [vmem:[%s4] sm:$0xff]
  %v1544 = vld [vmem:[%s4 + $0x8] sm:$0xff]
  %v1545 = vld [vmem:[%s4 + $0x10] sm:$0xff]
  %v1546 = vld [vmem:[%s4 + $0x18] sm:$0xff]
  %v1547 = vld [vmem:[%s4 + $0x20] sm:$0xff]
  %v1548 = vld [vmem:[%s4 + $0x28] sm:$0xff]
  %v1549 = vld [vmem:[%s4 + $0x30] sm:$0xff]
  %v1550 = vld [vmem:[%s4 + $0x38] sm:$0xff]
  %v1551 = vld [vmem:[%s4 + $0x40] sm:$0xff]
  %v1552 = vld [vmem:[%s4 + $0x48] sm:$0xff]
  %v1553 = vld [vmem:[%s4 + $0x50] sm:$0xff]
  %v1554 = vld [vmem:[%s4 + $0x58] sm:$0xff]
  %v1555 = vld [vmem:[%s4 + $0x60] sm:$0xff]
  %v1556 = vld [vmem:[%s4 + $0x68] sm:$0xff]
  %v1557 = vld [vmem:[%s4 + $0x70] sm:$0xff]
  %v1558 = vld [vmem:[%s4 + $0x78] sm:$0xff]
  %v1559 = vld [vmem:[%s4 + $0x80] sm:$0xff]
  %v1560 = vld [vmem:[%s4 + $0x88] sm:$0xff]
  %v1561 = vld [vmem:[%s4 + $0x90] sm:$0xff]
  %v1562 = vld [vmem:[%s4 + $0x98] sm:$0xff]
  %v1563 = vld [vmem:[%s4 + $0xa0] sm:$0xff]
  %v1564 = vld [vmem:[%s4 + $0xa8] sm:$0xff]
  %v1565 = vld [vmem:[%s4 + $0xb0] sm:$0xff]
  %v1566 = vld [vmem:[%s4 + $0xb8] sm:$0xff]
  %v1567 = vld [vmem:[%s4 + $0xc0] sm:$0xff]
  %v1569 = vcombine.high %v1542, %v1542
  %vm1570 = vcmask 588800
  %v1571 = vsel %vm1570, %v1569, 0
  %1573 = vmatprep.subr.mxu0 0.0
  %1574 = vmatpush1.msra.mxu0 %v1558
  %1575 = vmatprep.subr.mxu0 0.0
  %1576 = vmatpush1.msra.mxu0 %v1557
  %1577 = vmatprep.subr.mxu0 0.0
  %1578 = vmatpush1.msra.mxu0 %v1556
  %1579 = vmatprep.subr.mxu0 0.0
  %1580 = vmatpush1.msra.mxu0 %v1555
  %1581 = vmatprep.subr.mxu0 0.0
  %1582 = vmatpush1.msra.mxu0 %v1554
  %1583 = vmatprep.subr.mxu0 0.0
  %1584 = vmatpush1.msra.mxu0 %v1553
  %1585 = vmatprep.subr.mxu0 0.0
  %1586 = vmatpush1.msra.mxu0 %v1552
  %1587 = vmatprep.subr.mxu0 0.0
  %1588 = vmatpush1.msra.mxu0 %v1551
  %1589 = vmatprep.subr.mxu0 0.0
  %1590 = vmatpush1.msra.mxu0 %v1550
  %1591 = vmatprep.subr.mxu0 0.0
  %1592 = vmatpush1.msra.mxu0 %v1549
  %1593 = vmatprep.subr.mxu0 0.0
  %1594 = vmatpush1.msra.mxu0 %v1548
  %1595 = vmatprep.subr.mxu0 0.0
  %1596 = vmatpush1.msra.mxu0 %v1547
  %1597 = vmatprep.subr.mxu0 0.0
  %1598 = vmatpush1.msra.mxu0 %v1546
  %1599 = vmatprep.subr.mxu0 0.0
  %1600 = vmatpush1.msra.mxu0 %v1545
  %1601 = vmatprep.subr.mxu0 0.0
  %1602 = vmatpush1.msra.mxu0 %v1544
  %1603 = vmatprep.subr.mxu0 0.0
  %1604 = vmatpush1.msra.mxu0 %v1543
  %1605 = vmatprep.subr.mxu0 0.0
  %1606 = vmatpush2.msra.mxu0 0.0
  %1607 = vmatprep.subr.mxu0 0.0
  %1608 = vmatpush2.msra.mxu0 0.0
  %1609 = vmatprep.subr.mxu0 0.0
  %1610 = vmatpush2.msra.mxu0 0.0
  %1611 = vmatprep.subr.mxu0 0.0
  %1612 = vmatpush2.msra.mxu0 0.0
  %1613 = vmatprep.subr.mxu0 0.0
  %1614 = vmatpush2.msra.mxu0 0.0
  %1615 = vmatprep.subr.mxu0 0.0
  %1616 = vmatpush2.msra.mxu0 0.0
  %1617 = vmatprep.subr.mxu0 0.0
  %1618 = vmatpush2.msra.mxu0 0.0
  %1619 = vmatprep.subr.mxu0 0.0
  %1620 = vmatpush2.msra.mxu0 %v1567
  %1621 = vmatprep.subr.mxu0 0.0
  %1622 = vmatpush2.msra.mxu0 %v1566
  %1623 = vmatprep.subr.mxu0 0.0
  %1624 = vmatpush2.msra.mxu0 %v1565
  %1625 = vmatprep.subr.mxu0 0.0
  %1626 = vmatpush2.msra.mxu0 %v1564
  %1627 = vmatprep.subr.mxu0 0.0
  %1628 = vmatpush2.msra.mxu0 %v1563
  %1629 = vmatprep.subr.mxu0 0.0
  %1630 = vmatpush2.msra.mxu0 %v1562
  %1631 = vmatprep.subr.mxu0 0.0
  %1632 = vmatpush2.msra.mxu0 %v1561
  %1633 = vmatprep.subr.mxu0 0.0
  %1634 = vmatpush2.msra.mxu0 %v1560
  %1635 = vmatprep.subr.mxu0 0.0
  %1636 = vmatpush2.msra.mxu0 %v1559
  %1637 = vmatprep.mubr.f32.mxu0 %v1571
  %1638 = vmatmul.mubr.f32.gmra.mxu0 %v1542
  %v1639 = vpop.f32.mrf.mxu0
  %v1640 = vadd.f32 0.0, %v1639
  %v1641 = vpop.f32.mrf.mxu0
  %1642 = vdwg.mxu0
  %v1643 = vld [vmem:[%s5] sm:$0xff]
  %v1644 = vld [vmem:[%s5 + $0x8] sm:$0xff]
  %v1645 = vld [vmem:[%s5 + $0x10] sm:$0xff]
  %v1646 = vld [vmem:[%s5 + $0x18] sm:$0xff]
  %v1647 = vld [vmem:[%s5 + $0x20] sm:$0xff]
  %v1648 = vld [vmem:[%s5 + $0x28] sm:$0xff]
  %v1649 = vld [vmem:[%s5 + $0x30] sm:$0xff]
  %v1650 = vld [vmem:[%s5 + $0x38] sm:$0xff]
  %v1651 = vld [vmem:[%s5 + $0x40] sm:$0xff]
  %v1652 = vld [vmem:[%s5 + $0x48] sm:$0xff]
  %v1653 = vld [vmem:[%s5 + $0x50] sm:$0xff]
  %v1654 = vld [vmem:[%s5 + $0x58] sm:$0xff]
  %v1655 = vld [vmem:[%s5 + $0x60] sm:$0xff]
  %v1656 = vld [vmem:[%s5 + $0x68] sm:$0xff]
  %v1657 = vld [vmem:[%s5 + $0x70] sm:$0xff]
  %v1658 = vld [vmem:[%s5 + $0x78] sm:$0xff]
  %v1659 = vld [vmem:[%s5 + $0x80] sm:$0xff]
  %v1660 = vld [vmem:[%s5 + $0x88] sm:$0xff]
  %v1661 = vld [vmem:[%s5 + $0x90] sm:$0xff]
  %v1662 = vld [vmem:[%s5 + $0x98] sm:$0xff]
  %v1663 = vld [vmem:[%s5 + $0xa0] sm:$0xff]
  %v1664 = vld [vmem:[%s5 + $0xa8] sm:$0xff]
  %v1665 = vld [vmem:[%s5 + $0xb0] sm:$0xff]
  %v1666 = vld [vmem:[%s5 + $0xb8] sm:$0xff]
  %v1667 = vld [vmem:[%s5 + $0xc0] sm:$0xff]
  %1668 = vmatprep.subr.mxu0 0.0
  %1669 = vmatpush1.msra.mxu0 %v1658
  %1670 = vmatprep.subr.mxu0 0.0
  %1671 = vmatpush1.msra.mxu0 %v1657
  %1672 = vmatprep.subr.mxu0 0.0
  %1673 = vmatpush1.msra.mxu0 %v1656
  %1674 = vmatprep.subr.mxu0 0.0
  %1675 = vmatpush1.msra.mxu0 %v1655
  %1676 = vmatprep.subr.mxu0 0.0
  %1677 = vmatpush1.msra.mxu0 %v1654
  %1678 = vmatprep.subr.mxu0 0.0
  %1679 = vmatpush1.msra.mxu0 %v1653
  %1680 = vmatprep.subr.mxu0 0.0
  %1681 = vmatpush1.msra.mxu0 %v1652
  %1682 = vmatprep.subr.mxu0 0.0
  %1683 = vmatpush1.msra.mxu0 %v1651
  %1684 = vmatprep.subr.mxu0 0.0
  %1685 = vmatpush1.msra.mxu0 %v1650
  %1686 = vmatprep.subr.mxu0 0.0
  %1687 = vmatpush1.msra.mxu0 %v1649
  %1688 = vmatprep.subr.mxu0 0.0
  %1689 = vmatpush1.msra.mxu0 %v1648
  %1690 = vmatprep.subr.mxu0 0.0
  %1691 = vmatpush1.msra.mxu0 %v1647
  %1692 = vmatprep.subr.mxu0 0.0
  %1693 = vmatpush1.msra.mxu0 %v1646
  %1694 = vmatprep.subr.mxu0 0.0
  %1695 = vmatpush1.msra.mxu0 %v1645
  %1696 = vmatprep.subr.mxu0 0.0
  %1697 = vmatpush1.msra.mxu0 %v1644
  %1698 = vmatprep.subr.mxu0 0.0
  %1699 = vmatpush1.msra.mxu0 %v1643
  %1700 = vmatprep.subr.mxu0 0.0
  %1701 = vmatpush2.msra.mxu0 0.0
  %1702 = vmatprep.subr.mxu0 0.0
  %1703 = vmatpush2.msra.mxu0 0.0
  %1704 = vmatprep.subr.mxu0 0.0
  %1705 = vmatpush2.msra.mxu0 0.0
  %1706 = vmatprep.subr.mxu0 0.0
  %1707 = vmatpush2.msra.mxu0 0.0
  %1708 = vmatprep.subr.mxu0 0.0
  %1709 = vmatpush2.msra.mxu0 0.0
  %1710 = vmatprep.subr.mxu0 0.0
  %1711 = vmatpush2.msra.mxu0 0.0
  %1712 = vmatprep.subr.mxu0 0.0
  %1713 = vmatpush2.msra.mxu0 0.0
  %1714 = vmatprep.subr.mxu0 0.0
  %1715 = vmatpush2.msra.mxu0 %v1667
  %1716 = vmatprep.subr.mxu0 0.0
  %1717 = vmatpush2.msra.mxu0 %v1666
  %1718 = vmatprep.subr.mxu0 0.0
  %1719 = vmatpush2.msra.mxu0 %v1665
  %1720 = vmatprep.subr.mxu0 0.0
  %1721 = vmatpush2.msra.mxu0 %v1664
  %1722 = vmatprep.subr.mxu0 0.0
  %1723 = vmatpush2.msra.mxu0 %v1663
  %1724 = vmatprep.subr.mxu0 0.0
  %1725 = vmatpush2.msra.mxu0 %v1662
  %1726 = vmatprep.subr.mxu0 0.0
  %1727 = vmatpush2.msra.mxu0 %v1661
  %1728 = vmatprep.subr.mxu0 0.0
  %1729 = vmatpush2.msra.mxu0 %v1660
  %1730 = vmatprep.subr.mxu0 0.0
  %1731 = vmatpush2.msra.mxu0 %v1659
  %1732 = vmatprep.mubr.f32.mxu0 %v1571
  %1733 = vmatmul.mubr.f32.gmra.mxu0 %v1542
  %v1734 = vpop.f32.mrf.mxu0
  %v1735 = vadd.f32 0.0, %v1734
  %v1736 = vpop.f32.mrf.mxu0
  %1737 = vdwg.mxu0
  %1738 = vmatprep.subr.mxu0 %v1523
  %1739 = vmatpush1.msra.mxu0 %v1522
  %1740 = vmatprep.subr.mxu0 %v1521
  %1741 = vmatpush1.msra.mxu0 %v1520
  %1742 = vmatprep.subr.mxu0 %v1519
  %1743 = vmatpush1.msra.mxu0 %v1518
  %1744 = vmatprep.subr.mxu0 %v1517
  %1745 = vmatpush1.msra.mxu0 %v1516
  %1746 = vmatprep.subr.mxu0 %v1515
  %1747 = vmatpush1.msra.mxu0 %v1514
  %1748 = vmatprep.subr.mxu0 %v1513
  %1749 = vmatpush1.msra.mxu0 %v1512
  %1750 = vmatprep.subr.mxu0 %v1511
  %1751 = vmatpush1.msra.mxu0 %v1510
  %1752 = vmatprep.subr.mxu0 %v1509
  %1753 = vmatpush1.msra.mxu0 %v1508
  %1754 = vmatprep.subr.mxu0 %v1507
  %1755 = vmatpush1.msra.mxu0 %v1506
  %1756 = vmatprep.subr.mxu0 %v1505
  %1757 = vmatpush1.msra.mxu0 %v1504
  %1758 = vmatprep.subr.mxu0 %v1503
  %1759 = vmatpush1.msra.mxu0 %v1502
  %1760 = vmatprep.subr.mxu0 %v1501
  %1761 = vmatpush1.msra.mxu0 %v1500
  %1762 = vmatprep.subr.mxu0 %v1499
  %1763 = vmatpush1.msra.mxu0 %v1498
  %1764 = vmatprep.subr.mxu0 %v1497
  %1765 = vmatpush1.msra.mxu0 %v1496
  %1766 = vmatprep.subr.mxu0 %v1495
  %1767 = vmatpush1.msra.mxu0 %v1494
  %1768 = vmatprep.subr.mxu0 %v1493
  %1769 = vmatpush1.msra.mxu0 %v1492
  %1770 = vmatprep.subr.mxu0 0.0
  %1771 = vmatpush2.msra.mxu0 0.0
  %1772 = vmatprep.subr.mxu0 0.0
  %1773 = vmatpush2.msra.mxu0 0.0
  %1774 = vmatprep.subr.mxu0 0.0
  %1775 = vmatpush2.msra.mxu0 0.0
  %1776 = vmatprep.subr.mxu0 0.0
  %1777 = vmatpush2.msra.mxu0 0.0
  %1778 = vmatprep.subr.mxu0 0.0
  %1779 = vmatpush2.msra.mxu0 0.0
  %1780 = vmatprep.subr.mxu0 0.0
  %1781 = vmatpush2.msra.mxu0 0.0
  %1782 = vmatprep.subr.mxu0 0.0
  %1783 = vmatpush2.msra.mxu0 0.0
  %1784 = vmatprep.subr.mxu0 %v1541
  %1785 = vmatpush2.msra.mxu0 %v1540
  %1786 = vmatprep.subr.mxu0 %v1539
  %1787 = vmatpush2.msra.mxu0 %v1538
  %1788 = vmatprep.subr.mxu0 %v1537
  %1789 = vmatpush2.msra.mxu0 %v1536
  %1790 = vmatprep.subr.mxu0 %v1535
  %1791 = vmatpush2.msra.mxu0 %v1534
  %1792 = vmatprep.subr.mxu0 %v1533
  %1793 = vmatpush2.msra.mxu0 %v1532
  %1794 = vmatprep.subr.mxu0 %v1531
  %1795 = vmatpush2.msra.mxu0 %v1530
  %1796 = vmatprep.subr.mxu0 %v1529
  %1797 = vmatpush2.msra.mxu0 %v1528
  %1798 = vmatprep.subr.mxu0 %v1527
  %1799 = vmatpush2.msra.mxu0 %v1526
  %1800 = vmatprep.subr.mxu0 %v1525
  %1801 = vmatpush2.msra.mxu0 %v1524
  %1802 = vmatprep.mubr.f32.mxu0 %v1571
  %1803 = vmatmul.mubr.f32.gmra.mxu0 %v1542
  %v1804 = vpop.f32.mrf.mxu0
  %v1805 = vadd.f32 0.0, %v1804
  %v1806 = vpop.f32.mrf.mxu0
  %v1807 = vadd.f32 0.0, %v1806
  %1808 = vdwg.mxu0
  %v1809 = vld [vmem:[%s6] sm:$0xff]
  %v1810 = vld [vmem:[%s6 + $0x8] sm:$0xff]
  %v1811 = vld [vmem:[%s6 + $0x10] sm:$0xff]
  %v1812 = vld [vmem:[%s6 + $0x18] sm:$0xff]
  %v1813 = vld [vmem:[%s6 + $0x20] sm:$0xff]
  %v1814 = vld [vmem:[%s6 + $0x28] sm:$0xff]
  %v1815 = vld [vmem:[%s6 + $0x30] sm:$0xff]
  %v1816 = vld [vmem:[%s6 + $0x38] sm:$0xff]
  %v1817 = vld [vmem:[%s6 + $0x40] sm:$0xff]
  %v1818 = vld [vmem:[%s6 + $0x48] sm:$0xff]
  %v1819 = vld [vmem:[%s6 + $0x50] sm:$0xff]
  %v1820 = vld [vmem:[%s6 + $0x58] sm:$0xff]
  %v1821 = vld [vmem:[%s6 + $0x60] sm:$0xff]
  %v1822 = vld [vmem:[%s6 + $0x68] sm:$0xff]
  %v1823 = vld [vmem:[%s6 + $0x70] sm:$0xff]
  %v1824 = vld [vmem:[%s6 + $0x78] sm:$0xff]
  %v1825 = vld [vmem:[%s6 + $0x80] sm:$0xff]
  %v1826 = vld [vmem:[%s6 + $0x88] sm:$0xff]
  %v1827 = vld [vmem:[%s6 + $0x90] sm:$0xff]
  %v1828 = vld [vmem:[%s6 + $0x98] sm:$0xff]
  %v1829 = vld [vmem:[%s6 + $0xa0] sm:$0xff]
  %v1830 = vld [vmem:[%s6 + $0xa8] sm:$0xff]
  %v1831 = vld [vmem:[%s6 + $0xb0] sm:$0xff]
  %v1832 = vld [vmem:[%s6 + $0xb8] sm:$0xff]
  %v1833 = vld [vmem:[%s6 + $0xc0] sm:$0xff]
  %1834 = vmatprep.subr.mxu0 0.0
  %1835 = vmatpush1.msra.mxu0 %v1824
  %1836 = vmatprep.subr.mxu0 0.0
  %1837 = vmatpush1.msra.mxu0 %v1823
  %1838 = vmatprep.subr.mxu0 0.0
  %1839 = vmatpush1.msra.mxu0 %v1822
  %1840 = vmatprep.subr.mxu0 0.0
  %1841 = vmatpush1.msra.mxu0 %v1821
  %1842 = vmatprep.subr.mxu0 0.0
  %1843 = vmatpush1.msra.mxu0 %v1820
  %1844 = vmatprep.subr.mxu0 0.0
  %1845 = vmatpush1.msra.mxu0 %v1819
  %1846 = vmatprep.subr.mxu0 0.0
  %1847 = vmatpush1.msra.mxu0 %v1818
  %1848 = vmatprep.subr.mxu0 0.0
  %1849 = vmatpush1.msra.mxu0 %v1817
  %1850 = vmatprep.subr.mxu0 0.0
  %1851 = vmatpush1.msra.mxu0 %v1816
  %1852 = vmatprep.subr.mxu0 0.0
  %1853 = vmatpush1.msra.mxu0 %v1815
  %1854 = vmatprep.subr.mxu0 0.0
  %1855 = vmatpush1.msra.mxu0 %v1814
  %1856 = vmatprep.subr.mxu0 0.0
  %1857 = vmatpush1.msra.mxu0 %v1813
  %1858 = vmatprep.subr.mxu0 0.0
  %1859 = vmatpush1.msra.mxu0 %v1812
  %1860 = vmatprep.subr.mxu0 0.0
  %1861 = vmatpush1.msra.mxu0 %v1811
  %1862 = vmatprep.subr.mxu0 0.0
  %1863 = vmatpush1.msra.mxu0 %v1810
  %1864 = vmatprep.subr.mxu0 0.0
  %1865 = vmatpush1.msra.mxu0 %v1809
  %1866 = vmatprep.subr.mxu0 0.0
  %1867 = vmatpush2.msra.mxu0 0.0
  %1868 = vmatprep.subr.mxu0 0.0
  %1869 = vmatpush2.msra.mxu0 0.0
  %1870 = vmatprep.subr.mxu0 0.0
  %1871 = vmatpush2.msra.mxu0 0.0
  %1872 = vmatprep.subr.mxu0 0.0
  %1873 = vmatpush2.msra.mxu0 0.0
  %1874 = vmatprep.subr.mxu0 0.0
  %1875 = vmatpush2.msra.mxu0 0.0
  %1876 = vmatprep.subr.mxu0 0.0
  %1877 = vmatpush2.msra.mxu0 0.0
  %1878 = vmatprep.subr.mxu0 0.0
  %1879 = vmatpush2.msra.mxu0 0.0
  %1880 = vmatprep.subr.mxu0 0.0
  %1881 = vmatpush2.msra.mxu0 %v1833
  %1882 = vmatprep.subr.mxu0 0.0
  %1883 = vmatpush2.msra.mxu0 %v1832
  %1884 = vmatprep.subr.mxu0 0.0
  %1885 = vmatpush2.msra.mxu0 %v1831
  %1886 = vmatprep.subr.mxu0 0.0
  %1887 = vmatpush2.msra.mxu0 %v1830
  %1888 = vmatprep.subr.mxu0 0.0
  %1889 = vmatpush2.msra.mxu0 %v1829
  %1890 = vmatprep.subr.mxu0 0.0
  %1891 = vmatpush2.msra.mxu0 %v1828
  %1892 = vmatprep.subr.mxu0 0.0
  %1893 = vmatpush2.msra.mxu0 %v1827
  %1894 = vmatprep.subr.mxu0 0.0
  %1895 = vmatpush2.msra.mxu0 %v1826
  %1896 = vmatprep.subr.mxu0 0.0
  %1897 = vmatpush2.msra.mxu0 %v1825
  %1898 = vmatprep.mubr.f32.mxu0 %v1571
  %1899 = vmatmul.mubr.f32.gmra.mxu0 %v1542
  %v1900 = vpop.f32.mrf.mxu0
  %v1901 = vadd.f32 0.0, %v1900
  %v1902 = vpop.f32.mrf.mxu0
  %1903 = vdwg.mxu0
  %v1904 = vld [vmem:[%s8] sm:$0xff]
  %v1905 = vld [vmem:[%s8 + $0x8] sm:$0xff]
  %v1906 = vld [vmem:[%s8 + $0x10] sm:$0xff]
  %v1907 = vld [vmem:[%s8 + $0x18] sm:$0xff]
  %v1908 = vld [vmem:[%s8 + $0x20] sm:$0xff]
  %v1909 = vld [vmem:[%s8 + $0x28] sm:$0xff]
  %v1910 = vld [vmem:[%s8 + $0x30] sm:$0xff]
  %v1911 = vld [vmem:[%s8 + $0x38] sm:$0xff]
  %v1912 = vld [vmem:[%s8 + $0x40] sm:$0xff]
  %v1913 = vld [vmem:[%s8 + $0x48] sm:$0xff]
  %v1914 = vld [vmem:[%s8 + $0x50] sm:$0xff]
  %v1915 = vld [vmem:[%s8 + $0x58] sm:$0xff]
  %v1916 = vld [vmem:[%s8 + $0x60] sm:$0xff]
  %v1917 = vld [vmem:[%s8 + $0x68] sm:$0xff]
  %v1918 = vld [vmem:[%s8 + $0x70] sm:$0xff]
  %v1919 = vld [vmem:[%s8 + $0x78] sm:$0xff]
  %v1920 = vld [vmem:[%s8 + $0x80] sm:$0xff]
  %v1921 = vld [vmem:[%s8 + $0x88] sm:$0xff]
  %v1922 = vld [vmem:[%s8 + $0x90] sm:$0xff]
  %v1923 = vld [vmem:[%s8 + $0x98] sm:$0xff]
  %v1924 = vld [vmem:[%s8 + $0xa0] sm:$0xff]
  %v1925 = vld [vmem:[%s8 + $0xa8] sm:$0xff]
  %v1926 = vld [vmem:[%s8 + $0xb0] sm:$0xff]
  %v1927 = vld [vmem:[%s8 + $0xb8] sm:$0xff]
  %v1928 = vld [vmem:[%s8 + $0xc0] sm:$0xff]
  %v1929 = vld [vmem:[%s8 + $0xc8] sm:$0xff]
  %v1930 = vld [vmem:[%s8 + $0xd0] sm:$0xff]
  %v1931 = vld [vmem:[%s8 + $0xd8] sm:$0xff]
  %v1932 = vld [vmem:[%s8 + $0xe0] sm:$0xff]
  %v1933 = vld [vmem:[%s8 + $0xe8] sm:$0xff]
  %v1934 = vld [vmem:[%s8 + $0xf0] sm:$0xff]
  %v1935 = vld [vmem:[%s8 + $0xf8] sm:$0xff]
  %v1936 = vld [vmem:[%s8 + $0x100] sm:$0xff]
  %v1937 = vld [vmem:[%s8 + $0x108] sm:$0xff]
  %v1938 = vld [vmem:[%s8 + $0x110] sm:$0xff]
  %v1939 = vld [vmem:[%s8 + $0x118] sm:$0xff]
  %v1940 = vld [vmem:[%s8 + $0x120] sm:$0xff]
  %v1941 = vld [vmem:[%s8 + $0x128] sm:$0xff]
  %v1942 = vld [vmem:[%s8 + $0x130] sm:$0xff]
  %v1943 = vld [vmem:[%s8 + $0x138] sm:$0xff]
  %v1944 = vld [vmem:[%s8 + $0x140] sm:$0xff]
  %v1945 = vld [vmem:[%s8 + $0x148] sm:$0xff]
  %v1946 = vld [vmem:[%s8 + $0x150] sm:$0xff]
  %v1947 = vld [vmem:[%s8 + $0x158] sm:$0xff]
  %v1948 = vld [vmem:[%s8 + $0x160] sm:$0xff]
  %v1949 = vld [vmem:[%s8 + $0x168] sm:$0xff]
  %v1950 = vld [vmem:[%s8 + $0x170] sm:$0xff]
  %v1951 = vld [vmem:[%s8 + $0x178] sm:$0xff]
  %1952 = vmatprep.subr.mxu0 %v1951
  %1953 = vmatpush1.msra.mxu0 %v1950
  %1954 = vmatprep.subr.mxu0 %v1949
  %1955 = vmatpush1.msra.mxu0 %v1948
  %1956 = vmatprep.subr.mxu0 %v1947
  %1957 = vmatpush1.msra.mxu0 %v1946
  %1958 = vmatprep.subr.mxu0 %v1945
  %1959 = vmatpush1.msra.mxu0 %v1944
  %1960 = vmatprep.subr.mxu0 %v1943
  %1961 = vmatpush1.msra.mxu0 %v1942
  %1962 = vmatprep.subr.mxu0 %v1941
  %1963 = vmatpush1.msra.mxu0 %v1940
  %1964 = vmatprep.subr.mxu0 %v1939
  %1965 = vmatpush1.msra.mxu0 %v1938
  %1966 = vmatprep.subr.mxu0 %v1937
  %1967 = vmatpush1.msra.mxu0 %v1936
  %1968 = vmatprep.subr.mxu0 %v1935
  %1969 = vmatpush1.msra.mxu0 %v1934
  %1970 = vmatprep.subr.mxu0 %v1933
  %1971 = vmatpush1.msra.mxu0 %v1932
  %1972 = vmatprep.subr.mxu0 %v1931
  %1973 = vmatpush1.msra.mxu0 %v1930
  %1974 = vmatprep.subr.mxu0 %v1929
  %1975 = vmatpush1.msra.mxu0 %v1928
  %1976 = vmatprep.subr.mxu0 %v1927
  %1977 = vmatpush1.msra.mxu0 %v1926
  %1978 = vmatprep.subr.mxu0 %v1925
  %1979 = vmatpush1.msra.mxu0 %v1924
  %1980 = vmatprep.subr.mxu0 %v1923
  %1981 = vmatpush1.msra.mxu0 %v1922
  %1982 = vmatprep.subr.mxu0 %v1921
  %1983 = vmatpush1.msra.mxu0 %v1920
  %1984 = vmatprep.subr.mxu0 0.0
  %1985 = vmatpush2.msra.mxu0 0.0
  %1986 = vmatprep.subr.mxu0 0.0
  %1987 = vmatpush2.msra.mxu0 0.0
  %1988 = vmatprep.subr.mxu0 0.0
  %1989 = vmatpush2.msra.mxu0 0.0
  %1990 = vmatprep.subr.mxu0 0.0
  %1991 = vmatpush2.msra.mxu0 0.0
  %1992 = vmatprep.subr.mxu0 0.0
  %1993 = vmatpush2.msra.mxu0 0.0
  %1994 = vmatprep.subr.mxu0 0.0
  %1995 = vmatpush2.msra.mxu0 0.0
  %1996 = vmatprep.subr.mxu0 0.0
  %1997 = vmatpush2.msra.mxu0 0.0
  %1998 = vmatprep.subr.mxu0 0.0
  %1999 = vmatpush2.msra.mxu0 0.0
  %2000 = vmatprep.subr.mxu0 0.0
  %2001 = vmatpush2.msra.mxu0 0.0
  %2002 = vmatprep.subr.mxu0 0.0
  %2003 = vmatpush2.msra.mxu0 0.0
  %2004 = vmatprep.subr.mxu0 0.0
  %2005 = vmatpush2.msra.mxu0 0.0
  %2006 = vmatprep.subr.mxu0 0.0
  %2007 = vmatpush2.msra.mxu0 0.0
  %2008 = vmatprep.subr.mxu0 0.0
  %2009 = vmatpush2.msra.mxu0 0.0
  %2010 = vmatprep.subr.mxu0 0.0
  %2011 = vmatpush2.msra.mxu0 0.0
  %2012 = vmatprep.subr.mxu0 0.0
  %2013 = vmatpush2.msra.mxu0 0.0
  %2014 = vmatprep.subr.mxu0 0.0
  %2015 = vmatpush2.msra.mxu0 0.0
  %2016 = vmatprep.mubr.f32.mxu0 0.0
  %2017 = vmatmul.mubr.f32.gmra.mxu0 %v1735
  %v2018 = vpop.f32.mrf.mxu0
  %v2019 = vadd.f32 0.0, %v2018
  %v2020 = vpop.f32.mrf.mxu0
  %v2021 = vadd.f32 0.0, %v2020
  %2022 = vdwg.mxu0
  %vm2023 = vcmask 523264
  %v2025 = vsel %vm2023, %v1640, 0
  %2027 = vmatprep.subr.mxu0 0.0
  %2028 = vmatpush1.msra.mxu0 0.0
  %2029 = vmatprep.subr.mxu0 0.0
  %2030 = vmatpush1.msra.mxu0 0.0
  %2031 = vmatprep.subr.mxu0 0.0
  %2032 = vmatpush1.msra.mxu0 0.0
  %2033 = vmatprep.subr.mxu0 0.0
  %2034 = vmatpush1.msra.mxu0 0.0
  %2035 = vmatprep.subr.mxu0 0.0
  %2036 = vmatpush1.msra.mxu0 0.0
  %2037 = vmatprep.subr.mxu0 0.0
  %2038 = vmatpush1.msra.mxu0 0.0
  %2039 = vmatprep.subr.mxu0 0.0
  %2040 = vmatpush1.msra.mxu0 0.0
  %2041 = vmatprep.subr.mxu0 0.0
  %2042 = vmatpush1.msra.mxu0 0.0
  %2043 = vmatprep.subr.mxu0 %v1919
  %2044 = vmatpush1.msra.mxu0 %v1918
  %2045 = vmatprep.subr.mxu0 %v1917
  %2046 = vmatpush1.msra.mxu0 %v1916
  %2047 = vmatprep.subr.mxu0 %v1915
  %2048 = vmatpush1.msra.mxu0 %v1914
  %2049 = vmatprep.subr.mxu0 %v1913
  %2050 = vmatpush1.msra.mxu0 %v1912
  %2051 = vmatprep.subr.mxu0 %v1911
  %2052 = vmatpush1.msra.mxu0 %v1910
  %2053 = vmatprep.subr.mxu0 %v1909
  %2054 = vmatpush1.msra.mxu0 %v1908
  %2055 = vmatprep.subr.mxu0 %v1907
  %2056 = vmatpush1.msra.mxu0 %v1906
  %2057 = vmatprep.subr.mxu0 %v1905
  %2058 = vmatpush1.msra.mxu0 %v1904
  %2059 = vmatprep.subr.mxu0 0.0
  %2060 = vmatpush2.msra.mxu0 0.0
  %2061 = vmatprep.subr.mxu0 0.0
  %2062 = vmatpush2.msra.mxu0 0.0
  %2063 = vmatprep.subr.mxu0 0.0
  %2064 = vmatpush2.msra.mxu0 0.0
  %2065 = vmatprep.subr.mxu0 0.0
  %2066 = vmatpush2.msra.mxu0 0.0
  %2067 = vmatprep.subr.mxu0 0.0
  %2068 = vmatpush2.msra.mxu0 0.0
  %2069 = vmatprep.subr.mxu0 0.0
  %2070 = vmatpush2.msra.mxu0 0.0
  %2071 = vmatprep.subr.mxu0 0.0
  %2072 = vmatpush2.msra.mxu0 0.0
  %2073 = vmatprep.subr.mxu0 0.0
  %2074 = vmatpush2.msra.mxu0 0.0
  %2075 = vmatprep.subr.mxu0 0.0
  %2076 = vmatpush2.msra.mxu0 0.0
  %2077 = vmatprep.subr.mxu0 0.0
  %2078 = vmatpush2.msra.mxu0 0.0
  %2079 = vmatprep.subr.mxu0 0.0
  %2080 = vmatpush2.msra.mxu0 0.0
  %2081 = vmatprep.subr.mxu0 0.0
  %2082 = vmatpush2.msra.mxu0 0.0
  %2083 = vmatprep.subr.mxu0 0.0
  %2084 = vmatpush2.msra.mxu0 0.0
  %2085 = vmatprep.subr.mxu0 0.0
  %2086 = vmatpush2.msra.mxu0 0.0
  %2087 = vmatprep.subr.mxu0 0.0
  %2088 = vmatpush2.msra.mxu0 0.0
  %2089 = vmatprep.subr.mxu0 0.0
  %2090 = vmatpush2.msra.mxu0 0.0
  %2091 = vmatprep.mubr.f32.mxu0 0.0
  %2092 = vmatmul.mubr.f32.gmra.mxu0 %v2025
  %v2093 = vpop.f32.mrf.mxu0
  %v2094 = vadd.f32 %v2019, %v2093
  %v2095 = vpop.f32.mrf.mxu0
  %v2096 = vadd.f32 %v2021, %v2095
  %2097 = vdwg.mxu0
  %v2098 = vld [vmem:[%s8 + $0x180] sm:$0xff]
  %v2099 = vld [vmem:[%s8 + $0x188] sm:$0xff]
  %v2100 = vld [vmem:[%s8 + $0x190] sm:$0xff]
  %v2101 = vld [vmem:[%s8 + $0x198] sm:$0xff]
  %v2102 = vld [vmem:[%s8 + $0x1a0] sm:$0xff]
  %v2103 = vld [vmem:[%s8 + $0x1a8] sm:$0xff]
  %v2104 = vld [vmem:[%s8 + $0x1b0] sm:$0xff]
  %v2105 = vld [vmem:[%s8 + $0x1b8] sm:$0xff]
  %v2106 = vld [vmem:[%s8 + $0x1c0] sm:$0xff]
  %v2107 = vld [vmem:[%s8 + $0x1c8] sm:$0xff]
  %v2108 = vld [vmem:[%s8 + $0x1d0] sm:$0xff]
  %v2109 = vld [vmem:[%s8 + $0x1d8] sm:$0xff]
  %v2110 = vld [vmem:[%s8 + $0x1e0] sm:$0xff]
  %v2111 = vld [vmem:[%s8 + $0x1e8] sm:$0xff]
  %v2112 = vld [vmem:[%s8 + $0x1f0] sm:$0xff]
  %v2113 = vld [vmem:[%s8 + $0x1f8] sm:$0xff]
  %v2114 = vld [vmem:[%s8 + $0x200] sm:$0xff]
  %v2115 = vld [vmem:[%s8 + $0x208] sm:$0xff]
  %v2116 = vld [vmem:[%s8 + $0x210] sm:$0xff]
  %v2117 = vld [vmem:[%s8 + $0x218] sm:$0xff]
  %v2118 = vld [vmem:[%s8 + $0x220] sm:$0xff]
  %v2119 = vld [vmem:[%s8 + $0x228] sm:$0xff]
  %v2120 = vld [vmem:[%s8 + $0x230] sm:$0xff]
  %v2121 = vld [vmem:[%s8 + $0x238] sm:$0xff]
  %v2122 = vld [vmem:[%s8 + $0x240] sm:$0xff]
  %v2123 = vld [vmem:[%s8 + $0x248] sm:$0xff]
  %v2124 = vld [vmem:[%s8 + $0x250] sm:$0xff]
  %v2125 = vld [vmem:[%s8 + $0x258] sm:$0xff]
  %v2126 = vld [vmem:[%s8 + $0x260] sm:$0xff]
  %v2127 = vld [vmem:[%s8 + $0x268] sm:$0xff]
  %v2128 = vld [vmem:[%s8 + $0x270] sm:$0xff]
  %v2129 = vld [vmem:[%s8 + $0x278] sm:$0xff]
  %v2130 = vld [vmem:[%s8 + $0x280] sm:$0xff]
  %v2131 = vld [vmem:[%s8 + $0x288] sm:$0xff]
  %v2132 = vld [vmem:[%s8 + $0x290] sm:$0xff]
  %v2133 = vld [vmem:[%s8 + $0x298] sm:$0xff]
  %v2134 = vld [vmem:[%s8 + $0x2a0] sm:$0xff]
  %v2135 = vld [vmem:[%s8 + $0x2a8] sm:$0xff]
  %v2136 = vld [vmem:[%s8 + $0x2b0] sm:$0xff]
  %v2137 = vld [vmem:[%s8 + $0x2b8] sm:$0xff]
  %v2138 = vld [vmem:[%s8 + $0x2c0] sm:$0xff]
  %v2139 = vld [vmem:[%s8 + $0x2c8] sm:$0xff]
  %v2140 = vld [vmem:[%s8 + $0x2d0] sm:$0xff]
  %v2141 = vld [vmem:[%s8 + $0x2d8] sm:$0xff]
  %v2142 = vld [vmem:[%s8 + $0x2e0] sm:$0xff]
  %v2143 = vld [vmem:[%s8 + $0x2e8] sm:$0xff]
  %v2144 = vld [vmem:[%s8 + $0x2f0] sm:$0xff]
  %v2145 = vld [vmem:[%s8 + $0x2f8] sm:$0xff]
  %v2147 = vsel %vm2023, %v1807, 0
  %2149 = vmatprep.subr.mxu0 %v2129
  %2150 = vmatpush1.msra.mxu0 %v2128
  %2151 = vmatprep.subr.mxu0 %v2127
  %2152 = vmatpush1.msra.mxu0 %v2126
  %2153 = vmatprep.subr.mxu0 %v2125
  %2154 = vmatpush1.msra.mxu0 %v2124
  %2155 = vmatprep.subr.mxu0 %v2123
  %2156 = vmatpush1.msra.mxu0 %v2122
  %2157 = vmatprep.subr.mxu0 %v2121
  %2158 = vmatpush1.msra.mxu0 %v2120
  %2159 = vmatprep.subr.mxu0 %v2119
  %2160 = vmatpush1.msra.mxu0 %v2118
  %2161 = vmatprep.subr.mxu0 %v2117
  %2162 = vmatpush1.msra.mxu0 %v2116
  %2163 = vmatprep.subr.mxu0 %v2115
  %2164 = vmatpush1.msra.mxu0 %v2114
  %2165 = vmatprep.subr.mxu0 %v2113
  %2166 = vmatpush1.msra.mxu0 %v2112
  %2167 = vmatprep.subr.mxu0 %v2111
  %2168 = vmatpush1.msra.mxu0 %v2110
  %2169 = vmatprep.subr.mxu0 %v2109
  %2170 = vmatpush1.msra.mxu0 %v2108
  %2171 = vmatprep.subr.mxu0 %v2107
  %2172 = vmatpush1.msra.mxu0 %v2106
  %2173 = vmatprep.subr.mxu0 %v2105
  %2174 = vmatpush1.msra.mxu0 %v2104
  %2175 = vmatprep.subr.mxu0 %v2103
  %2176 = vmatpush1.msra.mxu0 %v2102
  %2177 = vmatprep.subr.mxu0 %v2101
  %2178 = vmatpush1.msra.mxu0 %v2100
  %2179 = vmatprep.subr.mxu0 %v2099
  %2180 = vmatpush1.msra.mxu0 %v2098
  %2181 = vmatprep.subr.mxu0 0.0
  %2182 = vmatpush2.msra.mxu0 0.0
  %2183 = vmatprep.subr.mxu0 0.0
  %2184 = vmatpush2.msra.mxu0 0.0
  %2185 = vmatprep.subr.mxu0 0.0
  %2186 = vmatpush2.msra.mxu0 0.0
  %2187 = vmatprep.subr.mxu0 0.0
  %2188 = vmatpush2.msra.mxu0 0.0
  %2189 = vmatprep.subr.mxu0 0.0
  %2190 = vmatpush2.msra.mxu0 0.0
  %2191 = vmatprep.subr.mxu0 0.0
  %2192 = vmatpush2.msra.mxu0 0.0
  %2193 = vmatprep.subr.mxu0 0.0
  %2194 = vmatpush2.msra.mxu0 0.0
  %2195 = vmatprep.subr.mxu0 0.0
  %2196 = vmatpush2.msra.mxu0 0.0
  %2197 = vmatprep.subr.mxu0 %v2145
  %2198 = vmatpush2.msra.mxu0 %v2144
  %2199 = vmatprep.subr.mxu0 %v2143
  %2200 = vmatpush2.msra.mxu0 %v2142
  %2201 = vmatprep.subr.mxu0 %v2141
  %2202 = vmatpush2.msra.mxu0 %v2140
  %2203 = vmatprep.subr.mxu0 %v2139
  %2204 = vmatpush2.msra.mxu0 %v2138
  %2205 = vmatprep.subr.mxu0 %v2137
  %2206 = vmatpush2.msra.mxu0 %v2136
  %2207 = vmatprep.subr.mxu0 %v2135
  %2208 = vmatpush2.msra.mxu0 %v2134
  %2209 = vmatprep.subr.mxu0 %v2133
  %2210 = vmatpush2.msra.mxu0 %v2132
  %2211 = vmatprep.subr.mxu0 %v2131
  %2212 = vmatpush2.msra.mxu0 %v2130
  %2213 = vmatprep.mubr.f32.mxu0 %v2147
  %2214 = vmatmul.mubr.f32.gmra.mxu0 %v1805
  %v2215 = vpop.f32.mrf.mxu0
  %v2216 = vadd.f32 0.0, %v2215
  %v2217 = vpop.f32.mrf.mxu0
  %v2218 = vadd.f32 0.0, %v2217
  %2219 = vdwg.mxu0
  %v2220 = vadd.f32 %v2094, %v2216
  %v2221 = vadd.f32 %v2096, %v2218
  %v2222 = vld [vmem:[%s8 + $0x300] sm:$0xff]
  %v2223 = vld [vmem:[%s8 + $0x308] sm:$0xff]
  %v2224 = vld [vmem:[%s8 + $0x310] sm:$0xff]
  %v2225 = vld [vmem:[%s8 + $0x318] sm:$0xff]
  %v2226 = vld [vmem:[%s8 + $0x320] sm:$0xff]
  %v2227 = vld [vmem:[%s8 + $0x328] sm:$0xff]
  %v2228 = vld [vmem:[%s8 + $0x330] sm:$0xff]
  %v2229 = vld [vmem:[%s8 + $0x338] sm:$0xff]
  %v2230 = vld [vmem:[%s8 + $0x340] sm:$0xff]
  %v2231 = vld [vmem:[%s8 + $0x348] sm:$0xff]
  %v2232 = vld [vmem:[%s8 + $0x350] sm:$0xff]
  %v2233 = vld [vmem:[%s8 + $0x358] sm:$0xff]
  %v2234 = vld [vmem:[%s8 + $0x360] sm:$0xff]
  %v2235 = vld [vmem:[%s8 + $0x368] sm:$0xff]
  %v2236 = vld [vmem:[%s8 + $0x370] sm:$0xff]
  %v2237 = vld [vmem:[%s8 + $0x378] sm:$0xff]
  %v2239 = vsel %vm2023, %v1901, 0
  %2241 = vmatprep.subr.mxu0 0.0
  %2242 = vmatpush1.msra.mxu0 0.0
  %2243 = vmatprep.subr.mxu0 0.0
  %2244 = vmatpush1.msra.mxu0 0.0
  %2245 = vmatprep.subr.mxu0 0.0
  %2246 = vmatpush1.msra.mxu0 0.0
  %2247 = vmatprep.subr.mxu0 0.0
  %2248 = vmatpush1.msra.mxu0 0.0
  %2249 = vmatprep.subr.mxu0 0.0
  %2250 = vmatpush1.msra.mxu0 0.0
  %2251 = vmatprep.subr.mxu0 0.0
  %2252 = vmatpush1.msra.mxu0 0.0
  %2253 = vmatprep.subr.mxu0 0.0
  %2254 = vmatpush1.msra.mxu0 0.0
  %2255 = vmatprep.subr.mxu0 0.0
  %2256 = vmatpush1.msra.mxu0 0.0
  %2257 = vmatprep.subr.mxu0 %v2237
  %2258 = vmatpush1.msra.mxu0 %v2236
  %2259 = vmatprep.subr.mxu0 %v2235
  %2260 = vmatpush1.msra.mxu0 %v2234
  %2261 = vmatprep.subr.mxu0 %v2233
  %2262 = vmatpush1.msra.mxu0 %v2232
  %2263 = vmatprep.subr.mxu0 %v2231
  %2264 = vmatpush1.msra.mxu0 %v2230
  %2265 = vmatprep.subr.mxu0 %v2229
  %2266 = vmatpush1.msra.mxu0 %v2228
  %2267 = vmatprep.subr.mxu0 %v2227
  %2268 = vmatpush1.msra.mxu0 %v2226
  %2269 = vmatprep.subr.mxu0 %v2225
  %2270 = vmatpush1.msra.mxu0 %v2224
  %2271 = vmatprep.subr.mxu0 %v2223
  %2272 = vmatpush1.msra.mxu0 %v2222
  %2273 = vmatprep.subr.mxu0 0.0
  %2274 = vmatpush2.msra.mxu0 0.0
  %2275 = vmatprep.subr.mxu0 0.0
  %2276 = vmatpush2.msra.mxu0 0.0
  %2277 = vmatprep.subr.mxu0 0.0
  %2278 = vmatpush2.msra.mxu0 0.0
  %2279 = vmatprep.subr.mxu0 0.0
  %2280 = vmatpush2.msra.mxu0 0.0
  %2281 = vmatprep.subr.mxu0 0.0
  %2282 = vmatpush2.msra.mxu0 0.0
  %2283 = vmatprep.subr.mxu0 0.0
  %2284 = vmatpush2.msra.mxu0 0.0
  %2285 = vmatprep.subr.mxu0 0.0
  %2286 = vmatpush2.msra.mxu0 0.0
  %2287 = vmatprep.subr.mxu0 0.0
  %2288 = vmatpush2.msra.mxu0 0.0
  %2289 = vmatprep.subr.mxu0 0.0
  %2290 = vmatpush2.msra.mxu0 0.0
  %2291 = vmatprep.subr.mxu0 0.0
  %2292 = vmatpush2.msra.mxu0 0.0
  %2293 = vmatprep.subr.mxu0 0.0
  %2294 = vmatpush2.msra.mxu0 0.0
  %2295 = vmatprep.subr.mxu0 0.0
  %2296 = vmatpush2.msra.mxu0 0.0
  %2297 = vmatprep.subr.mxu0 0.0
  %2298 = vmatpush2.msra.mxu0 0.0
  %2299 = vmatprep.subr.mxu0 0.0
  %2300 = vmatpush2.msra.mxu0 0.0
  %2301 = vmatprep.subr.mxu0 0.0
  %2302 = vmatpush2.msra.mxu0 0.0
  %2303 = vmatprep.subr.mxu0 0.0
  %2304 = vmatpush2.msra.mxu0 0.0
  %2305 = vmatprep.mubr.f32.mxu0 0.0
  %2306 = vmatmul.mubr.f32.gmra.mxu0 %v2239
  %v2307 = vpop.f32.mrf.mxu0
  %v2308 = vadd.f32 0.0, %v2307
  %v2309 = vpop.f32.mrf.mxu0
  %v2310 = vadd.f32 0.0, %v2309
  %2311 = vdwg.mxu0
  %v2312 = vadd.f32 %v2220, %v2308
  %v2313 = vadd.f32 %v2221, %v2310
  %v2314 = vld [vmem:[%s9] sm:$0x3]
  %v2316 = vlaneseq
  %v2317 = vshrl.u32 %v2316, 7
  %v2318 = vsub.s32 0, %v2317
  %v2319 = vrot.slane %v2314, %v2318
  %v2320 = vlaneseq
  %v2321 = vshrl.u32 %v2320, 7
  %v2322 = vsub.s32 1, %v2321
  %v2323 = vrot.slane %v2314, %v2322
  %v2326 = vadd.f32 %v2312, %v2319
  %v2327 = vadd.f32 %v2313, %v2323
  %v2328 = vld [vmem:[%s10] sm:$0xff]
  %v2329 = vld [vmem:[%s10 + $0x8] sm:$0xff]
  %v2330 = vld [vmem:[%s10 + $0x10] sm:$0xff]
  %v2331 = vld [vmem:[%s10 + $0x18] sm:$0xff]
  %v2332 = vld [vmem:[%s10 + $0x20] sm:$0xff]
  %v2333 = vld [vmem:[%s10 + $0x28] sm:$0xff]
  %v2334 = vld [vmem:[%s10 + $0x30] sm:$0xff]
  %v2335 = vld [vmem:[%s10 + $0x38] sm:$0xff]
  %v2336 = vld [vmem:[%s10 + $0x40] sm:$0xff]
  %v2337 = vld [vmem:[%s10 + $0x48] sm:$0xff]
  %v2338 = vld [vmem:[%s10 + $0x50] sm:$0xff]
  %v2339 = vld [vmem:[%s10 + $0x58] sm:$0xff]
  %v2340 = vld [vmem:[%s10 + $0x60] sm:$0xff]
  %v2341 = vld [vmem:[%s10 + $0x68] sm:$0xff]
  %v2342 = vld [vmem:[%s10 + $0x70] sm:$0xff]
  %v2343 = vld [vmem:[%s10 + $0x78] sm:$0xff]
  %v2344 = vld [vmem:[%s10 + $0x80] sm:$0xff]
  %v2345 = vld [vmem:[%s10 + $0x88] sm:$0xff]
  %v2346 = vld [vmem:[%s10 + $0x90] sm:$0xff]
  %v2347 = vld [vmem:[%s10 + $0x98] sm:$0xff]
  %v2348 = vld [vmem:[%s10 + $0xa0] sm:$0xff]
  %v2349 = vld [vmem:[%s10 + $0xa8] sm:$0xff]
  %v2350 = vld [vmem:[%s10 + $0xb0] sm:$0xff]
  %v2351 = vld [vmem:[%s10 + $0xb8] sm:$0xff]
  %v2352 = vld [vmem:[%s10 + $0xc0] sm:$0xff]
  %v2353 = vld [vmem:[%s10 + $0xc8] sm:$0xff]
  %v2354 = vld [vmem:[%s10 + $0xd0] sm:$0xff]
  %v2355 = vld [vmem:[%s10 + $0xd8] sm:$0xff]
  %v2356 = vld [vmem:[%s10 + $0xe0] sm:$0xff]
  %v2357 = vld [vmem:[%s10 + $0xe8] sm:$0xff]
  %v2358 = vld [vmem:[%s10 + $0xf0] sm:$0xff]
  %v2359 = vld [vmem:[%s10 + $0xf8] sm:$0xff]
  %v2360 = vld [vmem:[%s11] sm:$0x1]
  %v2362 = vlaneseq
  %v2363 = vshrl.u32 %v2362, 7
  %v2364 = vsub.s32 0, %v2363
  %v2365 = vrot.slane %v2360, %v2364
  %2367 = vmatprep.subr.mxu0 0.0
  %2368 = vmatpush1.msra.mxu0 %v2343
  %2369 = vmatprep.subr.mxu0 0.0
  %2370 = vmatpush1.msra.mxu0 %v2342
  %2371 = vmatprep.subr.mxu0 0.0
  %2372 = vmatpush1.msra.mxu0 %v2341
  %2373 = vmatprep.subr.mxu0 0.0
  %2374 = vmatpush1.msra.mxu0 %v2340
  %2375 = vmatprep.subr.mxu0 0.0
  %2376 = vmatpush1.msra.mxu0 %v2339
  %2377 = vmatprep.subr.mxu0 0.0
  %2378 = vmatpush1.msra.mxu0 %v2338
  %2379 = vmatprep.subr.mxu0 0.0
  %2380 = vmatpush1.msra.mxu0 %v2337
  %2381 = vmatprep.subr.mxu0 0.0
  %2382 = vmatpush1.msra.mxu0 %v2336
  %2383 = vmatprep.subr.mxu0 0.0
  %2384 = vmatpush1.msra.mxu0 %v2335
  %2385 = vmatprep.subr.mxu0 0.0
  %2386 = vmatpush1.msra.mxu0 %v2334
  %2387 = vmatprep.subr.mxu0 0.0
  %2388 = vmatpush1.msra.mxu0 %v2333
  %2389 = vmatprep.subr.mxu0 0.0
  %2390 = vmatpush1.msra.mxu0 %v2332
  %2391 = vmatprep.subr.mxu0 0.0
  %2392 = vmatpush1.msra.mxu0 %v2331
  %2393 = vmatprep.subr.mxu0 0.0
  %2394 = vmatpush1.msra.mxu0 %v2330
  %2395 = vmatprep.subr.mxu0 0.0
  %2396 = vmatpush1.msra.mxu0 %v2329
  %2397 = vmatprep.subr.mxu0 0.0
  %2398 = vmatpush1.msra.mxu0 %v2328
  %2399 = vmatprep.subr.mxu0 0.0
  %2400 = vmatpush2.msra.mxu0 %v2359
  %2401 = vmatprep.subr.mxu0 0.0
  %2402 = vmatpush2.msra.mxu0 %v2358
  %2403 = vmatprep.subr.mxu0 0.0
  %2404 = vmatpush2.msra.mxu0 %v2357
  %2405 = vmatprep.subr.mxu0 0.0
  %2406 = vmatpush2.msra.mxu0 %v2356
  %2407 = vmatprep.subr.mxu0 0.0
  %2408 = vmatpush2.msra.mxu0 %v2355
  %2409 = vmatprep.subr.mxu0 0.0
  %2410 = vmatpush2.msra.mxu0 %v2354
  %2411 = vmatprep.subr.mxu0 0.0
  %2412 = vmatpush2.msra.mxu0 %v2353
  %2413 = vmatprep.subr.mxu0 0.0
  %2414 = vmatpush2.msra.mxu0 %v2352
  %2415 = vmatprep.subr.mxu0 0.0
  %2416 = vmatpush2.msra.mxu0 %v2351
  %2417 = vmatprep.subr.mxu0 0.0
  %2418 = vmatpush2.msra.mxu0 %v2350
  %2419 = vmatprep.subr.mxu0 0.0
  %2420 = vmatpush2.msra.mxu0 %v2349
  %2421 = vmatprep.subr.mxu0 0.0
  %2422 = vmatpush2.msra.mxu0 %v2348
  %2423 = vmatprep.subr.mxu0 0.0
  %2424 = vmatpush2.msra.mxu0 %v2347
  %2425 = vmatprep.subr.mxu0 0.0
  %2426 = vmatpush2.msra.mxu0 %v2346
  %2427 = vmatprep.subr.mxu0 0.0
  %2428 = vmatpush2.msra.mxu0 %v2345
  %2429 = vmatprep.subr.mxu0 0.0
  %2430 = vmatpush2.msra.mxu0 %v2344
  %2431 = vmatprep.mubr.f32.mxu0 %v2327
  %2432 = vmatmul.mubr.f32.gmra.mxu0 %v2326
  %v2433 = vpop.f32.mrf.mxu0
  %v2434 = vadd.f32 %v2365, %v2433
  %v2435 = vpop.f32.mrf.mxu0
  %2436 = vdwg.mxu0
  %2437 = vst [vmem:[%s12] sm:$0xf] %v2434
  // Predicated region
  $region50: #{mrannet_forward.5} parent=0 // pred_check
    _
  $region51: #{mrannet_forward.5} parent=0 // pred_check_branch
    %2439 = sbr.rel (0) target = $region53
  $region52: #{mrannet_forward.5} parent=0 // pred_region
    _
  $region53: #{mrannet_forward.5} parent=0 // pred_fallthru
    _
  // Predicated region
  $region54: #{mrannet_forward.5} parent=0 // pred_check
    _
  $region55: #{mrannet_forward.5} parent=0 // pred_check_branch
    %2441 = sbr.rel (0) target = $region57
  $region56: #{mrannet_forward.5} parent=0 // pred_region
    _
  $region57: #{mrannet_forward.5} parent=0 // pred_fallthru
    _

</llo_original>
